<compile_context>
chip_gen: v7x
topology: tpu7x:2x2x1
jax: 0.10.0
libtpu: 0.0.40
codegen_flags: <defaults>
</compile_context>

<pallas_src>
import math

import jax
import jax.numpy as jnp
from jax.experimental import pallas as pl
from jax.experimental.pallas import tpu as pltpu


def _round_up(x, m):
    return ((x + m - 1) // m) * m


def _cdiv(a, b):
    return (a + b - 1) // b


def _device_kind():
    try:
        return jax.devices()[0].device_kind.lower()
    except Exception:
        return ""


def _pick_vmem_limit(kind):
    if "v7" in kind or "tpu7" in kind or "7x" in kind:
        return 48 * 1024 * 1024            # v7x: 64 MiB physical per TC
    if "v6" in kind or "v5" in kind:
        return 96 * 1024 * 1024            # 128 MiB physical VMEM
    return None                            # unknown: keep scoped default (tiny footprint)


def _pick_relu_dtype(kind, compute_dtype):
    # v6e/v7x have a native bf16 VALU -> ReLU in bf16 halves vreg passes.
    # Older parts (v5e and earlier) keep the f32 ReLU.  Numerics identical.
    if "v6" in kind or "v7" in kind or "tpu7" in kind or "7x" in kind:
        return compute_dtype
    return jnp.float32


# ----------------------------------------------------------------------------
# Static layer plan: per linear -> (part input sizes, fuse-concat flag)
# ----------------------------------------------------------------------------
def _build_layer_plan(input_dim, condition_dim, net_depth, net_width,
                      skip_layer, net_depth_condition, net_width_condition,
                      fuse_k_threshold, compute_dtype):
    """Order matches the kernel's linear() calls: base[0..net_depth-1],
    fused (bottleneck + spacer + sigma) head, rgb hidden layers, rgb out."""
    sublane = 16 if jnp.dtype(compute_dtype).itemsize == 2 else 8

    def plan_one(part_sizes):
        part_sizes = tuple(part_sizes)
        fuse = (len(part_sizes) > 1
                and sum(part_sizes) <= fuse_k_threshold
                # aligned in-kernel concat only (offsets multiple of native tile)
                and all(p % sublane == 0 for p in part_sizes[:-1]))
        return (part_sizes, fuse)

    plan = []
    parts = (input_dim,)
    for i in range(net_depth):
        plan.append(plan_one(parts))
        if skip_layer is not None and i % skip_layer == 0 and i > 0:
            parts = (net_width, input_dim)
        else:
            parts = (net_width,)
    plan.append(plan_one(parts))                         # fused head
    parts = (net_width, condition_dim)
    for _ in range(net_depth_condition):
        plan.append(plan_one(parts))
        parts = (net_width_condition,)
    plan.append(plan_one(parts))                         # rgb output (padded to 4 rows)
    return plan


# ----------------------------------------------------------------------------
# Kernel
# ----------------------------------------------------------------------------
def _make_nerf_kernel(plan, net_depth, net_width, skip_layer,
                      net_depth_condition, compute_dtype, relu_dtype):
    def kernel(x_ref, cond_ref, *rest):
        out_ref = rest[-1]
        param_refs = rest[:-1]
        cursor = [0]
        layer = [0]

        def _take(k):
            vals = param_refs[cursor[0]:cursor[0] + k]
            cursor[0] += k
            return vals

        def linear(parts):
            part_sizes, fuse = plan[layer[0]]
            layer[0] += 1
            assert len(part_sizes) == len(parts)
            if len(parts) == 1 or fuse:
                (w_ref,) = _take(1)
                lhs = parts[0] if len(parts) == 1 else jnp.concatenate(parts, axis=0)
                acc = jnp.dot(w_ref[...], lhs, preferred_element_type=jnp.float32)
            else:
                # virtual concat along features == sum of per-part matmuls
                w_refs = _take(len(parts))
                acc = None
                for part, w_ref in zip(parts, w_refs):
                    term = jnp.dot(w_ref[...], part,
                                   preferred_element_type=jnp.float32)
                    acc = term if acc is None else acc + term
            (b_ref,) = _take(1)
            return acc + b_ref[...]            # bias (out, 1) f32, lane broadcast

        def relu(h_f32):
            # ReLU commutes with f32->bf16 rounding, so cast-first is exact.
            return jnp.maximum(h_f32.astype(relu_dtype), 0).astype(compute_dtype)

        # batch-on-lanes: transpose the small tiles once, in-kernel (XLU),
        # instead of a wrapper-side full-array HBM transpose pass.
        inputs = x_ref[...].T.astype(compute_dtype)      # (input_dim, B)
        cond = cond_ref[...].T.astype(compute_dtype)     # (cond_dim,  B)

        # ---------------- base MLP (ReLU hidden + skip connections) ----------
        parts = [inputs]
        for i in range(net_depth):
            h = relu(linear(parts))
            if skip_layer is not None and i % skip_layer == 0 and i > 0:
                parts = [h, inputs]                      # cat([x, inputs], -1)
            else:
                parts = [h]

        # ------- fused bottleneck + 3 zero spacer rows + sigma head ----------
        head = linear(parts)                             # (net_width + 4, B) f32
        bottleneck = head[:net_width, :].astype(compute_dtype)
        sigma_rows = head[net_width:, :]                 # (4, B): rows 0..2 zero, row 3 = sigma

        # ---------------- rgb MLP on cat([bottleneck, condition]) ------------
        rparts = [bottleneck, cond]
        for _ in range(net_depth_condition):
            rparts = [relu(linear(rparts))]
        rgb4 = linear(rparts)                            # (4, B): rows 0..2 rgb, row 3 zero

        assert cursor[0] == len(param_refs) and layer[0] == len(plan)
        # single fused lane-dense full-block store: rows [rgb(3), sigma(1)]
        out_ref[...] = (rgb4 + sigma_rows).astype(out_ref.dtype)

    return kernel


# ----------------------------------------------------------------------------
# Parameter flattening
# ----------------------------------------------------------------------------
def _split_cols(w, sizes):
    outs, off = [], 0
    for s in sizes:
        outs.append(w[:, off:off + s])
        off += s
    assert off == w.shape[1], (off, w.shape)
    return outs


def _flatten_params(params, plan, *, net_depth, compute_dtype):
    """params (NerfMLP order): base[0..net_depth-1], sigma, bottleneck,
    rgb_hidden[*], rgb_out, each as (W(out,in), b(out,))."""
    eff = list(params[:net_depth])

    # fused head rows: [bottleneck(net_width), zeros(3), sigma(1)]
    w_sigma, b_sigma = params[net_depth]
    w_bneck, b_bneck = params[net_depth + 1]
    w_head = jnp.concatenate(
        [w_bneck, jnp.zeros((3, w_sigma.shape[1]), w_sigma.dtype), w_sigma], axis=0)
    b_head = jnp.concatenate(
        [b_bneck.reshape(-1), jnp.zeros((3,), b_sigma.dtype), b_sigma.reshape(-1)])
    eff.append((w_head, b_head))
    eff.extend(params[net_depth + 2:])

    # pad rgb output to 4 rows (row 3 is zero) so the final store is one block
    w_rgb, b_rgb = eff[-1]
    eff[-1] = (jnp.concatenate([w_rgb, jnp.zeros((1, w_rgb.shape[1]), w_rgb.dtype)], axis=0),
               jnp.concatenate([b_rgb.reshape(-1), jnp.zeros((1,), b_rgb.dtype)]))

    assert len(eff) == len(plan), (len(eff), len(plan))
    flat = []
    for (w, b), (part_sizes, fuse) in zip(eff, plan):
        assert w.shape[1] == sum(part_sizes), (w.shape, part_sizes)
        if len(part_sizes) == 1 or fuse:
            flat.append(w.astype(compute_dtype))
        else:
            flat.extend(p.astype(compute_dtype) for p in _split_cols(w, part_sizes))
        flat.append(b.reshape(-1, 1).astype(jnp.float32))
    return flat


# ----------------------------------------------------------------------------
# Pallas wrapper
# ----------------------------------------------------------------------------
def _choose_tile(n, requested):
    n128 = _round_up(max(n, 1), 128)
    tile = min(_round_up(requested, 128), n128)
    if n128 >= 256:
        # keep >= 2 grid steps so ("parallel",) can use both v7x TensorCores
        tile = min(tile, _round_up(_cdiv(n, 2), 128))
    return max(tile, 128)


def nerf_mlp_pallas_2d(x2, cond2, params, *, net_depth, net_width, skip_layer,
                       net_depth_condition, tile_batch=1024,
                       fuse_k_threshold=128, compute_dtype=jnp.bfloat16):
    n, input_dim = x2.shape
    condition_dim = cond2.shape[-1]
    out_dtype = x2.dtype
    assert condition_dim > 0, "condition-free path not wired into the fused kernel"
    assert net_width % 8 == 0, "net_width must be a sublane multiple"

    if net_depth_condition > 0:
        net_width_condition = params[net_depth + 2][0].shape[0]
    else:
        net_width_condition = 0

    kind = _device_kind()
    relu_dtype = _pick_relu_dtype(kind, compute_dtype)
    vmem_limit = _pick_vmem_limit(kind)

    plan = _build_layer_plan(
        input_dim, condition_dim, net_depth, net_width, skip_layer,
        net_depth_condition, net_width_condition, fuse_k_threshold, compute_dtype)
    flat_params = _flatten_params(params, plan, net_depth=net_depth,
                                  compute_dtype=compute_dtype)

    tile = _choose_tile(n, tile_batch)
    grid_steps = _cdiv(n, tile)

    kernel = _make_nerf_kernel(plan, net_depth, net_width, skip_layer,
                               net_depth_condition, compute_dtype, relu_dtype)

    # inputs read directly in their (batch, feature) HBM layout, ragged tail
    # handled by the cdiv grid (OOB columns are per-column garbage, never stored)
    in_specs = [
        pl.BlockSpec((tile, input_dim), lambda i: (i, 0)),
        pl.BlockSpec((tile, condition_dim), lambda i: (i, 0)),
    ]
    # Grid-invariant weights/biases: whole-array VMEM residents (copied once,
    # not pipelined -> no per-step DMA slots; fits easily in v7x's 64 MiB).
    in_specs += [pl.BlockSpec(memory_space=pltpu.MemorySpace.VMEM)
                 for _ in flat_params]

    out_specs = pl.BlockSpec((4, tile), lambda i: (0, i))
    out_shape = jax.ShapeDtypeStruct((4, n), out_dtype)

    # advisory cost estimate so XLA overlaps surrounding reshape/slice ops
    n_work = grid_steps * tile
    flops = 2 * sum(int(w.shape[0]) * int(w.shape[1]) for (w, _) in params) * n_work
    param_bytes = sum(int(w.size) * jnp.dtype(compute_dtype).itemsize + int(b.size) * 4
                      for (w, b) in params)
    bytes_accessed = int(x2.size) * x2.dtype.itemsize \
        + int(cond2.size) * cond2.dtype.itemsize \
        + param_bytes + 4 * n * jnp.dtype(out_dtype).itemsize

    out = pl.pallas_call(
        kernel,
        out_shape=out_shape,
        grid_spec=pltpu.PrefetchScalarGridSpec(
            num_scalar_prefetch=0,
            grid=(grid_steps,),
            in_specs=in_specs,
            out_specs=out_specs,
        ),
        compiler_params=pltpu.CompilerParams(
            dimension_semantics=("parallel",),       # batch tiles shard across TCs
            vmem_limit_bytes=vmem_limit,
        ),
        cost_estimate=pl.CostEstimate(flops=int(flops), transcendentals=0,
                                      bytes_accessed=int(bytes_accessed)),
    )(x2, cond2, *flat_params)

    rgb = out[:3, :].T            # (n, 3)  -- small (16 B/sample) post-pass
    sigma = out[3:4, :].T         # (n, 1)
    return rgb, sigma


def nerf_mlp_forward(x, condition, params, *, net_depth, net_width, skip_layer,
                     net_depth_condition, tile_batch=1024,
                     fuse_k_threshold=128, compute_dtype=jnp.bfloat16):
    """Mirrors NerfMLP.forward: condition broadcast + flattening in plain JAX."""
    # TODO(synk): condition=None / condition_dim==0 branch (rgb head directly on
    # base features) is not wired into the fused kernel.
    batch_shape = x.shape[:-1]
    if condition.shape[:-1] != batch_shape:
        num_rays, n_dim = condition.shape
        condition = jnp.broadcast_to(
            condition.reshape((num_rays,) + (1,) * (x.ndim - condition.ndim)
                              + (n_dim,)),
            batch_shape + (n_dim,))
    x2 = x.reshape(-1, x.shape[-1])
    c2 = condition.reshape(-1, condition.shape[-1])
    rgb, sigma = nerf_mlp_pallas_2d(
        x2, c2, params, net_depth=net_depth, net_width=net_width,
        skip_layer=skip_layer, net_depth_condition=net_depth_condition,
        tile_batch=tile_batch, fuse_k_threshold=fuse_k_threshold,
        compute_dtype=compute_dtype)
    return rgb.reshape(batch_shape + (3,)), sigma.reshape(batch_shape + (1,))


# ----------------------------------------------------------------------------
# Deterministic parameter init (xavier_uniform weights (out,in), zero biases)
# ----------------------------------------------------------------------------
def init_nerf_params(key, input_dim, condition_dim, *, net_depth, net_width,
                     skip_layer, net_depth_condition, net_width_condition,
                     dtype=jnp.float32):
    def xavier(k, fan_out, fan_in):
        a = math.sqrt(6.0 / (fan_in + fan_out))
        return jax.random.uniform(k, (fan_out, fan_in), dtype, -a, a)

    params = []

    def add_linear(k, fan_in, fan_out):
        params.append((xavier(k, fan_out, fan_in), jnp.zeros((fan_out,), dtype)))

    in_features = input_dim
    for i in range(net_depth):
        key, k = jax.random.split(key)
        add_linear(k, in_features, net_width)
        if skip_layer is not None and i % skip_layer == 0 and i > 0:
            in_features = net_width + input_dim
        else:
            in_features = net_width
    hidden_features = in_features
    key, k = jax.random.split(key); add_linear(k, hidden_features, 1)          # sigma
    key, k = jax.random.split(key); add_linear(k, hidden_features, net_width)  # bottleneck
    in_f = net_width + condition_dim
    for _ in range(net_depth_condition):
        key, k = jax.random.split(key)
        add_linear(k, in_f, net_width_condition)
        in_f = net_width_condition
    key, k = jax.random.split(key); add_linear(k, in_f, 3)                     # rgb out
    return params


# ----------------------------------------------------------------------------
# Pure-JAX reference with matching bf16-matmul / f32-epilogue numerics
# ----------------------------------------------------------------------------
def nerf_mlp_ref_2d(x, condition, params, *, net_depth, skip_layer,
                    net_depth_condition, compute_dtype=jnp.bfloat16):
    it = iter(params)

    def lin(h):
        w, b = next(it)
        return (jnp.dot(h.astype(compute_dtype), w.astype(compute_dtype).T,
                        preferred_element_type=jnp.float32)
                + b.astype(jnp.float32))

    inputs = x
    h = x
    for i in range(net_depth):
        h = jax.nn.relu(lin(h))
        if skip_layer is not None and i % skip_layer == 0 and i > 0:
            h = jnp.concatenate([h, inputs], axis=-1)
    sigma = lin(h)
    bottleneck = lin(h)
    h2 = jnp.concatenate([bottleneck, condition], axis=-1)
    for _ in range(net_depth_condition):
        h2 = jax.nn.relu(lin(h2))
    rgb = lin(h2)
    return rgb, sigma


# ----------------------------------------------------------------------------
if __name__ == "__main__":
    # Small NerfMLP configuration (structure identical to the PyTorch module)
    input_dim = 16
    condition_dim = 8
    net_depth = 8
    net_width = 32
    skip_layer = 4
    net_depth_condition = 1
    net_width_condition = 32

    # flattened batch = 64 * 13 = 832 -> 2 tiles of 512, last one ragged
    num_rays, num_samples = 64, 13

    key = jax.random.PRNGKey(0)
    kx, kc, kp = jax.random.split(key, 3)
    x = jax.random.normal(kx, (num_rays, num_samples, input_dim), jnp.float32)
    condition = jax.random.normal(kc, (num_rays, condition_dim), jnp.float32)

    params = init_nerf_params(
        kp, input_dim, condition_dim, net_depth=net_depth, net_width=net_width,
        skip_layer=skip_layer, net_depth_condition=net_depth_condition,
        net_width_condition=net_width_condition)

    rgb, sigma = nerf_mlp_forward(
        x, condition, params, net_depth=net_depth, net_width=net_width,
        skip_layer=skip_layer, net_depth_condition=net_depth_condition,
        tile_batch=1024)
    jax.block_until_ready((rgb, sigma))

    # correctness check vs. reference using the same bf16/f32 numerics
    cond_b = jnp.broadcast_to(condition[:, None, :],
                              (num_rays, num_samples, condition_dim))
    rgb_ref, sigma_ref = nerf_mlp_ref_2d(
        x.reshape(-1, input_dim), cond_b.reshape(-1, condition_dim), params,
        net_depth=net_depth, skip_layer=skip_layer,
        net_depth_condition=net_depth_condition)
    rgb_ref = rgb_ref.reshape(num_rays, num_samples, 3)
    sigma_ref = sigma_ref.reshape(num_rays, num_samples, 1)

    assert rgb.shape == (num_rays, num_samples, 3)
    assert sigma.shape == (num_rays, num_samples, 1)
    assert jnp.allclose(rgb, rgb_ref, atol=1e-2, rtol=1e-2), \
        float(jnp.max(jnp.abs(rgb - rgb_ref)))
    assert jnp.allclose(sigma, sigma_ref, atol=1e-2, rtol=1e-2), \
        float(jnp.max(jnp.abs(sigma - sigma_ref)))

    print("KERNEL_OK")
</pallas_src>

<mosaic_0001>
module attributes {stable_mosaic.version = 11 : i64} {
  func.func @kernel(%arg0: i32, %arg1: memref<512x16xf32, #tpu.memory_space<vmem>>, %arg2: memref<512x8xf32, #tpu.memory_space<vmem>>, %arg3: memref<32x16xbf16, #tpu.memory_space<vmem>>, %arg4: memref<32x1xf32, #tpu.memory_space<vmem>>, %arg5: memref<32x32xbf16, #tpu.memory_space<vmem>>, %arg6: memref<32x1xf32, #tpu.memory_space<vmem>>, %arg7: memref<32x32xbf16, #tpu.memory_space<vmem>>, %arg8: memref<32x1xf32, #tpu.memory_space<vmem>>, %arg9: memref<32x32xbf16, #tpu.memory_space<vmem>>, %arg10: memref<32x1xf32, #tpu.memory_space<vmem>>, %arg11: memref<32x32xbf16, #tpu.memory_space<vmem>>, %arg12: memref<32x1xf32, #tpu.memory_space<vmem>>, %arg13: memref<32x48xbf16, #tpu.memory_space<vmem>>, %arg14: memref<32x1xf32, #tpu.memory_space<vmem>>, %arg15: memref<32x32xbf16, #tpu.memory_space<vmem>>, %arg16: memref<32x1xf32, #tpu.memory_space<vmem>>, %arg17: memref<32x32xbf16, #tpu.memory_space<vmem>>, %arg18: memref<32x1xf32, #tpu.memory_space<vmem>>, %arg19: memref<36x32xbf16, #tpu.memory_space<vmem>>, %arg20: memref<36x1xf32, #tpu.memory_space<vmem>>, %arg21: memref<32x40xbf16, #tpu.memory_space<vmem>>, %arg22: memref<32x1xf32, #tpu.memory_space<vmem>>, %arg23: memref<4x32xbf16, #tpu.memory_space<vmem>>, %arg24: memref<4x1xf32, #tpu.memory_space<vmem>>, %arg25: memref<4x512xf32, #tpu.memory_space<vmem>>) attributes {dimension_semantics = [#tpu.dimension_semantics<parallel>], iteration_bounds = array<i64: 2>, scalar_prefetch = 0 : i64, scratch_operands = 0 : i64, tpu.core_type = #tpu.core_type<tc>, window_params = [{transform_indices = @transform_0, window_bounds = array<i64: 512, 16>}, {transform_indices = @transform_1, window_bounds = array<i64: 512, 8>}, {pipeline_mode = #tpu.pipeline_mode<synchronous>, transform_indices = @transform_2, window_bounds = array<i64: 32, 16>}, {pipeline_mode = #tpu.pipeline_mode<synchronous>, transform_indices = @transform_3, window_bounds = array<i64: 32, 1>}, {pipeline_mode = #tpu.pipeline_mode<synchronous>, transform_indices = @transform_4, window_bounds = array<i64: 32, 32>}, {pipeline_mode = #tpu.pipeline_mode<synchronous>, transform_indices = @transform_5, window_bounds = array<i64: 32, 1>}, {pipeline_mode = #tpu.pipeline_mode<synchronous>, transform_indices = @transform_6, window_bounds = array<i64: 32, 32>}, {pipeline_mode = #tpu.pipeline_mode<synchronous>, transform_indices = @transform_7, window_bounds = array<i64: 32, 1>}, {pipeline_mode = #tpu.pipeline_mode<synchronous>, transform_indices = @transform_8, window_bounds = array<i64: 32, 32>}, {pipeline_mode = #tpu.pipeline_mode<synchronous>, transform_indices = @transform_9, window_bounds = array<i64: 32, 1>}, {pipeline_mode = #tpu.pipeline_mode<synchronous>, transform_indices = @transform_10, window_bounds = array<i64: 32, 32>}, {pipeline_mode = #tpu.pipeline_mode<synchronous>, transform_indices = @transform_11, window_bounds = array<i64: 32, 1>}, {pipeline_mode = #tpu.pipeline_mode<synchronous>, transform_indices = @transform_12, window_bounds = array<i64: 32, 48>}, {pipeline_mode = #tpu.pipeline_mode<synchronous>, transform_indices = @transform_13, window_bounds = array<i64: 32, 1>}, {pipeline_mode = #tpu.pipeline_mode<synchronous>, transform_indices = @transform_14, window_bounds = array<i64: 32, 32>}, {pipeline_mode = #tpu.pipeline_mode<synchronous>, transform_indices = @transform_15, window_bounds = array<i64: 32, 1>}, {pipeline_mode = #tpu.pipeline_mode<synchronous>, transform_indices = @transform_16, window_bounds = array<i64: 32, 32>}, {pipeline_mode = #tpu.pipeline_mode<synchronous>, transform_indices = @transform_17, window_bounds = array<i64: 32, 1>}, {pipeline_mode = #tpu.pipeline_mode<synchronous>, transform_indices = @transform_18, window_bounds = array<i64: 36, 32>}, {pipeline_mode = #tpu.pipeline_mode<synchronous>, transform_indices = @transform_19, window_bounds = array<i64: 36, 1>}, {pipeline_mode = #tpu.pipeline_mode<synchronous>, transform_indices = @transform_20, window_bounds = array<i64: 32, 40>}, {pipeline_mode = #tpu.pipeline_mode<synchronous>, transform_indices = @transform_21, window_bounds = array<i64: 32, 1>}, {pipeline_mode = #tpu.pipeline_mode<synchronous>, transform_indices = @transform_22, window_bounds = array<i64: 4, 32>}, {pipeline_mode = #tpu.pipeline_mode<synchronous>, transform_indices = @transform_23, window_bounds = array<i64: 4, 1>}, {transform_indices = @transform_24, window_bounds = array<i64: 4, 512>}]} {
    %c0 = arith.constant 0 : index
    %c0_0 = arith.constant 0 : index
    %0 = vector.load %arg1[%c0, %c0_0] : memref<512x16xf32, #tpu.memory_space<vmem>>, vector<512x16xf32>
    %1 = tpu.transpose %0, [1, 0] : vector<512x16xf32> -> vector<16x512xf32>
    %2 = arith.truncf %1 : vector<16x512xf32> to vector<16x512xbf16>
    %c0_1 = arith.constant 0 : index
    %c0_2 = arith.constant 0 : index
    %3 = vector.load %arg2[%c0_1, %c0_2] : memref<512x8xf32, #tpu.memory_space<vmem>>, vector<512x8xf32>
    %4 = tpu.transpose %3, [1, 0] : vector<512x8xf32> -> vector<8x512xf32>
    %5 = arith.truncf %4 : vector<8x512xf32> to vector<8x512xbf16>
    %c0_3 = arith.constant 0 : index
    %c0_4 = arith.constant 0 : index
    %6 = vector.load %arg3[%c0_3, %c0_4] : memref<32x16xbf16, #tpu.memory_space<vmem>>, vector<32x16xbf16>
    %cst = arith.constant dense<0.000000e+00> : vector<32x512xf32>
    %7 = tpu.matmul %6, %2, %cst {dimension_numbers = #tpu.dot_dimension_numbers<[1], [0], [0], [1], [0, 0, 1, 1], [], []>} : vector<32x16xbf16>, vector<16x512xbf16>, vector<32x512xf32> -> vector<32x512xf32>
    %c0_5 = arith.constant 0 : index
    %c0_6 = arith.constant 0 : index
    %8 = vector.load %arg4[%c0_5, %c0_6] : memref<32x1xf32, #tpu.memory_space<vmem>>, vector<32x1xf32>
    %9 = vector.broadcast %8 : vector<32x1xf32> to vector<32x512xf32>
    %10 = arith.addf %7, %9 : vector<32x512xf32>
    %cst_7 = arith.constant 0.000000e+00 : f32
    %11 = vector.broadcast %cst_7 : f32 to vector<32x512xf32>
    %12 = arith.maximumf %10, %11 : vector<32x512xf32>
    %13 = arith.truncf %12 : vector<32x512xf32> to vector<32x512xbf16>
    %c0_8 = arith.constant 0 : index
    %c0_9 = arith.constant 0 : index
    %14 = vector.load %arg5[%c0_8, %c0_9] : memref<32x32xbf16, #tpu.memory_space<vmem>>, vector<32x32xbf16>
    %cst_10 = arith.constant dense<0.000000e+00> : vector<32x512xf32>
    %15 = tpu.matmul %14, %13, %cst_10 {dimension_numbers = #tpu.dot_dimension_numbers<[1], [0], [0], [1], [0, 0, 1, 1], [], []>} : vector<32x32xbf16>, vector<32x512xbf16>, vector<32x512xf32> -> vector<32x512xf32>
    %c0_11 = arith.constant 0 : index
    %c0_12 = arith.constant 0 : index
    %16 = vector.load %arg6[%c0_11, %c0_12] : memref<32x1xf32, #tpu.memory_space<vmem>>, vector<32x1xf32>
    %17 = vector.broadcast %16 : vector<32x1xf32> to vector<32x512xf32>
    %18 = arith.addf %15, %17 : vector<32x512xf32>
    %cst_13 = arith.constant 0.000000e+00 : f32
    %19 = vector.broadcast %cst_13 : f32 to vector<32x512xf32>
    %20 = arith.maximumf %18, %19 : vector<32x512xf32>
    %21 = arith.truncf %20 : vector<32x512xf32> to vector<32x512xbf16>
    %c0_14 = arith.constant 0 : index
    %c0_15 = arith.constant 0 : index
    %22 = vector.load %arg7[%c0_14, %c0_15] : memref<32x32xbf16, #tpu.memory_space<vmem>>, vector<32x32xbf16>
    %cst_16 = arith.constant dense<0.000000e+00> : vector<32x512xf32>
    %23 = tpu.matmul %22, %21, %cst_16 {dimension_numbers = #tpu.dot_dimension_numbers<[1], [0], [0], [1], [0, 0, 1, 1], [], []>} : vector<32x32xbf16>, vector<32x512xbf16>, vector<32x512xf32> -> vector<32x512xf32>
    %c0_17 = arith.constant 0 : index
    %c0_18 = arith.constant 0 : index
    %24 = vector.load %arg8[%c0_17, %c0_18] : memref<32x1xf32, #tpu.memory_space<vmem>>, vector<32x1xf32>
    %25 = vector.broadcast %24 : vector<32x1xf32> to vector<32x512xf32>
    %26 = arith.addf %23, %25 : vector<32x512xf32>
    %cst_19 = arith.constant 0.000000e+00 : f32
    %27 = vector.broadcast %cst_19 : f32 to vector<32x512xf32>
    %28 = arith.maximumf %26, %27 : vector<32x512xf32>
    %29 = arith.truncf %28 : vector<32x512xf32> to vector<32x512xbf16>
    %c0_20 = arith.constant 0 : index
    %c0_21 = arith.constant 0 : index
    %30 = vector.load %arg9[%c0_20, %c0_21] : memref<32x32xbf16, #tpu.memory_space<vmem>>, vector<32x32xbf16>
    %cst_22 = arith.constant dense<0.000000e+00> : vector<32x512xf32>
    %31 = tpu.matmul %30, %29, %cst_22 {dimension_numbers = #tpu.dot_dimension_numbers<[1], [0], [0], [1], [0, 0, 1, 1], [], []>} : vector<32x32xbf16>, vector<32x512xbf16>, vector<32x512xf32> -> vector<32x512xf32>
    %c0_23 = arith.constant 0 : index
    %c0_24 = arith.constant 0 : index
    %32 = vector.load %arg10[%c0_23, %c0_24] : memref<32x1xf32, #tpu.memory_space<vmem>>, vector<32x1xf32>
    %33 = vector.broadcast %32 : vector<32x1xf32> to vector<32x512xf32>
    %34 = arith.addf %31, %33 : vector<32x512xf32>
    %cst_25 = arith.constant 0.000000e+00 : f32
    %35 = vector.broadcast %cst_25 : f32 to vector<32x512xf32>
    %36 = arith.maximumf %34, %35 : vector<32x512xf32>
    %37 = arith.truncf %36 : vector<32x512xf32> to vector<32x512xbf16>
    %c0_26 = arith.constant 0 : index
    %c0_27 = arith.constant 0 : index
    %38 = vector.load %arg11[%c0_26, %c0_27] : memref<32x32xbf16, #tpu.memory_space<vmem>>, vector<32x32xbf16>
    %cst_28 = arith.constant dense<0.000000e+00> : vector<32x512xf32>
    %39 = tpu.matmul %38, %37, %cst_28 {dimension_numbers = #tpu.dot_dimension_numbers<[1], [0], [0], [1], [0, 0, 1, 1], [], []>} : vector<32x32xbf16>, vector<32x512xbf16>, vector<32x512xf32> -> vector<32x512xf32>
    %c0_29 = arith.constant 0 : index
    %c0_30 = arith.constant 0 : index
    %40 = vector.load %arg12[%c0_29, %c0_30] : memref<32x1xf32, #tpu.memory_space<vmem>>, vector<32x1xf32>
    %41 = vector.broadcast %40 : vector<32x1xf32> to vector<32x512xf32>
    %42 = arith.addf %39, %41 : vector<32x512xf32>
    %cst_31 = arith.constant 0.000000e+00 : f32
    %43 = vector.broadcast %cst_31 : f32 to vector<32x512xf32>
    %44 = arith.maximumf %42, %43 : vector<32x512xf32>
    %45 = arith.truncf %44 : vector<32x512xf32> to vector<32x512xbf16>
    %46 = tpu.concatenate %45, %2 in 0 : vector<32x512xbf16>, vector<16x512xbf16> -> vector<48x512xbf16>
    %c0_32 = arith.constant 0 : index
    %c0_33 = arith.constant 0 : index
    %47 = vector.load %arg13[%c0_32, %c0_33] : memref<32x48xbf16, #tpu.memory_space<vmem>>, vector<32x48xbf16>
    %cst_34 = arith.constant dense<0.000000e+00> : vector<32x512xf32>
    %48 = tpu.matmul %47, %46, %cst_34 {dimension_numbers = #tpu.dot_dimension_numbers<[1], [0], [0], [1], [0, 0, 1, 1], [], []>} : vector<32x48xbf16>, vector<48x512xbf16>, vector<32x512xf32> -> vector<32x512xf32>
    %c0_35 = arith.constant 0 : index
    %c0_36 = arith.constant 0 : index
    %49 = vector.load %arg14[%c0_35, %c0_36] : memref<32x1xf32, #tpu.memory_space<vmem>>, vector<32x1xf32>
    %50 = vector.broadcast %49 : vector<32x1xf32> to vector<32x512xf32>
    %51 = arith.addf %48, %50 : vector<32x512xf32>
    %cst_37 = arith.constant 0.000000e+00 : f32
    %52 = vector.broadcast %cst_37 : f32 to vector<32x512xf32>
    %53 = arith.maximumf %51, %52 : vector<32x512xf32>
    %54 = arith.truncf %53 : vector<32x512xf32> to vector<32x512xbf16>
    %c0_38 = arith.constant 0 : index
    %c0_39 = arith.constant 0 : index
    %55 = vector.load %arg15[%c0_38, %c0_39] : memref<32x32xbf16, #tpu.memory_space<vmem>>, vector<32x32xbf16>
    %cst_40 = arith.constant dense<0.000000e+00> : vector<32x512xf32>
    %56 = tpu.matmul %55, %54, %cst_40 {dimension_numbers = #tpu.dot_dimension_numbers<[1], [0], [0], [1], [0, 0, 1, 1], [], []>} : vector<32x32xbf16>, vector<32x512xbf16>, vector<32x512xf32> -> vector<32x512xf32>
    %c0_41 = arith.constant 0 : index
    %c0_42 = arith.constant 0 : index
    %57 = vector.load %arg16[%c0_41, %c0_42] : memref<32x1xf32, #tpu.memory_space<vmem>>, vector<32x1xf32>
    %58 = vector.broadcast %57 : vector<32x1xf32> to vector<32x512xf32>
    %59 = arith.addf %56, %58 : vector<32x512xf32>
    %cst_43 = arith.constant 0.000000e+00 : f32
    %60 = vector.broadcast %cst_43 : f32 to vector<32x512xf32>
    %61 = arith.maximumf %59, %60 : vector<32x512xf32>
    %62 = arith.truncf %61 : vector<32x512xf32> to vector<32x512xbf16>
    %c0_44 = arith.constant 0 : index
    %c0_45 = arith.constant 0 : index
    %63 = vector.load %arg17[%c0_44, %c0_45] : memref<32x32xbf16, #tpu.memory_space<vmem>>, vector<32x32xbf16>
    %cst_46 = arith.constant dense<0.000000e+00> : vector<32x512xf32>
    %64 = tpu.matmul %63, %62, %cst_46 {dimension_numbers = #tpu.dot_dimension_numbers<[1], [0], [0], [1], [0, 0, 1, 1], [], []>} : vector<32x32xbf16>, vector<32x512xbf16>, vector<32x512xf32> -> vector<32x512xf32>
    %c0_47 = arith.constant 0 : index
    %c0_48 = arith.constant 0 : index
    %65 = vector.load %arg18[%c0_47, %c0_48] : memref<32x1xf32, #tpu.memory_space<vmem>>, vector<32x1xf32>
    %66 = vector.broadcast %65 : vector<32x1xf32> to vector<32x512xf32>
    %67 = arith.addf %64, %66 : vector<32x512xf32>
    %cst_49 = arith.constant 0.000000e+00 : f32
    %68 = vector.broadcast %cst_49 : f32 to vector<32x512xf32>
    %69 = arith.maximumf %67, %68 : vector<32x512xf32>
    %70 = arith.truncf %69 : vector<32x512xf32> to vector<32x512xbf16>
    %c0_50 = arith.constant 0 : index
    %c0_51 = arith.constant 0 : index
    %71 = vector.load %arg19[%c0_50, %c0_51] : memref<36x32xbf16, #tpu.memory_space<vmem>>, vector<36x32xbf16>
    %cst_52 = arith.constant dense<0.000000e+00> : vector<36x512xf32>
    %72 = tpu.matmul %71, %70, %cst_52 {dimension_numbers = #tpu.dot_dimension_numbers<[1], [0], [0], [1], [0, 0, 1, 1], [], []>} : vector<36x32xbf16>, vector<32x512xbf16>, vector<36x512xf32> -> vector<36x512xf32>
    %c0_53 = arith.constant 0 : index
    %c0_54 = arith.constant 0 : index
    %73 = vector.load %arg20[%c0_53, %c0_54] : memref<36x1xf32, #tpu.memory_space<vmem>>, vector<36x1xf32>
    %74 = vector.broadcast %73 : vector<36x1xf32> to vector<36x512xf32>
    %75 = arith.addf %72, %74 : vector<36x512xf32>
    %76 = vector.extract_strided_slice %75 {offsets = [0, 0], sizes = [32, 512], strides = [1, 1]} : vector<36x512xf32> to vector<32x512xf32>
    %77 = arith.truncf %76 : vector<32x512xf32> to vector<32x512xbf16>
    %78 = vector.extract_strided_slice %75 {offsets = [32, 0], sizes = [4, 512], strides = [1, 1]} : vector<36x512xf32> to vector<4x512xf32>
    %79 = tpu.concatenate %77, %5 in 0 : vector<32x512xbf16>, vector<8x512xbf16> -> vector<40x512xbf16>
    %c0_55 = arith.constant 0 : index
    %c0_56 = arith.constant 0 : index
    %80 = vector.load %arg21[%c0_55, %c0_56] : memref<32x40xbf16, #tpu.memory_space<vmem>>, vector<32x40xbf16>
    %cst_57 = arith.constant dense<0.000000e+00> : vector<32x512xf32>
    %81 = tpu.matmul %80, %79, %cst_57 {dimension_numbers = #tpu.dot_dimension_numbers<[1], [0], [0], [1], [0, 0, 1, 1], [], []>} : vector<32x40xbf16>, vector<40x512xbf16>, vector<32x512xf32> -> vector<32x512xf32>
    %c0_58 = arith.constant 0 : index
    %c0_59 = arith.constant 0 : index
    %82 = vector.load %arg22[%c0_58, %c0_59] : memref<32x1xf32, #tpu.memory_space<vmem>>, vector<32x1xf32>
    %83 = vector.broadcast %82 : vector<32x1xf32> to vector<32x512xf32>
    %84 = arith.addf %81, %83 : vector<32x512xf32>
    %cst_60 = arith.constant 0.000000e+00 : f32
    %85 = vector.broadcast %cst_60 : f32 to vector<32x512xf32>
    %86 = arith.maximumf %84, %85 : vector<32x512xf32>
    %87 = arith.truncf %86 : vector<32x512xf32> to vector<32x512xbf16>
    %c0_61 = arith.constant 0 : index
    %c0_62 = arith.constant 0 : index
    %88 = vector.load %arg23[%c0_61, %c0_62] : memref<4x32xbf16, #tpu.memory_space<vmem>>, vector<4x32xbf16>
    %cst_63 = arith.constant dense<0.000000e+00> : vector<4x512xf32>
    %89 = tpu.matmul %88, %87, %cst_63 {dimension_numbers = #tpu.dot_dimension_numbers<[1], [0], [0], [1], [0, 0, 1, 1], [], []>} : vector<4x32xbf16>, vector<32x512xbf16>, vector<4x512xf32> -> vector<4x512xf32>
    %c0_64 = arith.constant 0 : index
    %c0_65 = arith.constant 0 : index
    %90 = vector.load %arg24[%c0_64, %c0_65] : memref<4x1xf32, #tpu.memory_space<vmem>>, vector<4x1xf32>
    %91 = vector.broadcast %90 : vector<4x1xf32> to vector<4x512xf32>
    %92 = arith.addf %89, %91 : vector<4x512xf32>
    %93 = arith.addf %92, %78 : vector<4x512xf32>
    %c0_66 = arith.constant 0 : index
    %c0_67 = arith.constant 0 : index
    %94 = vector.load %arg25[%c0_66, %c0_67] : memref<4x512xf32, #tpu.memory_space<vmem>>, vector<4x512xf32>
    tpu.vector_store %arg25[%c0_66, %c0_67], %93 {strides = array<i32>} : memref<4x512xf32, #tpu.memory_space<vmem>>, vector<4x512xf32>,
    return
  }
  func.func @transform_0(%arg0: i32) -> (i32, i32) {
    %c0_i32 = arith.constant 0 : i32
    %c0_i32_0 = arith.constant 0 : i32
    return %arg0, %c0_i32 : i32, i32
  }
  func.func @transform_1(%arg0: i32) -> (i32, i32) {
    %c0_i32 = arith.constant 0 : i32
    %c0_i32_0 = arith.constant 0 : i32
    return %arg0, %c0_i32 : i32, i32
  }
  func.func @transform_2(%arg0: i32) -> (i32, i32) {
    %c0_i32 = arith.constant 0 : i32
    %c0_i32_0 = arith.constant 0 : i32
    %c0_i32_1 = arith.constant 0 : i32
    return %c0_i32, %c0_i32_0 : i32, i32
  }
  func.func @transform_3(%arg0: i32) -> (i32, i32) {
    %c0_i32 = arith.constant 0 : i32
    %c0_i32_0 = arith.constant 0 : i32
    %c0_i32_1 = arith.constant 0 : i32
    return %c0_i32, %c0_i32_0 : i32, i32
  }
  func.func @transform_4(%arg0: i32) -> (i32, i32) {
    %c0_i32 = arith.constant 0 : i32
    %c0_i32_0 = arith.constant 0 : i32
    %c0_i32_1 = arith.constant 0 : i32
    return %c0_i32, %c0_i32_0 : i32, i32
  }
  func.func @transform_5(%arg0: i32) -> (i32, i32) {
    %c0_i32 = arith.constant 0 : i32
    %c0_i32_0 = arith.constant 0 : i32
    %c0_i32_1 = arith.constant 0 : i32
    return %c0_i32, %c0_i32_0 : i32, i32
  }
  func.func @transform_6(%arg0: i32) -> (i32, i32) {
    %c0_i32 = arith.constant 0 : i32
    %c0_i32_0 = arith.constant 0 : i32
    %c0_i32_1 = arith.constant 0 : i32
    return %c0_i32, %c0_i32_0 : i32, i32
  }
  func.func @transform_7(%arg0: i32) -> (i32, i32) {
    %c0_i32 = arith.constant 0 : i32
    %c0_i32_0 = arith.constant 0 : i32
    %c0_i32_1 = arith.constant 0 : i32
    return %c0_i32, %c0_i32_0 : i32, i32
  }
  func.func @transform_8(%arg0: i32) -> (i32, i32) {
    %c0_i32 = arith.constant 0 : i32
    %c0_i32_0 = arith.constant 0 : i32
    %c0_i32_1 = arith.constant 0 : i32
    return %c0_i32, %c0_i32_0 : i32, i32
  }
  func.func @transform_9(%arg0: i32) -> (i32, i32) {
    %c0_i32 = arith.constant 0 : i32
    %c0_i32_0 = arith.constant 0 : i32
    %c0_i32_1 = arith.constant 0 : i32
    return %c0_i32, %c0_i32_0 : i32, i32
  }
  func.func @transform_10(%arg0: i32) -> (i32, i32) {
    %c0_i32 = arith.constant 0 : i32
    %c0_i32_0 = arith.constant 0 : i32
    %c0_i32_1 = arith.constant 0 : i32
    return %c0_i32, %c0_i32_0 : i32, i32
  }
  func.func @transform_11(%arg0: i32) -> (i32, i32) {
    %c0_i32 = arith.constant 0 : i32
    %c0_i32_0 = arith.constant 0 : i32
    %c0_i32_1 = arith.constant 0 : i32
    return %c0_i32, %c0_i32_0 : i32, i32
  }
  func.func @transform_12(%arg0: i32) -> (i32, i32) {
    %c0_i32 = arith.constant 0 : i32
    %c0_i32_0 = arith.constant 0 : i32
    %c0_i32_1 = arith.constant 0 : i32
    return %c0_i32, %c0_i32_0 : i32, i32
  }
  func.func @transform_13(%arg0: i32) -> (i32, i32) {
    %c0_i32 = arith.constant 0 : i32
    %c0_i32_0 = arith.constant 0 : i32
    %c0_i32_1 = arith.constant 0 : i32
    return %c0_i32, %c0_i32_0 : i32, i32
  }
  func.func @transform_14(%arg0: i32) -> (i32, i32) {
    %c0_i32 = arith.constant 0 : i32
    %c0_i32_0 = arith.constant 0 : i32
    %c0_i32_1 = arith.constant 0 : i32
    return %c0_i32, %c0_i32_0 : i32, i32
  }
  func.func @transform_15(%arg0: i32) -> (i32, i32) {
    %c0_i32 = arith.constant 0 : i32
    %c0_i32_0 = arith.constant 0 : i32
    %c0_i32_1 = arith.constant 0 : i32
    return %c0_i32, %c0_i32_0 : i32, i32
  }
  func.func @transform_16(%arg0: i32) -> (i32, i32) {
    %c0_i32 = arith.constant 0 : i32
    %c0_i32_0 = arith.constant 0 : i32
    %c0_i32_1 = arith.constant 0 : i32
    return %c0_i32, %c0_i32_0 : i32, i32
  }
  func.func @transform_17(%arg0: i32) -> (i32, i32) {
    %c0_i32 = arith.constant 0 : i32
    %c0_i32_0 = arith.constant 0 : i32
    %c0_i32_1 = arith.constant 0 : i32
    return %c0_i32, %c0_i32_0 : i32, i32
  }
  func.func @transform_18(%arg0: i32) -> (i32, i32) {
    %c0_i32 = arith.constant 0 : i32
    %c0_i32_0 = arith.constant 0 : i32
    %c0_i32_1 = arith.constant 0 : i32
    return %c0_i32, %c0_i32_0 : i32, i32
  }
  func.func @transform_19(%arg0: i32) -> (i32, i32) {
    %c0_i32 = arith.constant 0 : i32
    %c0_i32_0 = arith.constant 0 : i32
    %c0_i32_1 = arith.constant 0 : i32
    return %c0_i32, %c0_i32_0 : i32, i32
  }
  func.func @transform_20(%arg0: i32) -> (i32, i32) {
    %c0_i32 = arith.constant 0 : i32
    %c0_i32_0 = arith.constant 0 : i32
    %c0_i32_1 = arith.constant 0 : i32
    return %c0_i32, %c0_i32_0 : i32, i32
  }
  func.func @transform_21(%arg0: i32) -> (i32, i32) {
    %c0_i32 = arith.constant 0 : i32
    %c0_i32_0 = arith.constant 0 : i32
    %c0_i32_1 = arith.constant 0 : i32
    return %c0_i32, %c0_i32_0 : i32, i32
  }
  func.func @transform_22(%arg0: i32) -> (i32, i32) {
    %c0_i32 = arith.constant 0 : i32
    %c0_i32_0 = arith.constant 0 : i32
    %c0_i32_1 = arith.constant 0 : i32
    return %c0_i32, %c0_i32_0 : i32, i32
  }
  func.func @transform_23(%arg0: i32) -> (i32, i32) {
    %c0_i32 = arith.constant 0 : i32
    %c0_i32_0 = arith.constant 0 : i32
    %c0_i32_1 = arith.constant 0 : i32
    return %c0_i32, %c0_i32_0 : i32, i32
  }
  func.func @transform_24(%arg0: i32) -> (i32, i32) {
    %c0_i32 = arith.constant 0 : i32
    %c0_i32_0 = arith.constant 0 : i32
    return %c0_i32, %arg0 : i32, i32
  }
}

</mosaic_0001>

<llo_original>
// kernel: tpu_custom_call.1
$region0: #{tpu_custom_call.1}
  #allocation0 [shape = 'u32[]', space=smem, size = 0x4, offset = 0x4, fixed_abs, tag = 'smem constant byte address 0x4 - core index']
  #allocation1 [shape = 'u32[144,128]{1,0:T(1,128)}', space=vmem, size = 0x12000, scoped, tag = 'internal scratch']
  %s0 = inlined_call_operand.vmem [shape: f32[832,16], index: 0, kind: input, shape index: {}]
  %s1 = inlined_call_operand.vmem [shape: f32[832,8], index: 1, kind: input, shape index: {}]
  %s2 = inlined_call_operand.vmem [shape: bf16[32,16], index: 2, kind: input, shape index: {}]
  %s3 = inlined_call_operand.vmem [shape: f32[32,1], index: 3, kind: input, shape index: {}]
  %s4 = inlined_call_operand.vmem [shape: bf16[32,32], index: 4, kind: input, shape index: {}]
  %s5 = inlined_call_operand.vmem [shape: f32[32,1], index: 5, kind: input, shape index: {}]
  %s6 = inlined_call_operand.vmem [shape: bf16[32,32], index: 6, kind: input, shape index: {}]
  %s7 = inlined_call_operand.vmem [shape: f32[32,1], index: 7, kind: input, shape index: {}]
  %s8 = inlined_call_operand.vmem [shape: bf16[32,32], index: 8, kind: input, shape index: {}]
  %s9 = inlined_call_operand.vmem [shape: f32[32,1], index: 9, kind: input, shape index: {}]
  %s10 = inlined_call_operand.vmem [shape: bf16[32,32], index: 10, kind: input, shape index: {}]
  %s11 = inlined_call_operand.vmem [shape: f32[32,1], index: 11, kind: input, shape index: {}]
  %s12 = inlined_call_operand.vmem [shape: bf16[32,48], index: 12, kind: input, shape index: {}]
  %s13 = inlined_call_operand.vmem [shape: f32[32,1], index: 13, kind: input, shape index: {}]
  %s14 = inlined_call_operand.vmem [shape: bf16[32,32], index: 14, kind: input, shape index: {}]
  %s15 = inlined_call_operand.vmem [shape: f32[32,1], index: 15, kind: input, shape index: {}]
  %s16 = inlined_call_operand.vmem [shape: bf16[32,32], index: 16, kind: input, shape index: {}]
  %s17 = inlined_call_operand.vmem [shape: f32[32,1], index: 17, kind: input, shape index: {}]
  %s18 = inlined_call_operand.vmem [shape: bf16[36,32], index: 18, kind: input, shape index: {}]
  %s19 = inlined_call_operand.vmem [shape: f32[36,1], index: 19, kind: input, shape index: {}]
  %s20 = inlined_call_operand.vmem [shape: bf16[32,40], index: 20, kind: input, shape index: {}]
  %s21 = inlined_call_operand.vmem [shape: f32[32,1], index: 21, kind: input, shape index: {}]
  %s22 = inlined_call_operand.vmem [shape: bf16[4,32], index: 22, kind: input, shape index: {}]
  %s23 = inlined_call_operand.vmem [shape: f32[4,1], index: 23, kind: input, shape index: {}]
  %s24 = inlined_call_operand.hbm [shape: f32[4,832], index: 24, kind: output, shape index: {}]
  %s25 = sld [smem:[#allocation0]]
  $region129: #{tpu_custom_call.1} parent=0
    _
  %s27 = ssub.s32 1, %s25
  %s28 = scalar_select 0, %s27, %s25
  $region1: #{tpu_custom_call.1} parent=0
    #allocation2 [shape = 'u8[16384]{0}', space=vmem, size = 0x4000, scoped, tag = 'output window, operand 0']
    #allocation3 [shape = 's32[2]{0}', space=sflag, size = 0x8, scoped, tag = 'scoped memory for tpu_custom_call.1']
    %29 = vsyncpa [#allocation3], 0
    %s30 = scalar_lea.sflag [#allocation3], 1
    %31 = vsyncpa %s30, 0
    loop: start=0, step=1, limit=4
    $region2: #{tpu_custom_call.1} parent=1 // loop_pre_header
      _
    $region3: #{tpu_custom_call.1} parent=1 // loop_header
      %s33 = sphi 0, %s37
      %p34 = scmp.ge.s32.totalorder %s33, 4
      %s43 = sphi 0, %s45
      %s46 = sphi 0, %s43
      %s47 = sphi 0, %s46
      %s63 = sphi 0, %s47
      %s69 = sphi 0, %s71
      %s72 = sphi 0, %s69
      %s73 = sphi 0, %s72
      %s89 = sphi 0, %s73
      %s93 = sphi 0, %s93
      %s95 = sphi 0, %s93
      %s96 = sphi 0, %s95
      %s110 = sphi 0, %s96
      %s114 = sphi 0, %s114
      %s116 = sphi 0, %s114
      %s117 = sphi 0, %s116
      %s131 = sphi 0, %s117
      %s135 = sphi 0, %s135
      %s137 = sphi 0, %s135
      %s138 = sphi 0, %s137
      %s152 = sphi 0, %s138
      %s156 = sphi 0, %s156
      %s158 = sphi 0, %s156
      %s159 = sphi 0, %s158
      %s173 = sphi 0, %s159
      %s177 = sphi 0, %s177
      %s179 = sphi 0, %s177
      %s180 = sphi 0, %s179
      %s194 = sphi 0, %s180
      %s198 = sphi 0, %s198
      %s200 = sphi 0, %s198
      %s201 = sphi 0, %s200
      %s215 = sphi 0, %s201
      %s219 = sphi 0, %s219
      %s221 = sphi 0, %s219
      %s222 = sphi 0, %s221
      %s236 = sphi 0, %s222
      %s240 = sphi 0, %s240
      %s242 = sphi 0, %s240
      %s243 = sphi 0, %s242
      %s257 = sphi 0, %s243
      %s261 = sphi 0, %s261
      %s263 = sphi 0, %s261
      %s264 = sphi 0, %s263
      %s278 = sphi 0, %s264
      %s282 = sphi 0, %s282
      %s284 = sphi 0, %s282
      %s285 = sphi 0, %s284
      %s299 = sphi 0, %s285
      %s303 = sphi 0, %s303
      %s305 = sphi 0, %s303
      %s306 = sphi 0, %s305
      %s320 = sphi 0, %s306
      %s324 = sphi 0, %s324
      %s326 = sphi 0, %s324
      %s327 = sphi 0, %s326
      %s341 = sphi 0, %s327
      %s345 = sphi 0, %s345
      %s347 = sphi 0, %s345
      %s348 = sphi 0, %s347
      %s362 = sphi 0, %s348
      %s366 = sphi 0, %s366
      %s368 = sphi 0, %s366
      %s369 = sphi 0, %s368
      %s383 = sphi 0, %s369
      %s387 = sphi 0, %s387
      %s389 = sphi 0, %s387
      %s390 = sphi 0, %s389
      %s404 = sphi 0, %s390
      %s408 = sphi 0, %s408
      %s410 = sphi 0, %s408
      %s411 = sphi 0, %s410
      %s425 = sphi 0, %s411
      %s429 = sphi 0, %s429
      %s431 = sphi 0, %s429
      %s432 = sphi 0, %s431
      %s446 = sphi 0, %s432
      %s450 = sphi 0, %s450
      %s452 = sphi 0, %s450
      %s453 = sphi 0, %s452
      %s467 = sphi 0, %s453
      %s471 = sphi 0, %s471
      %s473 = sphi 0, %s471
      %s474 = sphi 0, %s473
      %s488 = sphi 0, %s474
      %s492 = sphi 0, %s492
      %s494 = sphi 0, %s492
      %s495 = sphi 0, %s494
      %s509 = sphi 0, %s495
      %s513 = sphi 0, %s513
      %s515 = sphi 0, %s513
      %s516 = sphi 0, %s515
      %s530 = sphi 0, %s516
      %s534 = sphi 0, %s534
      %s536 = sphi 0, %s534
      %s537 = sphi 0, %s536
      %s551 = sphi 0, %s537
      %s557 = sphi 0, %s559
      %s560 = sphi 0, %s557
      %s561 = sphi 0, %s560
      %s577 = sphi 0, %s561
    $region4: #{tpu_custom_call.1} parent=1 // loop_header_branch
      %36 = sbr.rel (%p34) target = $region8
    $region5: #{tpu_custom_call.1} parent=1 // loop_body
      %s38 = ssub.s32 %s33, 1
      %s39 = ssub.s32 %s33, 2
      %s40 = sadd.s32 %s33, 1
      %s41 = ssub.s32 %s33, %s40
      %p42 = scmp.eq.s32.totalorder %s41, 0
      %s44 = sadd.s32 %s43, 1
      %s45 = scalar_select %p42, %s43, %s44
      %p48 = pneg %p42
      %p49 = scmp.eq.s32.totalorder %s33, 1
      %p50 = por %p48, %p49
      %p51 = scmp.ne.s32.totalorder %s43, %s46
      %p52 = scmp.eq.s32.totalorder %s33, 0
      %p53 = por %p51, %p52
      %p54 = scmp.ne.s32.totalorder %s43, %s46
      %p55 = scmp.eq.s32.totalorder %s38, 1
      %p56 = por %p54, %p55
      %p57 = scmp.ne.s32.totalorder %s46, %s47
      %p58 = scmp.eq.s32.totalorder %s38, 0
      %p59 = por %p57, %p58
      %p60 = scmp.ne.s32.totalorder %s46, %s47
      %p61 = scmp.eq.s32.totalorder %s39, 1
      %p62 = por %p60, %p61
      %p64 = scmp.ne.s32.totalorder %s47, %s63
      %p65 = scmp.eq.s32.totalorder %s39, 0
      %p66 = por %p64, %p65
      %s67 = ssub.s32 %s33, %s40
      %p68 = scmp.eq.s32.totalorder %s67, 0
      %s70 = sadd.s32 %s69, 1
      %s71 = scalar_select %p68, %s69, %s70
      %p74 = pneg %p68
      %p75 = scmp.eq.s32.totalorder %s33, 1
      %p76 = por %p74, %p75
      %p77 = scmp.ne.s32.totalorder %s69, %s72
      %p78 = scmp.eq.s32.totalorder %s33, 0
      %p79 = por %p77, %p78
      %p80 = scmp.ne.s32.totalorder %s69, %s72
      %p81 = scmp.eq.s32.totalorder %s38, 1
      %p82 = por %p80, %p81
      %p83 = scmp.ne.s32.totalorder %s72, %s73
      %p84 = scmp.eq.s32.totalorder %s38, 0
      %p85 = por %p83, %p84
      %p86 = scmp.ne.s32.totalorder %s72, %s73
      %p87 = scmp.eq.s32.totalorder %s39, 1
      %p88 = por %p86, %p87
      %p90 = scmp.ne.s32.totalorder %s73, %s89
      %p91 = scmp.eq.s32.totalorder %s39, 0
      %p92 = por %p90, %p91
      %s94 = sadd.s32 %s93, 1
      %p97 = scmp.eq.s32.totalorder %s33, 1
      %p98 = scmp.ne.s32.totalorder %s93, %s95
      %p99 = scmp.eq.s32.totalorder %s33, 0
      %p100 = por %p98, %p99
      %p101 = scmp.ne.s32.totalorder %s93, %s95
      %p102 = scmp.eq.s32.totalorder %s38, 1
      %p103 = por %p101, %p102
      %p104 = scmp.ne.s32.totalorder %s95, %s96
      %p105 = scmp.eq.s32.totalorder %s38, 0
      %p106 = por %p104, %p105
      %p107 = scmp.ne.s32.totalorder %s95, %s96
      %p108 = scmp.eq.s32.totalorder %s39, 1
      %p109 = por %p107, %p108
      %p111 = scmp.ne.s32.totalorder %s96, %s110
      %p112 = scmp.eq.s32.totalorder %s39, 0
      %p113 = por %p111, %p112
      %s115 = sadd.s32 %s114, 1
      %p118 = scmp.eq.s32.totalorder %s33, 1
      %p119 = scmp.ne.s32.totalorder %s114, %s116
      %p120 = scmp.eq.s32.totalorder %s33, 0
      %p121 = por %p119, %p120
      %p122 = scmp.ne.s32.totalorder %s114, %s116
      %p123 = scmp.eq.s32.totalorder %s38, 1
      %p124 = por %p122, %p123
      %p125 = scmp.ne.s32.totalorder %s116, %s117
      %p126 = scmp.eq.s32.totalorder %s38, 0
      %p127 = por %p125, %p126
      %p128 = scmp.ne.s32.totalorder %s116, %s117
      %p129 = scmp.eq.s32.totalorder %s39, 1
      %p130 = por %p128, %p129
      %p132 = scmp.ne.s32.totalorder %s117, %s131
      %p133 = scmp.eq.s32.totalorder %s39, 0
      %p134 = por %p132, %p133
      %s136 = sadd.s32 %s135, 1
      %p139 = scmp.eq.s32.totalorder %s33, 1
      %p140 = scmp.ne.s32.totalorder %s135, %s137
      %p141 = scmp.eq.s32.totalorder %s33, 0
      %p142 = por %p140, %p141
      %p143 = scmp.ne.s32.totalorder %s135, %s137
      %p144 = scmp.eq.s32.totalorder %s38, 1
      %p145 = por %p143, %p144
      %p146 = scmp.ne.s32.totalorder %s137, %s138
      %p147 = scmp.eq.s32.totalorder %s38, 0
      %p148 = por %p146, %p147
      %p149 = scmp.ne.s32.totalorder %s137, %s138
      %p150 = scmp.eq.s32.totalorder %s39, 1
      %p151 = por %p149, %p150
      %p153 = scmp.ne.s32.totalorder %s138, %s152
      %p154 = scmp.eq.s32.totalorder %s39, 0
      %p155 = por %p153, %p154
      %s157 = sadd.s32 %s156, 1
      %p160 = scmp.eq.s32.totalorder %s33, 1
      %p161 = scmp.ne.s32.totalorder %s156, %s158
      %p162 = scmp.eq.s32.totalorder %s33, 0
      %p163 = por %p161, %p162
      %p164 = scmp.ne.s32.totalorder %s156, %s158
      %p165 = scmp.eq.s32.totalorder %s38, 1
      %p166 = por %p164, %p165
      %p167 = scmp.ne.s32.totalorder %s158, %s159
      %p168 = scmp.eq.s32.totalorder %s38, 0
      %p169 = por %p167, %p168
      %p170 = scmp.ne.s32.totalorder %s158, %s159
      %p171 = scmp.eq.s32.totalorder %s39, 1
      %p172 = por %p170, %p171
      %p174 = scmp.ne.s32.totalorder %s159, %s173
      %p175 = scmp.eq.s32.totalorder %s39, 0
      %p176 = por %p174, %p175
      %s178 = sadd.s32 %s177, 1
      %p181 = scmp.eq.s32.totalorder %s33, 1
      %p182 = scmp.ne.s32.totalorder %s177, %s179
      %p183 = scmp.eq.s32.totalorder %s33, 0
      %p184 = por %p182, %p183
      %p185 = scmp.ne.s32.totalorder %s177, %s179
      %p186 = scmp.eq.s32.totalorder %s38, 1
      %p187 = por %p185, %p186
      %p188 = scmp.ne.s32.totalorder %s179, %s180
      %p189 = scmp.eq.s32.totalorder %s38, 0
      %p190 = por %p188, %p189
      %p191 = scmp.ne.s32.totalorder %s179, %s180
      %p192 = scmp.eq.s32.totalorder %s39, 1
      %p193 = por %p191, %p192
      %p195 = scmp.ne.s32.totalorder %s180, %s194
      %p196 = scmp.eq.s32.totalorder %s39, 0
      %p197 = por %p195, %p196
      %s199 = sadd.s32 %s198, 1
      %p202 = scmp.eq.s32.totalorder %s33, 1
      %p203 = scmp.ne.s32.totalorder %s198, %s200
      %p204 = scmp.eq.s32.totalorder %s33, 0
      %p205 = por %p203, %p204
      %p206 = scmp.ne.s32.totalorder %s198, %s200
      %p207 = scmp.eq.s32.totalorder %s38, 1
      %p208 = por %p206, %p207
      %p209 = scmp.ne.s32.totalorder %s200, %s201
      %p210 = scmp.eq.s32.totalorder %s38, 0
      %p211 = por %p209, %p210
      %p212 = scmp.ne.s32.totalorder %s200, %s201
      %p213 = scmp.eq.s32.totalorder %s39, 1
      %p214 = por %p212, %p213
      %p216 = scmp.ne.s32.totalorder %s201, %s215
      %p217 = scmp.eq.s32.totalorder %s39, 0
      %p218 = por %p216, %p217
      %s220 = sadd.s32 %s219, 1
      %p223 = scmp.eq.s32.totalorder %s33, 1
      %p224 = scmp.ne.s32.totalorder %s219, %s221
      %p225 = scmp.eq.s32.totalorder %s33, 0
      %p226 = por %p224, %p225
      %p227 = scmp.ne.s32.totalorder %s219, %s221
      %p228 = scmp.eq.s32.totalorder %s38, 1
      %p229 = por %p227, %p228
      %p230 = scmp.ne.s32.totalorder %s221, %s222
      %p231 = scmp.eq.s32.totalorder %s38, 0
      %p232 = por %p230, %p231
      %p233 = scmp.ne.s32.totalorder %s221, %s222
      %p234 = scmp.eq.s32.totalorder %s39, 1
      %p235 = por %p233, %p234
      %p237 = scmp.ne.s32.totalorder %s222, %s236
      %p238 = scmp.eq.s32.totalorder %s39, 0
      %p239 = por %p237, %p238
      %s241 = sadd.s32 %s240, 1
      %p244 = scmp.eq.s32.totalorder %s33, 1
      %p245 = scmp.ne.s32.totalorder %s240, %s242
      %p246 = scmp.eq.s32.totalorder %s33, 0
      %p247 = por %p245, %p246
      %p248 = scmp.ne.s32.totalorder %s240, %s242
      %p249 = scmp.eq.s32.totalorder %s38, 1
      %p250 = por %p248, %p249
      %p251 = scmp.ne.s32.totalorder %s242, %s243
      %p252 = scmp.eq.s32.totalorder %s38, 0
      %p253 = por %p251, %p252
      %p254 = scmp.ne.s32.totalorder %s242, %s243
      %p255 = scmp.eq.s32.totalorder %s39, 1
      %p256 = por %p254, %p255
      %p258 = scmp.ne.s32.totalorder %s243, %s257
      %p259 = scmp.eq.s32.totalorder %s39, 0
      %p260 = por %p258, %p259
      %s262 = sadd.s32 %s261, 1
      %p265 = scmp.eq.s32.totalorder %s33, 1
      %p266 = scmp.ne.s32.totalorder %s261, %s263
      %p267 = scmp.eq.s32.totalorder %s33, 0
      %p268 = por %p266, %p267
      %p269 = scmp.ne.s32.totalorder %s261, %s263
      %p270 = scmp.eq.s32.totalorder %s38, 1
      %p271 = por %p269, %p270
      %p272 = scmp.ne.s32.totalorder %s263, %s264
      %p273 = scmp.eq.s32.totalorder %s38, 0
      %p274 = por %p272, %p273
      %p275 = scmp.ne.s32.totalorder %s263, %s264
      %p276 = scmp.eq.s32.totalorder %s39, 1
      %p277 = por %p275, %p276
      %p279 = scmp.ne.s32.totalorder %s264, %s278
      %p280 = scmp.eq.s32.totalorder %s39, 0
      %p281 = por %p279, %p280
      %s283 = sadd.s32 %s282, 1
      %p286 = scmp.eq.s32.totalorder %s33, 1
      %p287 = scmp.ne.s32.totalorder %s282, %s284
      %p288 = scmp.eq.s32.totalorder %s33, 0
      %p289 = por %p287, %p288
      %p290 = scmp.ne.s32.totalorder %s282, %s284
      %p291 = scmp.eq.s32.totalorder %s38, 1
      %p292 = por %p290, %p291
      %p293 = scmp.ne.s32.totalorder %s284, %s285
      %p294 = scmp.eq.s32.totalorder %s38, 0
      %p295 = por %p293, %p294
      %p296 = scmp.ne.s32.totalorder %s284, %s285
      %p297 = scmp.eq.s32.totalorder %s39, 1
      %p298 = por %p296, %p297
      %p300 = scmp.ne.s32.totalorder %s285, %s299
      %p301 = scmp.eq.s32.totalorder %s39, 0
      %p302 = por %p300, %p301
      %s304 = sadd.s32 %s303, 1
      %p307 = scmp.eq.s32.totalorder %s33, 1
      %p308 = scmp.ne.s32.totalorder %s303, %s305
      %p309 = scmp.eq.s32.totalorder %s33, 0
      %p310 = por %p308, %p309
      %p311 = scmp.ne.s32.totalorder %s303, %s305
      %p312 = scmp.eq.s32.totalorder %s38, 1
      %p313 = por %p311, %p312
      %p314 = scmp.ne.s32.totalorder %s305, %s306
      %p315 = scmp.eq.s32.totalorder %s38, 0
      %p316 = por %p314, %p315
      %p317 = scmp.ne.s32.totalorder %s305, %s306
      %p318 = scmp.eq.s32.totalorder %s39, 1
      %p319 = por %p317, %p318
      %p321 = scmp.ne.s32.totalorder %s306, %s320
      %p322 = scmp.eq.s32.totalorder %s39, 0
      %p323 = por %p321, %p322
      %s325 = sadd.s32 %s324, 1
      %p328 = scmp.eq.s32.totalorder %s33, 1
      %p329 = scmp.ne.s32.totalorder %s324, %s326
      %p330 = scmp.eq.s32.totalorder %s33, 0
      %p331 = por %p329, %p330
      %p332 = scmp.ne.s32.totalorder %s324, %s326
      %p333 = scmp.eq.s32.totalorder %s38, 1
      %p334 = por %p332, %p333
      %p335 = scmp.ne.s32.totalorder %s326, %s327
      %p336 = scmp.eq.s32.totalorder %s38, 0
      %p337 = por %p335, %p336
      %p338 = scmp.ne.s32.totalorder %s326, %s327
      %p339 = scmp.eq.s32.totalorder %s39, 1
      %p340 = por %p338, %p339
      %p342 = scmp.ne.s32.totalorder %s327, %s341
      %p343 = scmp.eq.s32.totalorder %s39, 0
      %p344 = por %p342, %p343
      %s346 = sadd.s32 %s345, 1
      %p349 = scmp.eq.s32.totalorder %s33, 1
      %p350 = scmp.ne.s32.totalorder %s345, %s347
      %p351 = scmp.eq.s32.totalorder %s33, 0
      %p352 = por %p350, %p351
      %p353 = scmp.ne.s32.totalorder %s345, %s347
      %p354 = scmp.eq.s32.totalorder %s38, 1
      %p355 = por %p353, %p354
      %p356 = scmp.ne.s32.totalorder %s347, %s348
      %p357 = scmp.eq.s32.totalorder %s38, 0
      %p358 = por %p356, %p357
      %p359 = scmp.ne.s32.totalorder %s347, %s348
      %p360 = scmp.eq.s32.totalorder %s39, 1
      %p361 = por %p359, %p360
      %p363 = scmp.ne.s32.totalorder %s348, %s362
      %p364 = scmp.eq.s32.totalorder %s39, 0
      %p365 = por %p363, %p364
      %s367 = sadd.s32 %s366, 1
      %p370 = scmp.eq.s32.totalorder %s33, 1
      %p371 = scmp.ne.s32.totalorder %s366, %s368
      %p372 = scmp.eq.s32.totalorder %s33, 0
      %p373 = por %p371, %p372
      %p374 = scmp.ne.s32.totalorder %s366, %s368
      %p375 = scmp.eq.s32.totalorder %s38, 1
      %p376 = por %p374, %p375
      %p377 = scmp.ne.s32.totalorder %s368, %s369
      %p378 = scmp.eq.s32.totalorder %s38, 0
      %p379 = por %p377, %p378
      %p380 = scmp.ne.s32.totalorder %s368, %s369
      %p381 = scmp.eq.s32.totalorder %s39, 1
      %p382 = por %p380, %p381
      %p384 = scmp.ne.s32.totalorder %s369, %s383
      %p385 = scmp.eq.s32.totalorder %s39, 0
      %p386 = por %p384, %p385
      %s388 = sadd.s32 %s387, 1
      %p391 = scmp.eq.s32.totalorder %s33, 1
      %p392 = scmp.ne.s32.totalorder %s387, %s389
      %p393 = scmp.eq.s32.totalorder %s33, 0
      %p394 = por %p392, %p393
      %p395 = scmp.ne.s32.totalorder %s387, %s389
      %p396 = scmp.eq.s32.totalorder %s38, 1
      %p397 = por %p395, %p396
      %p398 = scmp.ne.s32.totalorder %s389, %s390
      %p399 = scmp.eq.s32.totalorder %s38, 0
      %p400 = por %p398, %p399
      %p401 = scmp.ne.s32.totalorder %s389, %s390
      %p402 = scmp.eq.s32.totalorder %s39, 1
      %p403 = por %p401, %p402
      %p405 = scmp.ne.s32.totalorder %s390, %s404
      %p406 = scmp.eq.s32.totalorder %s39, 0
      %p407 = por %p405, %p406
      %s409 = sadd.s32 %s408, 1
      %p412 = scmp.eq.s32.totalorder %s33, 1
      %p413 = scmp.ne.s32.totalorder %s408, %s410
      %p414 = scmp.eq.s32.totalorder %s33, 0
      %p415 = por %p413, %p414
      %p416 = scmp.ne.s32.totalorder %s408, %s410
      %p417 = scmp.eq.s32.totalorder %s38, 1
      %p418 = por %p416, %p417
      %p419 = scmp.ne.s32.totalorder %s410, %s411
      %p420 = scmp.eq.s32.totalorder %s38, 0
      %p421 = por %p419, %p420
      %p422 = scmp.ne.s32.totalorder %s410, %s411
      %p423 = scmp.eq.s32.totalorder %s39, 1
      %p424 = por %p422, %p423
      %p426 = scmp.ne.s32.totalorder %s411, %s425
      %p427 = scmp.eq.s32.totalorder %s39, 0
      %p428 = por %p426, %p427
      %s430 = sadd.s32 %s429, 1
      %p433 = scmp.eq.s32.totalorder %s33, 1
      %p434 = scmp.ne.s32.totalorder %s429, %s431
      %p435 = scmp.eq.s32.totalorder %s33, 0
      %p436 = por %p434, %p435
      %p437 = scmp.ne.s32.totalorder %s429, %s431
      %p438 = scmp.eq.s32.totalorder %s38, 1
      %p439 = por %p437, %p438
      %p440 = scmp.ne.s32.totalorder %s431, %s432
      %p441 = scmp.eq.s32.totalorder %s38, 0
      %p442 = por %p440, %p441
      %p443 = scmp.ne.s32.totalorder %s431, %s432
      %p444 = scmp.eq.s32.totalorder %s39, 1
      %p445 = por %p443, %p444
      %p447 = scmp.ne.s32.totalorder %s432, %s446
      %p448 = scmp.eq.s32.totalorder %s39, 0
      %p449 = por %p447, %p448
      %s451 = sadd.s32 %s450, 1
      %p454 = scmp.eq.s32.totalorder %s33, 1
      %p455 = scmp.ne.s32.totalorder %s450, %s452
      %p456 = scmp.eq.s32.totalorder %s33, 0
      %p457 = por %p455, %p456
      %p458 = scmp.ne.s32.totalorder %s450, %s452
      %p459 = scmp.eq.s32.totalorder %s38, 1
      %p460 = por %p458, %p459
      %p461 = scmp.ne.s32.totalorder %s452, %s453
      %p462 = scmp.eq.s32.totalorder %s38, 0
      %p463 = por %p461, %p462
      %p464 = scmp.ne.s32.totalorder %s452, %s453
      %p465 = scmp.eq.s32.totalorder %s39, 1
      %p466 = por %p464, %p465
      %p468 = scmp.ne.s32.totalorder %s453, %s467
      %p469 = scmp.eq.s32.totalorder %s39, 0
      %p470 = por %p468, %p469
      %s472 = sadd.s32 %s471, 1
      %p475 = scmp.eq.s32.totalorder %s33, 1
      %p476 = scmp.ne.s32.totalorder %s471, %s473
      %p477 = scmp.eq.s32.totalorder %s33, 0
      %p478 = por %p476, %p477
      %p479 = scmp.ne.s32.totalorder %s471, %s473
      %p480 = scmp.eq.s32.totalorder %s38, 1
      %p481 = por %p479, %p480
      %p482 = scmp.ne.s32.totalorder %s473, %s474
      %p483 = scmp.eq.s32.totalorder %s38, 0
      %p484 = por %p482, %p483
      %p485 = scmp.ne.s32.totalorder %s473, %s474
      %p486 = scmp.eq.s32.totalorder %s39, 1
      %p487 = por %p485, %p486
      %p489 = scmp.ne.s32.totalorder %s474, %s488
      %p490 = scmp.eq.s32.totalorder %s39, 0
      %p491 = por %p489, %p490
      %s493 = sadd.s32 %s492, 1
      %p496 = scmp.eq.s32.totalorder %s33, 1
      %p497 = scmp.ne.s32.totalorder %s492, %s494
      %p498 = scmp.eq.s32.totalorder %s33, 0
      %p499 = por %p497, %p498
      %p500 = scmp.ne.s32.totalorder %s492, %s494
      %p501 = scmp.eq.s32.totalorder %s38, 1
      %p502 = por %p500, %p501
      %p503 = scmp.ne.s32.totalorder %s494, %s495
      %p504 = scmp.eq.s32.totalorder %s38, 0
      %p505 = por %p503, %p504
      %p506 = scmp.ne.s32.totalorder %s494, %s495
      %p507 = scmp.eq.s32.totalorder %s39, 1
      %p508 = por %p506, %p507
      %p510 = scmp.ne.s32.totalorder %s495, %s509
      %p511 = scmp.eq.s32.totalorder %s39, 0
      %p512 = por %p510, %p511
      %s514 = sadd.s32 %s513, 1
      %p517 = scmp.eq.s32.totalorder %s33, 1
      %p518 = scmp.ne.s32.totalorder %s513, %s515
      %p519 = scmp.eq.s32.totalorder %s33, 0
      %p520 = por %p518, %p519
      %p521 = scmp.ne.s32.totalorder %s513, %s515
      %p522 = scmp.eq.s32.totalorder %s38, 1
      %p523 = por %p521, %p522
      %p524 = scmp.ne.s32.totalorder %s515, %s516
      %p525 = scmp.eq.s32.totalorder %s38, 0
      %p526 = por %p524, %p525
      %p527 = scmp.ne.s32.totalorder %s515, %s516
      %p528 = scmp.eq.s32.totalorder %s39, 1
      %p529 = por %p527, %p528
      %p531 = scmp.ne.s32.totalorder %s516, %s530
      %p532 = scmp.eq.s32.totalorder %s39, 0
      %p533 = por %p531, %p532
      %s535 = sadd.s32 %s534, 1
      %p538 = scmp.eq.s32.totalorder %s33, 1
      %p539 = scmp.ne.s32.totalorder %s534, %s536
      %p540 = scmp.eq.s32.totalorder %s33, 0
      %p541 = por %p539, %p540
      %p542 = scmp.ne.s32.totalorder %s534, %s536
      %p543 = scmp.eq.s32.totalorder %s38, 1
      %p544 = por %p542, %p543
      %p545 = scmp.ne.s32.totalorder %s536, %s537
      %p546 = scmp.eq.s32.totalorder %s38, 0
      %p547 = por %p545, %p546
      %p548 = scmp.ne.s32.totalorder %s536, %s537
      %p549 = scmp.eq.s32.totalorder %s39, 1
      %p550 = por %p548, %p549
      %p552 = scmp.ne.s32.totalorder %s537, %s551
      %p553 = scmp.eq.s32.totalorder %s39, 0
      %p554 = por %p552, %p553
      %s555 = ssub.s32 %s33, %s40
      %p556 = scmp.eq.s32.totalorder %s555, 0
      %s558 = sadd.s32 %s557, 1
      %s559 = scalar_select %p556, %s557, %s558
      %p562 = pneg %p556
      %p563 = scmp.eq.s32.totalorder %s33, 1
      %p564 = por %p562, %p563
      %p565 = scmp.ne.s32.totalorder %s557, %s560
      %p566 = scmp.eq.s32.totalorder %s33, 0
      %p567 = por %p565, %p566
      %p568 = scmp.ne.s32.totalorder %s557, %s560
      %p569 = scmp.eq.s32.totalorder %s38, 1
      %p570 = por %p568, %p569
      %p571 = scmp.ne.s32.totalorder %s560, %s561
      %p572 = scmp.eq.s32.totalorder %s38, 0
      %p573 = por %p571, %p572
      %p574 = scmp.ne.s32.totalorder %s560, %s561
      %p575 = scmp.eq.s32.totalorder %s39, 1
      %p576 = por %p574, %p575
      %p578 = scmp.ne.s32.totalorder %s561, %s577
      %p579 = scmp.eq.s32.totalorder %s39, 0
      %p580 = por %p578, %p579
      %p581 = scmp.le.s32.totalorder 1, %s33
      %p582 = scmp.lt.s32.totalorder %s33, 3
      %p583 = pnand %p581, %p582
      %p584 = pneg %p583
      // Predicated region
      $region9: #{tpu_custom_call.1} parent=5 // pred_check
        _
      $region10: #{tpu_custom_call.1} parent=5 // pred_check_branch
        %586 = sbr.rel (%p583) target = $region12
      $region11: #{tpu_custom_call.1} parent=5 // pred_region
        %s587 = ssub.s32 %s33, 1
        // Predicated region
        $region13: #{tpu_custom_call.1} parent=11 // pred_check
          %p588 = pneg %p106
        $region14: #{tpu_custom_call.1} parent=11 // pred_check_branch
          %590 = sbr.rel (%p588) target = $region16
        $region15: #{tpu_custom_call.1} parent=11 // pred_region
          _
        $region16: #{tpu_custom_call.1} parent=11 // pred_fallthru
          _
        // Predicated region
        $region17: #{tpu_custom_call.1} parent=11 // pred_check
          %p591 = pneg %p127
        $region18: #{tpu_custom_call.1} parent=11 // pred_check_branch
          %593 = sbr.rel (%p591) target = $region20
        $region19: #{tpu_custom_call.1} parent=11 // pred_region
          _
        $region20: #{tpu_custom_call.1} parent=11 // pred_fallthru
          _
        // Predicated region
        $region21: #{tpu_custom_call.1} parent=11 // pred_check
          %p594 = pneg %p148
        $region22: #{tpu_custom_call.1} parent=11 // pred_check_branch
          %596 = sbr.rel (%p594) target = $region24
        $region23: #{tpu_custom_call.1} parent=11 // pred_region
          _
        $region24: #{tpu_custom_call.1} parent=11 // pred_fallthru
          _
        // Predicated region
        $region25: #{tpu_custom_call.1} parent=11 // pred_check
          %p597 = pneg %p169
        $region26: #{tpu_custom_call.1} parent=11 // pred_check_branch
          %599 = sbr.rel (%p597) target = $region28
        $region27: #{tpu_custom_call.1} parent=11 // pred_region
          _
        $region28: #{tpu_custom_call.1} parent=11 // pred_fallthru
          _
        // Predicated region
        $region29: #{tpu_custom_call.1} parent=11 // pred_check
          %p600 = pneg %p190
        $region30: #{tpu_custom_call.1} parent=11 // pred_check_branch
          %602 = sbr.rel (%p600) target = $region32
        $region31: #{tpu_custom_call.1} parent=11 // pred_region
          _
        $region32: #{tpu_custom_call.1} parent=11 // pred_fallthru
          _
        // Predicated region
        $region33: #{tpu_custom_call.1} parent=11 // pred_check
          %p603 = pneg %p211
        $region34: #{tpu_custom_call.1} parent=11 // pred_check_branch
          %605 = sbr.rel (%p603) target = $region36
        $region35: #{tpu_custom_call.1} parent=11 // pred_region
          _
        $region36: #{tpu_custom_call.1} parent=11 // pred_fallthru
          _
        // Predicated region
        $region37: #{tpu_custom_call.1} parent=11 // pred_check
          %p606 = pneg %p232
        $region38: #{tpu_custom_call.1} parent=11 // pred_check_branch
          %608 = sbr.rel (%p606) target = $region40
        $region39: #{tpu_custom_call.1} parent=11 // pred_region
          _
        $region40: #{tpu_custom_call.1} parent=11 // pred_fallthru
          _
        // Predicated region
        $region41: #{tpu_custom_call.1} parent=11 // pred_check
          %p609 = pneg %p253
        $region42: #{tpu_custom_call.1} parent=11 // pred_check_branch
          %611 = sbr.rel (%p609) target = $region44
        $region43: #{tpu_custom_call.1} parent=11 // pred_region
          _
        $region44: #{tpu_custom_call.1} parent=11 // pred_fallthru
          _
        // Predicated region
        $region45: #{tpu_custom_call.1} parent=11 // pred_check
          %p612 = pneg %p274
        $region46: #{tpu_custom_call.1} parent=11 // pred_check_branch
          %614 = sbr.rel (%p612) target = $region48
        $region47: #{tpu_custom_call.1} parent=11 // pred_region
          _
        $region48: #{tpu_custom_call.1} parent=11 // pred_fallthru
          _
        // Predicated region
        $region49: #{tpu_custom_call.1} parent=11 // pred_check
          %p615 = pneg %p295
        $region50: #{tpu_custom_call.1} parent=11 // pred_check_branch
          %617 = sbr.rel (%p615) target = $region52
        $region51: #{tpu_custom_call.1} parent=11 // pred_region
          _
        $region52: #{tpu_custom_call.1} parent=11 // pred_fallthru
          _
        // Predicated region
        $region53: #{tpu_custom_call.1} parent=11 // pred_check
          %p618 = pneg %p316
        $region54: #{tpu_custom_call.1} parent=11 // pred_check_branch
          %620 = sbr.rel (%p618) target = $region56
        $region55: #{tpu_custom_call.1} parent=11 // pred_region
          _
        $region56: #{tpu_custom_call.1} parent=11 // pred_fallthru
          _
        // Predicated region
        $region57: #{tpu_custom_call.1} parent=11 // pred_check
          %p621 = pneg %p337
        $region58: #{tpu_custom_call.1} parent=11 // pred_check_branch
          %623 = sbr.rel (%p621) target = $region60
        $region59: #{tpu_custom_call.1} parent=11 // pred_region
          _
        $region60: #{tpu_custom_call.1} parent=11 // pred_fallthru
          _
        // Predicated region
        $region61: #{tpu_custom_call.1} parent=11 // pred_check
          %p624 = pneg %p358
        $region62: #{tpu_custom_call.1} parent=11 // pred_check_branch
          %626 = sbr.rel (%p624) target = $region64
        $region63: #{tpu_custom_call.1} parent=11 // pred_region
          _
        $region64: #{tpu_custom_call.1} parent=11 // pred_fallthru
          _
        // Predicated region
        $region65: #{tpu_custom_call.1} parent=11 // pred_check
          %p627 = pneg %p379
        $region66: #{tpu_custom_call.1} parent=11 // pred_check_branch
          %629 = sbr.rel (%p627) target = $region68
        $region67: #{tpu_custom_call.1} parent=11 // pred_region
          _
        $region68: #{tpu_custom_call.1} parent=11 // pred_fallthru
          _
        // Predicated region
        $region69: #{tpu_custom_call.1} parent=11 // pred_check
          %p630 = pneg %p400
        $region70: #{tpu_custom_call.1} parent=11 // pred_check_branch
          %632 = sbr.rel (%p630) target = $region72
        $region71: #{tpu_custom_call.1} parent=11 // pred_region
          _
        $region72: #{tpu_custom_call.1} parent=11 // pred_fallthru
          _
        // Predicated region
        $region73: #{tpu_custom_call.1} parent=11 // pred_check
          %p633 = pneg %p421
        $region74: #{tpu_custom_call.1} parent=11 // pred_check_branch
          %635 = sbr.rel (%p633) target = $region76
        $region75: #{tpu_custom_call.1} parent=11 // pred_region
          _
        $region76: #{tpu_custom_call.1} parent=11 // pred_fallthru
          _
        // Predicated region
        $region77: #{tpu_custom_call.1} parent=11 // pred_check
          %p636 = pneg %p442
        $region78: #{tpu_custom_call.1} parent=11 // pred_check_branch
          %638 = sbr.rel (%p636) target = $region80
        $region79: #{tpu_custom_call.1} parent=11 // pred_region
          _
        $region80: #{tpu_custom_call.1} parent=11 // pred_fallthru
          _
        // Predicated region
        $region81: #{tpu_custom_call.1} parent=11 // pred_check
          %p639 = pneg %p463
        $region82: #{tpu_custom_call.1} parent=11 // pred_check_branch
          %641 = sbr.rel (%p639) target = $region84
        $region83: #{tpu_custom_call.1} parent=11 // pred_region
          _
        $region84: #{tpu_custom_call.1} parent=11 // pred_fallthru
          _
        // Predicated region
        $region85: #{tpu_custom_call.1} parent=11 // pred_check
          %p642 = pneg %p484
        $region86: #{tpu_custom_call.1} parent=11 // pred_check_branch
          %644 = sbr.rel (%p642) target = $region88
        $region87: #{tpu_custom_call.1} parent=11 // pred_region
          _
        $region88: #{tpu_custom_call.1} parent=11 // pred_fallthru
          _
        // Predicated region
        $region89: #{tpu_custom_call.1} parent=11 // pred_check
          %p645 = pneg %p505
        $region90: #{tpu_custom_call.1} parent=11 // pred_check_branch
          %647 = sbr.rel (%p645) target = $region92
        $region91: #{tpu_custom_call.1} parent=11 // pred_region
          _
        $region92: #{tpu_custom_call.1} parent=11 // pred_fallthru
          _
        // Predicated region
        $region93: #{tpu_custom_call.1} parent=11 // pred_check
          %p648 = pneg %p526
        $region94: #{tpu_custom_call.1} parent=11 // pred_check_branch
          %650 = sbr.rel (%p648) target = $region96
        $region95: #{tpu_custom_call.1} parent=11 // pred_region
          _
        $region96: #{tpu_custom_call.1} parent=11 // pred_fallthru
          _
        // Predicated region
        $region97: #{tpu_custom_call.1} parent=11 // pred_check
          %p651 = pneg %p547
        $region98: #{tpu_custom_call.1} parent=11 // pred_check_branch
          %653 = sbr.rel (%p651) target = $region100
        $region99: #{tpu_custom_call.1} parent=11 // pred_region
          _
        $region100: #{tpu_custom_call.1} parent=11 // pred_fallthru
          _
      $region12: #{tpu_custom_call.1} parent=5 // pred_fallthru
        _
      %p654 = scmp.lt.s32.totalorder %s33, 2
      // Predicated region
      $region101: #{tpu_custom_call.1} parent=5 // pred_check
        %p655 = pneg %p654
      $region102: #{tpu_custom_call.1} parent=5 // pred_check_branch
        %657 = sbr.rel (%p655) target = $region104
      $region103: #{tpu_custom_call.1} parent=5 // pred_region
        // Predicated region
        $region105: #{tpu_custom_call.1} parent=103 // pred_check
          %p658 = pneg %p53
        $region106: #{tpu_custom_call.1} parent=103 // pred_check_branch
          %660 = sbr.rel (%p658) target = $region108
        $region107: #{tpu_custom_call.1} parent=103 // pred_region
          %s661 = smul.u32 64, %s33
          %s662 = ssub.s32 104, %s661
          %p663 = scmp.lt.s32.totalorder %s662, 64
          %s664 = scalar_select %p663, %s662, 64
          %s665 = smul.u32 128, %s664
          %p666 = scmp.lt.s32.totalorder %s661, 103
          %s667 = scalar_select %p666, %s661, 103
          %s668 = smul.addr %s667, 8
          %s669 = scalar_lea.vmem %s0, %s668
          %s670 = smul.u32 64, %s33
          %s671 = ssub.s32 104, %s670
          %p672 = scmp.lt.s32.totalorder %s671, 64
          %s673 = scalar_select %p672, %s671, 64
          %s674 = smul.u32 128, %s673
        $region108: #{tpu_custom_call.1} parent=103 // pred_fallthru
          _
        // Predicated region
        $region109: #{tpu_custom_call.1} parent=103 // pred_check
          %p675 = pneg %p79
        $region110: #{tpu_custom_call.1} parent=103 // pred_check_branch
          %677 = sbr.rel (%p675) target = $region112
        $region111: #{tpu_custom_call.1} parent=103 // pred_region
          %s678 = smul.u32 64, %s33
          %s679 = ssub.s32 104, %s678
          %p680 = scmp.lt.s32.totalorder %s679, 64
          %s681 = scalar_select %p680, %s679, 64
          %s682 = smul.u32 128, %s681
          %p683 = scmp.lt.s32.totalorder %s678, 103
          %s684 = scalar_select %p683, %s678, 103
          %s685 = smul.addr %s684, 8
          %s686 = scalar_lea.vmem %s1, %s685
          %s687 = smul.u32 64, %s33
          %s688 = ssub.s32 104, %s687
          %p689 = scmp.lt.s32.totalorder %s688, 64
          %s690 = scalar_select %p689, %s688, 64
          %s691 = smul.u32 128, %s690
        $region112: #{tpu_custom_call.1} parent=103 // pred_fallthru
          _
      $region104: #{tpu_custom_call.1} parent=5 // pred_fallthru
        _
      %p692 = scmp.le.s32.totalorder 1, %s33
      %p693 = scmp.lt.s32.totalorder %s33, 3
      %p694 = pnand %p692, %p693
      %p695 = pneg %p694
      // Predicated region
      $region113: #{tpu_custom_call.1} parent=5 // pred_check
        _
      $region114: #{tpu_custom_call.1} parent=5 // pred_check_branch
        %697 = sbr.rel (%p694) target = $region116
      $region115: #{tpu_custom_call.1} parent=5 // pred_region
        %s698 = ssub.s32 %s33, 1
        %s699 = smul.u32 64, %s38
        %s700 = ssub.s32 104, %s699
        %p701 = scmp.lt.s32.totalorder %s700, 64
        %s702 = scalar_select %p701, %s700, 64
        %s703 = smul.u32 128, %s702
        %p704 = scmp.lt.s32.totalorder %s699, 103
        %s705 = scalar_select %p704, %s699, 103
        %s706 = smul.addr %s705, 8
        %s707 = scalar_lea.vmem %s0, %s706
        %p708 = pneg %p59
        %p709 = pneg %p56
        %s710 = smul.u32 64, %s38
        %s711 = ssub.s32 104, %s710
        %p712 = scmp.lt.s32.totalorder %s711, 64
        %s713 = scalar_select %p712, %s711, 64
        %s714 = smul.u32 128, %s713
        %p715 = scmp.lt.s32.totalorder %s710, 103
        %s716 = scalar_select %p715, %s710, 103
        %s717 = smul.addr %s716, 8
        %s718 = scalar_lea.vmem %s1, %s717
        %p719 = pneg %p85
        %p720 = pneg %p82
        %p721 = pneg %p106
        %p722 = pneg %p103
        %p723 = pneg %p127
        %p724 = pneg %p124
        %p725 = pneg %p148
        %p726 = pneg %p145
        %p727 = pneg %p169
        %p728 = pneg %p166
        %p729 = pneg %p190
        %p730 = pneg %p187
        %p731 = pneg %p211
        %p732 = pneg %p208
        %p733 = pneg %p232
        %p734 = pneg %p229
        %p735 = pneg %p253
        %p736 = pneg %p250
        %p737 = pneg %p274
        %p738 = pneg %p271
        %p739 = pneg %p295
        %p740 = pneg %p292
        %p741 = pneg %p316
        %p742 = pneg %p313
        %p743 = pneg %p337
        %p744 = pneg %p334
        %p745 = pneg %p358
        %p746 = pneg %p355
        %p747 = pneg %p379
        %p748 = pneg %p376
        %p749 = pneg %p400
        %p750 = pneg %p397
        %p751 = pneg %p421
        %p752 = pneg %p418
        %p753 = pneg %p442
        %p754 = pneg %p439
        %p755 = pneg %p463
        %p756 = pneg %p460
        %p757 = pneg %p484
        %p758 = pneg %p481
        %p759 = pneg %p505
        %p760 = pneg %p502
        %p761 = pneg %p526
        %p762 = pneg %p523
        %p763 = pneg %p547
        %p764 = pneg %p544
        %p765 = pneg %p573
        %p766 = pneg %p570
        %s767 = sand.u32 %s560, 1
        %s768 = scalar_lea.sflag [#allocation3], %s767
        %s769 = sand.u32 %s560, 1
        %s770 = smul.addr %s769, 16
        %s771 = scalar_lea.vmem [#allocation2], %s770
        %s772 = smul.u32 64, %s38
        %s773 = ssub.s32 104, %s772
        %p774 = scmp.lt.s32.totalorder %s773, 64
        %s775 = scalar_select %p774, %s773, 64
        %s776 = smul.u32 128, %s775
        %p777 = scmp.lt.s32.totalorder %s772, 103
        %s778 = scalar_select %p777, %s772, 103
        %s779 = smul.addr %s778, 8
        %s780 = scalar_lea.vmem %s0, %s779
        %s781 = smul.u32 64, %s38
        %s782 = ssub.s32 104, %s781
        %p783 = scmp.lt.s32.totalorder %s782, 64
        %s784 = scalar_select %p783, %s782, 64
        %s785 = smul.u32 128, %s784
        %s786 = smul.u32 64, %s38
        %s787 = ssub.s32 104, %s786
        %p788 = scmp.lt.s32.totalorder %s787, 64
        %s789 = scalar_select %p788, %s787, 64
        %s790 = smul.u32 128, %s789
        %p791 = scmp.lt.s32.totalorder %s786, 103
        %s792 = scalar_select %p791, %s786, 103
        %s793 = smul.addr %s792, 8
        %s794 = scalar_lea.vmem %s1, %s793
        %s795 = smul.u32 64, %s38
        %s796 = ssub.s32 104, %s795
        %p797 = scmp.lt.s32.totalorder %s796, 64
        %s798 = scalar_select %p797, %s796, 64
        %s799 = smul.u32 128, %s798
        %s800 = smul.u32 4, %s38
        %s801 = ssub.s32 7, %s800
        %p802 = scmp.lt.s32.totalorder %s801, 4
        %s803 = scalar_select %p802, %s801, 4
        %s804 = smul.u32 64, %s803
        %v806 = vld [vmem:[%s780] sm:$0xff]
        %v807 = vld [vmem:[%s780 + $0x8] sm:$0xff]
        %v808 = vld [vmem:[%s780 + $0x10] sm:$0xff]
        %v809 = vld [vmem:[%s780 + $0x18] sm:$0xff]
        %v810 = vld [vmem:[%s780 + $0x20] sm:$0xff]
        %v811 = vld [vmem:[%s780 + $0x28] sm:$0xff]
        %v812 = vld [vmem:[%s780 + $0x30] sm:$0xff]
        %v813 = vld [vmem:[%s780 + $0x38] sm:$0xff]
        %v814 = vld [vmem:[%s780 + $0x40] sm:$0xff]
        %v815 = vld [vmem:[%s780 + $0x48] sm:$0xff]
        %v816 = vld [vmem:[%s780 + $0x50] sm:$0xff]
        %v817 = vld [vmem:[%s780 + $0x58] sm:$0xff]
        %v818 = vld [vmem:[%s780 + $0x60] sm:$0xff]
        %v819 = vld [vmem:[%s780 + $0x68] sm:$0xff]
        %v820 = vld [vmem:[%s780 + $0x70] sm:$0xff]
        %v821 = vld [vmem:[%s780 + $0x78] sm:$0xff]
        %v822 = vld [vmem:[%s780 + $0x80] sm:$0xff]
        %v823 = vld [vmem:[%s780 + $0x88] sm:$0xff]
        %v824 = vld [vmem:[%s780 + $0x90] sm:$0xff]
        %v825 = vld [vmem:[%s780 + $0x98] sm:$0xff]
        %v826 = vld [vmem:[%s780 + $0xa0] sm:$0xff]
        %v827 = vld [vmem:[%s780 + $0xa8] sm:$0xff]
        %v828 = vld [vmem:[%s780 + $0xb0] sm:$0xff]
        %v829 = vld [vmem:[%s780 + $0xb8] sm:$0xff]
        %v830 = vld [vmem:[%s780 + $0xc0] sm:$0xff]
        %v831 = vld [vmem:[%s780 + $0xc8] sm:$0xff]
        %v832 = vld [vmem:[%s780 + $0xd0] sm:$0xff]
        %v833 = vld [vmem:[%s780 + $0xd8] sm:$0xff]
        %v834 = vld [vmem:[%s780 + $0xe0] sm:$0xff]
        %v835 = vld [vmem:[%s780 + $0xe8] sm:$0xff]
        %v836 = vld [vmem:[%s780 + $0xf0] sm:$0xff]
        %v837 = vld [vmem:[%s780 + $0xf8] sm:$0xff]
        %v838 = vld [vmem:[%s780 + $0x100] sm:$0xff]
        %v839 = vld [vmem:[%s780 + $0x108] sm:$0xff]
        %v840 = vld [vmem:[%s780 + $0x110] sm:$0xff]
        %v841 = vld [vmem:[%s780 + $0x118] sm:$0xff]
        %v842 = vld [vmem:[%s780 + $0x120] sm:$0xff]
        %v843 = vld [vmem:[%s780 + $0x128] sm:$0xff]
        %v844 = vld [vmem:[%s780 + $0x130] sm:$0xff]
        %v845 = vld [vmem:[%s780 + $0x138] sm:$0xff]
        %v846 = vld [vmem:[%s780 + $0x140] sm:$0xff]
        %v847 = vld [vmem:[%s780 + $0x148] sm:$0xff]
        %v848 = vld [vmem:[%s780 + $0x150] sm:$0xff]
        %v849 = vld [vmem:[%s780 + $0x158] sm:$0xff]
        %v850 = vld [vmem:[%s780 + $0x160] sm:$0xff]
        %v851 = vld [vmem:[%s780 + $0x168] sm:$0xff]
        %v852 = vld [vmem:[%s780 + $0x170] sm:$0xff]
        %v853 = vld [vmem:[%s780 + $0x178] sm:$0xff]
        %v854 = vld [vmem:[%s780 + $0x180] sm:$0xff]
        %v855 = vld [vmem:[%s780 + $0x188] sm:$0xff]
        %v856 = vld [vmem:[%s780 + $0x190] sm:$0xff]
        %v857 = vld [vmem:[%s780 + $0x198] sm:$0xff]
        %v858 = vld [vmem:[%s780 + $0x1a0] sm:$0xff]
        %v859 = vld [vmem:[%s780 + $0x1a8] sm:$0xff]
        %v860 = vld [vmem:[%s780 + $0x1b0] sm:$0xff]
        %v861 = vld [vmem:[%s780 + $0x1b8] sm:$0xff]
        %v862 = vld [vmem:[%s780 + $0x1c0] sm:$0xff]
        %v863 = vld [vmem:[%s780 + $0x1c8] sm:$0xff]
        %v864 = vld [vmem:[%s780 + $0x1d0] sm:$0xff]
        %v865 = vld [vmem:[%s780 + $0x1d8] sm:$0xff]
        %v866 = vld [vmem:[%s780 + $0x1e0] sm:$0xff]
        %v867 = vld [vmem:[%s780 + $0x1e8] sm:$0xff]
        %v868 = vld [vmem:[%s780 + $0x1f0] sm:$0xff]
        %v869 = vld [vmem:[%s780 + $0x1f8] sm:$0xff]
        %870 = vxpose.xlu0.b32.start [1/16] %v806, 128
        %871 = vxpose.xlu0.b32.cont [2/16] %v807, 128
        %872 = vxpose.xlu0.b32.cont [3/16] %v808, 128
        %873 = vxpose.xlu0.b32.cont [4/16] %v809, 128
        %874 = vxpose.xlu0.b32.cont [5/16] %v810, 128
        %875 = vxpose.xlu0.b32.cont [6/16] %v811, 128
        %876 = vxpose.xlu0.b32.cont [7/16] %v812, 128
        %877 = vxpose.xlu0.b32.cont [8/16] %v813, 128
        %878 = vxpose.xlu0.b32.cont [9/16] %v814, 128
        %879 = vxpose.xlu0.b32.cont [10/16] %v815, 128
        %880 = vxpose.xlu0.b32.cont [11/16] %v816, 128
        %881 = vxpose.xlu0.b32.cont [12/16] %v817, 128
        %882 = vxpose.xlu0.b32.cont [13/16] %v818, 128
        %883 = vxpose.xlu0.b32.cont [14/16] %v819, 128
        %884 = vxpose.xlu0.b32.cont [15/16] %v820, 128
        %885 = vxpose.xlu0.b32.end [16/16] %v821, 128
        %v886 = vpop.trf.xlu0
        %v887 = vpop.trf.xlu0
        %v888 = vpop.trf.xlu0
        %v889 = vpop.trf.xlu0
        %v890 = vpop.trf.xlu0
        %v891 = vpop.trf.xlu0
        %v892 = vpop.trf.xlu0
        %v893 = vpop.trf.xlu0
        %v894 = vpop.trf.xlu0
        %v895 = vpop.trf.xlu0
        %v896 = vpop.trf.xlu0
        %v897 = vpop.trf.xlu0
        %v898 = vpop.trf.xlu0
        %v899 = vpop.trf.xlu0
        %v900 = vpop.trf.xlu0
        %v901 = vpop.trf.xlu0
        %902 = vxpose.xlu0.b32.start [1/16] %v822, 128
        %903 = vxpose.xlu0.b32.cont [2/16] %v823, 128
        %904 = vxpose.xlu0.b32.cont [3/16] %v824, 128
        %905 = vxpose.xlu0.b32.cont [4/16] %v825, 128
        %906 = vxpose.xlu0.b32.cont [5/16] %v826, 128
        %907 = vxpose.xlu0.b32.cont [6/16] %v827, 128
        %908 = vxpose.xlu0.b32.cont [7/16] %v828, 128
        %909 = vxpose.xlu0.b32.cont [8/16] %v829, 128
        %910 = vxpose.xlu0.b32.cont [9/16] %v830, 128
        %911 = vxpose.xlu0.b32.cont [10/16] %v831, 128
        %912 = vxpose.xlu0.b32.cont [11/16] %v832, 128
        %913 = vxpose.xlu0.b32.cont [12/16] %v833, 128
        %914 = vxpose.xlu0.b32.cont [13/16] %v834, 128
        %915 = vxpose.xlu0.b32.cont [14/16] %v835, 128
        %916 = vxpose.xlu0.b32.cont [15/16] %v836, 128
        %917 = vxpose.xlu0.b32.end [16/16] %v837, 128
        %v918 = vpop.trf.xlu0
        %v919 = vpop.trf.xlu0
        %v920 = vpop.trf.xlu0
        %v921 = vpop.trf.xlu0
        %v922 = vpop.trf.xlu0
        %v923 = vpop.trf.xlu0
        %v924 = vpop.trf.xlu0
        %v925 = vpop.trf.xlu0
        %v926 = vpop.trf.xlu0
        %v927 = vpop.trf.xlu0
        %v928 = vpop.trf.xlu0
        %v929 = vpop.trf.xlu0
        %v930 = vpop.trf.xlu0
        %v931 = vpop.trf.xlu0
        %v932 = vpop.trf.xlu0
        %v933 = vpop.trf.xlu0
        %934 = vxpose.xlu0.b32.start [1/16] %v838, 128
        %935 = vxpose.xlu0.b32.cont [2/16] %v839, 128
        %936 = vxpose.xlu0.b32.cont [3/16] %v840, 128
        %937 = vxpose.xlu0.b32.cont [4/16] %v841, 128
        %938 = vxpose.xlu0.b32.cont [5/16] %v842, 128
        %939 = vxpose.xlu0.b32.cont [6/16] %v843, 128
        %940 = vxpose.xlu0.b32.cont [7/16] %v844, 128
        %941 = vxpose.xlu0.b32.cont [8/16] %v845, 128
        %942 = vxpose.xlu0.b32.cont [9/16] %v846, 128
        %943 = vxpose.xlu0.b32.cont [10/16] %v847, 128
        %944 = vxpose.xlu0.b32.cont [11/16] %v848, 128
        %945 = vxpose.xlu0.b32.cont [12/16] %v849, 128
        %946 = vxpose.xlu0.b32.cont [13/16] %v850, 128
        %947 = vxpose.xlu0.b32.cont [14/16] %v851, 128
        %948 = vxpose.xlu0.b32.cont [15/16] %v852, 128
        %949 = vxpose.xlu0.b32.end [16/16] %v853, 128
        %v950 = vpop.trf.xlu0
        %v951 = vpop.trf.xlu0
        %v952 = vpop.trf.xlu0
        %v953 = vpop.trf.xlu0
        %v954 = vpop.trf.xlu0
        %v955 = vpop.trf.xlu0
        %v956 = vpop.trf.xlu0
        %v957 = vpop.trf.xlu0
        %v958 = vpop.trf.xlu0
        %v959 = vpop.trf.xlu0
        %v960 = vpop.trf.xlu0
        %v961 = vpop.trf.xlu0
        %v962 = vpop.trf.xlu0
        %v963 = vpop.trf.xlu0
        %v964 = vpop.trf.xlu0
        %v965 = vpop.trf.xlu0
        %966 = vxpose.xlu0.b32.start [1/16] %v854, 128
        %967 = vxpose.xlu0.b32.cont [2/16] %v855, 128
        %968 = vxpose.xlu0.b32.cont [3/16] %v856, 128
        %969 = vxpose.xlu0.b32.cont [4/16] %v857, 128
        %970 = vxpose.xlu0.b32.cont [5/16] %v858, 128
        %971 = vxpose.xlu0.b32.cont [6/16] %v859, 128
        %972 = vxpose.xlu0.b32.cont [7/16] %v860, 128
        %973 = vxpose.xlu0.b32.cont [8/16] %v861, 128
        %974 = vxpose.xlu0.b32.cont [9/16] %v862, 128
        %975 = vxpose.xlu0.b32.cont [10/16] %v863, 128
        %976 = vxpose.xlu0.b32.cont [11/16] %v864, 128
        %977 = vxpose.xlu0.b32.cont [12/16] %v865, 128
        %978 = vxpose.xlu0.b32.cont [13/16] %v866, 128
        %979 = vxpose.xlu0.b32.cont [14/16] %v867, 128
        %980 = vxpose.xlu0.b32.cont [15/16] %v868, 128
        %981 = vxpose.xlu0.b32.end [16/16] %v869, 128
        %v982 = vpop.trf.xlu0
        %v983 = vpop.trf.xlu0
        %v984 = vpop.trf.xlu0
        %v985 = vpop.trf.xlu0
        %v986 = vpop.trf.xlu0
        %v987 = vpop.trf.xlu0
        %v988 = vpop.trf.xlu0
        %v989 = vpop.trf.xlu0
        %v990 = vpop.trf.xlu0
        %v991 = vpop.trf.xlu0
        %v992 = vpop.trf.xlu0
        %v993 = vpop.trf.xlu0
        %v994 = vpop.trf.xlu0
        %v995 = vpop.trf.xlu0
        %v996 = vpop.trf.xlu0
        %v997 = vpop.trf.xlu0
        %v998 = vpack.c.bf16 %v887, %v886
        %v999 = vpack.c.bf16 %v919, %v918
        %v1000 = vpack.c.bf16 %v951, %v950
        %v1001 = vpack.c.bf16 %v983, %v982
        %v1002 = vld [vmem:[%s794] sm:$0xff]
        %v1003 = vld [vmem:[%s794 + $0x8] sm:$0xff]
        %v1004 = vld [vmem:[%s794 + $0x10] sm:$0xff]
        %v1005 = vld [vmem:[%s794 + $0x18] sm:$0xff]
        %v1006 = vld [vmem:[%s794 + $0x20] sm:$0xff]
        %v1007 = vld [vmem:[%s794 + $0x28] sm:$0xff]
        %v1008 = vld [vmem:[%s794 + $0x30] sm:$0xff]
        %v1009 = vld [vmem:[%s794 + $0x38] sm:$0xff]
        %v1010 = vld [vmem:[%s794 + $0x40] sm:$0xff]
        %v1011 = vld [vmem:[%s794 + $0x48] sm:$0xff]
        %v1012 = vld [vmem:[%s794 + $0x50] sm:$0xff]
        %v1013 = vld [vmem:[%s794 + $0x58] sm:$0xff]
        %v1014 = vld [vmem:[%s794 + $0x60] sm:$0xff]
        %v1015 = vld [vmem:[%s794 + $0x68] sm:$0xff]
        %v1016 = vld [vmem:[%s794 + $0x70] sm:$0xff]
        %v1017 = vld [vmem:[%s794 + $0x78] sm:$0xff]
        %v1018 = vld [vmem:[%s794 + $0x80] sm:$0xff]
        %v1019 = vld [vmem:[%s794 + $0x88] sm:$0xff]
        %v1020 = vld [vmem:[%s794 + $0x90] sm:$0xff]
        %v1021 = vld [vmem:[%s794 + $0x98] sm:$0xff]
        %v1022 = vld [vmem:[%s794 + $0xa0] sm:$0xff]
        %v1023 = vld [vmem:[%s794 + $0xa8] sm:$0xff]
        %v1024 = vld [vmem:[%s794 + $0xb0] sm:$0xff]
        %v1025 = vld [vmem:[%s794 + $0xb8] sm:$0xff]
        %v1026 = vld [vmem:[%s794 + $0xc0] sm:$0xff]
        %v1027 = vld [vmem:[%s794 + $0xc8] sm:$0xff]
        %v1028 = vld [vmem:[%s794 + $0xd0] sm:$0xff]
        %v1029 = vld [vmem:[%s794 + $0xd8] sm:$0xff]
        %v1030 = vld [vmem:[%s794 + $0xe0] sm:$0xff]
        %v1031 = vld [vmem:[%s794 + $0xe8] sm:$0xff]
        %v1032 = vld [vmem:[%s794 + $0xf0] sm:$0xff]
        %v1033 = vld [vmem:[%s794 + $0xf8] sm:$0xff]
        %v1034 = vld [vmem:[%s794 + $0x100] sm:$0xff]
        %v1035 = vld [vmem:[%s794 + $0x108] sm:$0xff]
        %v1036 = vld [vmem:[%s794 + $0x110] sm:$0xff]
        %v1037 = vld [vmem:[%s794 + $0x118] sm:$0xff]
        %v1038 = vld [vmem:[%s794 + $0x120] sm:$0xff]
        %v1039 = vld [vmem:[%s794 + $0x128] sm:$0xff]
        %v1040 = vld [vmem:[%s794 + $0x130] sm:$0xff]
        %v1041 = vld [vmem:[%s794 + $0x138] sm:$0xff]
        %v1042 = vld [vmem:[%s794 + $0x140] sm:$0xff]
        %v1043 = vld [vmem:[%s794 + $0x148] sm:$0xff]
        %v1044 = vld [vmem:[%s794 + $0x150] sm:$0xff]
        %v1045 = vld [vmem:[%s794 + $0x158] sm:$0xff]
        %v1046 = vld [vmem:[%s794 + $0x160] sm:$0xff]
        %v1047 = vld [vmem:[%s794 + $0x168] sm:$0xff]
        %v1048 = vld [vmem:[%s794 + $0x170] sm:$0xff]
        %v1049 = vld [vmem:[%s794 + $0x178] sm:$0xff]
        %v1050 = vld [vmem:[%s794 + $0x180] sm:$0xff]
        %v1051 = vld [vmem:[%s794 + $0x188] sm:$0xff]
        %v1052 = vld [vmem:[%s794 + $0x190] sm:$0xff]
        %v1053 = vld [vmem:[%s794 + $0x198] sm:$0xff]
        %v1054 = vld [vmem:[%s794 + $0x1a0] sm:$0xff]
        %v1055 = vld [vmem:[%s794 + $0x1a8] sm:$0xff]
        %v1056 = vld [vmem:[%s794 + $0x1b0] sm:$0xff]
        %v1057 = vld [vmem:[%s794 + $0x1b8] sm:$0xff]
        %v1058 = vld [vmem:[%s794 + $0x1c0] sm:$0xff]
        %v1059 = vld [vmem:[%s794 + $0x1c8] sm:$0xff]
        %v1060 = vld [vmem:[%s794 + $0x1d0] sm:$0xff]
        %v1061 = vld [vmem:[%s794 + $0x1d8] sm:$0xff]
        %v1062 = vld [vmem:[%s794 + $0x1e0] sm:$0xff]
        %v1063 = vld [vmem:[%s794 + $0x1e8] sm:$0xff]
        %v1064 = vld [vmem:[%s794 + $0x1f0] sm:$0xff]
        %v1065 = vld [vmem:[%s794 + $0x1f8] sm:$0xff]
        %1066 = vxpose.xlu0.b32.start [1/16] %v1002, 128
        %1067 = vxpose.xlu0.b32.cont [2/16] %v1003, 128
        %1068 = vxpose.xlu0.b32.cont [3/16] %v1004, 128
        %1069 = vxpose.xlu0.b32.cont [4/16] %v1005, 128
        %1070 = vxpose.xlu0.b32.cont [5/16] %v1006, 128
        %1071 = vxpose.xlu0.b32.cont [6/16] %v1007, 128
        %1072 = vxpose.xlu0.b32.cont [7/16] %v1008, 128
        %1073 = vxpose.xlu0.b32.cont [8/16] %v1009, 128
        %1074 = vxpose.xlu0.b32.cont [9/16] %v1010, 128
        %1075 = vxpose.xlu0.b32.cont [10/16] %v1011, 128
        %1076 = vxpose.xlu0.b32.cont [11/16] %v1012, 128
        %1077 = vxpose.xlu0.b32.cont [12/16] %v1013, 128
        %1078 = vxpose.xlu0.b32.cont [13/16] %v1014, 128
        %1079 = vxpose.xlu0.b32.cont [14/16] %v1015, 128
        %1080 = vxpose.xlu0.b32.cont [15/16] %v1016, 128
        %1081 = vxpose.xlu0.b32.end [16/16] %v1017, 128
        %v1082 = vpop.trf.xlu0
        %v1083 = vpop.trf.xlu0
        %v1084 = vpop.trf.xlu0
        %v1085 = vpop.trf.xlu0
        %v1086 = vpop.trf.xlu0
        %v1087 = vpop.trf.xlu0
        %v1088 = vpop.trf.xlu0
        %v1089 = vpop.trf.xlu0
        %v1090 = vpop.trf.xlu0
        %v1091 = vpop.trf.xlu0
        %v1092 = vpop.trf.xlu0
        %v1093 = vpop.trf.xlu0
        %v1094 = vpop.trf.xlu0
        %v1095 = vpop.trf.xlu0
        %v1096 = vpop.trf.xlu0
        %v1097 = vpop.trf.xlu0
        %1098 = vxpose.xlu0.b32.start [1/16] %v1018, 128
        %1099 = vxpose.xlu0.b32.cont [2/16] %v1019, 128
        %1100 = vxpose.xlu0.b32.cont [3/16] %v1020, 128
        %1101 = vxpose.xlu0.b32.cont [4/16] %v1021, 128
        %1102 = vxpose.xlu0.b32.cont [5/16] %v1022, 128
        %1103 = vxpose.xlu0.b32.cont [6/16] %v1023, 128
        %1104 = vxpose.xlu0.b32.cont [7/16] %v1024, 128
        %1105 = vxpose.xlu0.b32.cont [8/16] %v1025, 128
        %1106 = vxpose.xlu0.b32.cont [9/16] %v1026, 128
        %1107 = vxpose.xlu0.b32.cont [10/16] %v1027, 128
        %1108 = vxpose.xlu0.b32.cont [11/16] %v1028, 128
        %1109 = vxpose.xlu0.b32.cont [12/16] %v1029, 128
        %1110 = vxpose.xlu0.b32.cont [13/16] %v1030, 128
        %1111 = vxpose.xlu0.b32.cont [14/16] %v1031, 128
        %1112 = vxpose.xlu0.b32.cont [15/16] %v1032, 128
        %1113 = vxpose.xlu0.b32.end [16/16] %v1033, 128
        %v1114 = vpop.trf.xlu0
        %v1115 = vpop.trf.xlu0
        %v1116 = vpop.trf.xlu0
        %v1117 = vpop.trf.xlu0
        %v1118 = vpop.trf.xlu0
        %v1119 = vpop.trf.xlu0
        %v1120 = vpop.trf.xlu0
        %v1121 = vpop.trf.xlu0
        %v1122 = vpop.trf.xlu0
        %v1123 = vpop.trf.xlu0
        %v1124 = vpop.trf.xlu0
        %v1125 = vpop.trf.xlu0
        %v1126 = vpop.trf.xlu0
        %v1127 = vpop.trf.xlu0
        %v1128 = vpop.trf.xlu0
        %v1129 = vpop.trf.xlu0
        %1130 = vxpose.xlu0.b32.start [1/16] %v1034, 128
        %1131 = vxpose.xlu0.b32.cont [2/16] %v1035, 128
        %1132 = vxpose.xlu0.b32.cont [3/16] %v1036, 128
        %1133 = vxpose.xlu0.b32.cont [4/16] %v1037, 128
        %1134 = vxpose.xlu0.b32.cont [5/16] %v1038, 128
        %1135 = vxpose.xlu0.b32.cont [6/16] %v1039, 128
        %1136 = vxpose.xlu0.b32.cont [7/16] %v1040, 128
        %1137 = vxpose.xlu0.b32.cont [8/16] %v1041, 128
        %1138 = vxpose.xlu0.b32.cont [9/16] %v1042, 128
        %1139 = vxpose.xlu0.b32.cont [10/16] %v1043, 128
        %1140 = vxpose.xlu0.b32.cont [11/16] %v1044, 128
        %1141 = vxpose.xlu0.b32.cont [12/16] %v1045, 128
        %1142 = vxpose.xlu0.b32.cont [13/16] %v1046, 128
        %1143 = vxpose.xlu0.b32.cont [14/16] %v1047, 128
        %1144 = vxpose.xlu0.b32.cont [15/16] %v1048, 128
        %1145 = vxpose.xlu0.b32.end [16/16] %v1049, 128
        %v1146 = vpop.trf.xlu0
        %v1147 = vpop.trf.xlu0
        %v1148 = vpop.trf.xlu0
        %v1149 = vpop.trf.xlu0
        %v1150 = vpop.trf.xlu0
        %v1151 = vpop.trf.xlu0
        %v1152 = vpop.trf.xlu0
        %v1153 = vpop.trf.xlu0
        %v1154 = vpop.trf.xlu0
        %v1155 = vpop.trf.xlu0
        %v1156 = vpop.trf.xlu0
        %v1157 = vpop.trf.xlu0
        %v1158 = vpop.trf.xlu0
        %v1159 = vpop.trf.xlu0
        %v1160 = vpop.trf.xlu0
        %v1161 = vpop.trf.xlu0
        %1162 = vxpose.xlu0.b32.start [1/16] %v1050, 128
        %1163 = vxpose.xlu0.b32.cont [2/16] %v1051, 128
        %1164 = vxpose.xlu0.b32.cont [3/16] %v1052, 128
        %1165 = vxpose.xlu0.b32.cont [4/16] %v1053, 128
        %1166 = vxpose.xlu0.b32.cont [5/16] %v1054, 128
        %1167 = vxpose.xlu0.b32.cont [6/16] %v1055, 128
        %1168 = vxpose.xlu0.b32.cont [7/16] %v1056, 128
        %1169 = vxpose.xlu0.b32.cont [8/16] %v1057, 128
        %1170 = vxpose.xlu0.b32.cont [9/16] %v1058, 128
        %1171 = vxpose.xlu0.b32.cont [10/16] %v1059, 128
        %1172 = vxpose.xlu0.b32.cont [11/16] %v1060, 128
        %1173 = vxpose.xlu0.b32.cont [12/16] %v1061, 128
        %1174 = vxpose.xlu0.b32.cont [13/16] %v1062, 128
        %1175 = vxpose.xlu0.b32.cont [14/16] %v1063, 128
        %1176 = vxpose.xlu0.b32.cont [15/16] %v1064, 128
        %1177 = vxpose.xlu0.b32.end [16/16] %v1065, 128
        %v1178 = vpop.trf.xlu0
        %v1179 = vpop.trf.xlu0
        %v1180 = vpop.trf.xlu0
        %v1181 = vpop.trf.xlu0
        %v1182 = vpop.trf.xlu0
        %v1183 = vpop.trf.xlu0
        %v1184 = vpop.trf.xlu0
        %v1185 = vpop.trf.xlu0
        %v1186 = vpop.trf.xlu0
        %v1187 = vpop.trf.xlu0
        %v1188 = vpop.trf.xlu0
        %v1189 = vpop.trf.xlu0
        %v1190 = vpop.trf.xlu0
        %v1191 = vpop.trf.xlu0
        %v1192 = vpop.trf.xlu0
        %v1193 = vpop.trf.xlu0
        %v1194 = vpack.c.bf16 %v1082, %v1082
        %v1195 = vpack.c.bf16 %v1114, %v1114
        %v1196 = vpack.c.bf16 %v1146, %v1146
        %v1197 = vpack.c.bf16 %v1178, %v1178
        %v1198 = vld [vmem:[%s2] sm:$0xf]
        %v1199 = vld [vmem:[%s2 + $0x4] sm:$0xf]
        %v1200 = vld [vmem:[%s2 + $0x8] sm:$0xf]
        %v1201 = vld [vmem:[%s2 + $0xc] sm:$0xf]
        %v1202 = vld [vmem:[%s3] sm:$0xff]
        %v1203 = vld [vmem:[%s3 + $0x8] sm:$0xff]
        %v1204 = vld [vmem:[%s3 + $0x10] sm:$0xff]
        %v1205 = vld [vmem:[%s3 + $0x18] sm:$0xff]
        %1207 = vset.pattern.permute.xlu0 0
        %1208 = vperm.xlu0 %1207, %v1202
        %v1209 = vpop.permute.xlu0 %1208
        %1212 = vset.pattern.permute.xlu0 0
        %1213 = vperm.xlu0 %1212, %v1203
        %v1214 = vpop.permute.xlu0 %1213
        %1217 = vset.pattern.permute.xlu0 0
        %1218 = vperm.xlu0 %1217, %v1204
        %v1219 = vpop.permute.xlu0 %1218
        %1222 = vset.pattern.permute.xlu0 0
        %1223 = vperm.xlu0 %1222, %v1205
        %v1224 = vpop.permute.xlu0 %1223
        %v1230 = vunpack.c.l.b16 %v1198
        %v1231 = vunpack.c.l.b16 %v1199
        %v1232 = vunpack.c.l.b16 %v1200
        %v1233 = vunpack.c.l.b16 %v1201
        %v1234 = vpack.c.b16 %v1231, %v1230
        %v1235 = vpack.c.b16 %v1233, %v1232
        %vm1236 = vcmask 130048
        %v1238 = vsel %vm1236, %v1234, 0
        %v1241 = vsel %vm1236, %v1235, 0
        %1243 = vmatprep.subr.bf16.mxu0 %v999
        %1244 = vmatpush1.bf16.msra.mxu0 %v998
        %1245 = vmatprep.subr.bf16.mxu0 0
        %1246 = vmatpush1.bf16.msra.mxu0 0
        %1247 = vmatprep.subr.bf16.mxu0 0
        %1248 = vmatpush1.bf16.msra.mxu0 0
        %1249 = vmatprep.subr.bf16.mxu0 0
        %1250 = vmatpush1.bf16.msra.mxu0 0
        %1251 = vmatprep.subr.bf16.mxu0 0
        %1252 = vmatpush1.bf16.msra.mxu0 0
        %1253 = vmatprep.subr.bf16.mxu0 0
        %1254 = vmatpush1.bf16.msra.mxu0 0
        %1255 = vmatprep.subr.bf16.mxu0 0
        %1256 = vmatpush1.bf16.msra.mxu0 0
        %1257 = vmatprep.subr.bf16.mxu0 0
        %1258 = vmatpush1.bf16.msra.mxu0 0
        %1259 = vmatprep.subr.bf16.mxu0 0
        %1260 = vmatpush1.bf16.msra.mxu0 0
        %1261 = vmatprep.subr.bf16.mxu0 0
        %1262 = vmatpush1.bf16.msra.mxu0 0
        %1263 = vmatprep.subr.bf16.mxu0 0
        %1264 = vmatpush1.bf16.msra.mxu0 0
        %1265 = vmatprep.subr.bf16.mxu0 0
        %1266 = vmatpush1.bf16.msra.mxu0 0
        %1267 = vmatprep.subr.bf16.mxu0 0
        %1268 = vmatpush1.bf16.msra.mxu0 0
        %1269 = vmatprep.subr.bf16.mxu0 0
        %1270 = vmatpush1.bf16.msra.mxu0 0
        %1271 = vmatprep.subr.bf16.mxu0 0
        %1272 = vmatpush1.bf16.msra.mxu0 0
        %1273 = vmatprep.subr.bf16.mxu0 0
        %1274 = vmatpush1.bf16.msra.mxu0 0
        %1275 = vmatprep.mubr.bf16.mxu0 0
        %1276 = vmatmul.mubr.bf16.gmra.mrb[0].mxu0 %v1238
        %v1277 = vpop.f32.mrb[0].mxu0
        %v1278 = vadd.f32 %v1209, %v1277
        %v1279 = vpop.f32.mrb[0].mxu0
        %v1280 = vadd.f32 %v1209, %v1279
        %v1281 = vpop.f32.mrb[0].mxu0
        %v1282 = vadd.f32 %v1214, %v1281
        %v1283 = vpop.f32.mrb[0].mxu0
        %v1284 = vadd.f32 %v1214, %v1283
        %1285 = vmatprep.mubr.bf16.mxu0 0
        %1286 = vmatmul.mubr.bf16.gmra.mrb[0].mxu0 %v1241
        %v1287 = vpop.f32.mrb[0].mxu0
        %v1288 = vadd.f32 %v1219, %v1287
        %v1289 = vpop.f32.mrb[0].mxu0
        %v1290 = vadd.f32 %v1219, %v1289
        %v1291 = vpop.f32.mrb[0].mxu0
        %v1292 = vadd.f32 %v1224, %v1291
        %v1293 = vpop.f32.mrb[0].mxu0
        %v1294 = vadd.f32 %v1224, %v1293
        %1295 = vdwg.mxu0
        %1296 = vmatprep.subr.bf16.mxu0 %v1001
        %1297 = vmatpush1.bf16.msra.mxu0 %v1000
        %1298 = vmatprep.subr.bf16.mxu0 0
        %1299 = vmatpush1.bf16.msra.mxu0 0
        %1300 = vmatprep.subr.bf16.mxu0 0
        %1301 = vmatpush1.bf16.msra.mxu0 0
        %1302 = vmatprep.subr.bf16.mxu0 0
        %1303 = vmatpush1.bf16.msra.mxu0 0
        %1304 = vmatprep.subr.bf16.mxu0 0
        %1305 = vmatpush1.bf16.msra.mxu0 0
        %1306 = vmatprep.subr.bf16.mxu0 0
        %1307 = vmatpush1.bf16.msra.mxu0 0
        %1308 = vmatprep.subr.bf16.mxu0 0
        %1309 = vmatpush1.bf16.msra.mxu0 0
        %1310 = vmatprep.subr.bf16.mxu0 0
        %1311 = vmatpush1.bf16.msra.mxu0 0
        %1312 = vmatprep.subr.bf16.mxu0 0
        %1313 = vmatpush1.bf16.msra.mxu0 0
        %1314 = vmatprep.subr.bf16.mxu0 0
        %1315 = vmatpush1.bf16.msra.mxu0 0
        %1316 = vmatprep.subr.bf16.mxu0 0
        %1317 = vmatpush1.bf16.msra.mxu0 0
        %1318 = vmatprep.subr.bf16.mxu0 0
        %1319 = vmatpush1.bf16.msra.mxu0 0
        %1320 = vmatprep.subr.bf16.mxu0 0
        %1321 = vmatpush1.bf16.msra.mxu0 0
        %1322 = vmatprep.subr.bf16.mxu0 0
        %1323 = vmatpush1.bf16.msra.mxu0 0
        %1324 = vmatprep.subr.bf16.mxu0 0
        %1325 = vmatpush1.bf16.msra.mxu0 0
        %1326 = vmatprep.subr.bf16.mxu0 0
        %1327 = vmatpush1.bf16.msra.mxu0 0
        %1328 = vmatprep.mubr.bf16.mxu0 0
        %1329 = vmatmul.mubr.bf16.gmra.mrb[0].mxu0 %v1238
        %v1330 = vpop.f32.mrb[0].mxu0
        %v1331 = vadd.f32 %v1209, %v1330
        %v1332 = vpop.f32.mrb[0].mxu0
        %v1333 = vadd.f32 %v1209, %v1332
        %v1334 = vpop.f32.mrb[0].mxu0
        %v1335 = vadd.f32 %v1214, %v1334
        %v1336 = vpop.f32.mrb[0].mxu0
        %v1337 = vadd.f32 %v1214, %v1336
        %1338 = vmatprep.mubr.bf16.mxu0 0
        %1339 = vmatmul.mubr.bf16.gmra.mrb[0].mxu0 %v1241
        %v1340 = vpop.f32.mrb[0].mxu0
        %v1341 = vadd.f32 %v1219, %v1340
        %v1342 = vpop.f32.mrb[0].mxu0
        %v1343 = vadd.f32 %v1219, %v1342
        %v1344 = vpop.f32.mrb[0].mxu0
        %v1345 = vadd.f32 %v1224, %v1344
        %v1346 = vpop.f32.mrb[0].mxu0
        %v1347 = vadd.f32 %v1224, %v1346
        %1348 = vdwg.mxu0
        %v1349 = vmax.f32 %v1278, 0.0
        %v1350 = vmax.f32 %v1280, 0.0
        %v1351 = vmax.f32 %v1331, 0.0
        %v1352 = vmax.f32 %v1333, 0.0
        %v1353 = vmax.f32 %v1282, 0.0
        %v1354 = vmax.f32 %v1284, 0.0
        %v1355 = vmax.f32 %v1335, 0.0
        %v1356 = vmax.f32 %v1337, 0.0
        %v1357 = vmax.f32 %v1288, 0.0
        %v1358 = vmax.f32 %v1290, 0.0
        %v1359 = vmax.f32 %v1341, 0.0
        %v1360 = vmax.f32 %v1343, 0.0
        %v1361 = vmax.f32 %v1292, 0.0
        %v1362 = vmax.f32 %v1294, 0.0
        %v1363 = vmax.f32 %v1345, 0.0
        %v1364 = vmax.f32 %v1347, 0.0
        %v1365 = vpack.c.bf16 %v1353, %v1349
        %v1366 = vpack.c.bf16 %v1354, %v1350
        %v1367 = vpack.c.bf16 %v1355, %v1351
        %v1368 = vpack.c.bf16 %v1356, %v1352
        %v1369 = vpack.c.bf16 %v1361, %v1357
        %v1370 = vpack.c.bf16 %v1362, %v1358
        %v1371 = vpack.c.bf16 %v1363, %v1359
        %v1372 = vpack.c.bf16 %v1364, %v1360
        %v1373 = vld [vmem:[%s4] sm:$0xf]
        %v1374 = vld [vmem:[%s4 + $0x4] sm:$0xf]
        %v1375 = vld [vmem:[%s4 + $0x8] sm:$0xf]
        %v1376 = vld [vmem:[%s4 + $0xc] sm:$0xf]
        %v1377 = vld [vmem:[%s5] sm:$0xff]
        %v1378 = vld [vmem:[%s5 + $0x8] sm:$0xff]
        %v1379 = vld [vmem:[%s5 + $0x10] sm:$0xff]
        %v1380 = vld [vmem:[%s5 + $0x18] sm:$0xff]
        %1382 = vset.pattern.permute.xlu0 0
        %1383 = vperm.xlu0 %1382, %v1377
        %v1384 = vpop.permute.xlu0 %1383
        %1387 = vset.pattern.permute.xlu0 0
        %1388 = vperm.xlu0 %1387, %v1378
        %v1389 = vpop.permute.xlu0 %1388
        %1392 = vset.pattern.permute.xlu0 0
        %1393 = vperm.xlu0 %1392, %v1379
        %v1394 = vpop.permute.xlu0 %1393
        %1397 = vset.pattern.permute.xlu0 0
        %1398 = vperm.xlu0 %1397, %v1380
        %v1399 = vpop.permute.xlu0 %1398
        %v1405 = vunpack.c.l.b16 %v1373
        %v1406 = vunpack.c.l.b16 %v1374
        %v1407 = vunpack.c.l.b16 %v1375
        %v1408 = vunpack.c.l.b16 %v1376
        %v1409 = vpack.c.b16 %v1406, %v1405
        %v1410 = vpack.c.b16 %v1408, %v1407
        %vm1411 = vcmask 261120
        %v1413 = vsel %vm1411, %v1409, 0
        %v1416 = vsel %vm1411, %v1410, 0
        %1418 = vmatprep.subr.bf16.mxu0 %v1366
        %1419 = vmatpush1.bf16.msra.mxu0 %v1365
        %1420 = vmatprep.subr.bf16.mxu0 %v1370
        %1421 = vmatpush1.bf16.msra.mxu0 %v1369
        %1422 = vmatprep.subr.bf16.mxu0 0
        %1423 = vmatpush1.bf16.msra.mxu0 0
        %1424 = vmatprep.subr.bf16.mxu0 0
        %1425 = vmatpush1.bf16.msra.mxu0 0
        %1426 = vmatprep.subr.bf16.mxu0 0
        %1427 = vmatpush1.bf16.msra.mxu0 0
        %1428 = vmatprep.subr.bf16.mxu0 0
        %1429 = vmatpush1.bf16.msra.mxu0 0
        %1430 = vmatprep.subr.bf16.mxu0 0
        %1431 = vmatpush1.bf16.msra.mxu0 0
        %1432 = vmatprep.subr.bf16.mxu0 0
        %1433 = vmatpush1.bf16.msra.mxu0 0
        %1434 = vmatprep.subr.bf16.mxu0 0
        %1435 = vmatpush1.bf16.msra.mxu0 0
        %1436 = vmatprep.subr.bf16.mxu0 0
        %1437 = vmatpush1.bf16.msra.mxu0 0
        %1438 = vmatprep.subr.bf16.mxu0 0
        %1439 = vmatpush1.bf16.msra.mxu0 0
        %1440 = vmatprep.subr.bf16.mxu0 0
        %1441 = vmatpush1.bf16.msra.mxu0 0
        %1442 = vmatprep.subr.bf16.mxu0 0
        %1443 = vmatpush1.bf16.msra.mxu0 0
        %1444 = vmatprep.subr.bf16.mxu0 0
        %1445 = vmatpush1.bf16.msra.mxu0 0
        %1446 = vmatprep.subr.bf16.mxu0 0
        %1447 = vmatpush1.bf16.msra.mxu0 0
        %1448 = vmatprep.subr.bf16.mxu0 0
        %1449 = vmatpush1.bf16.msra.mxu0 0
        %1450 = vmatprep.mubr.bf16.mxu0 0
        %1451 = vmatmul.mubr.bf16.gmra.mrb[0].mxu0 %v1413
        %v1452 = vpop.f32.mrb[0].mxu0
        %v1453 = vadd.f32 %v1384, %v1452
        %v1454 = vpop.f32.mrb[0].mxu0
        %v1455 = vadd.f32 %v1384, %v1454
        %v1456 = vpop.f32.mrb[0].mxu0
        %v1457 = vadd.f32 %v1389, %v1456
        %v1458 = vpop.f32.mrb[0].mxu0
        %v1459 = vadd.f32 %v1389, %v1458
        %1460 = vmatprep.mubr.bf16.mxu0 0
        %1461 = vmatmul.mubr.bf16.gmra.mrb[0].mxu0 %v1416
        %v1462 = vpop.f32.mrb[0].mxu0
        %v1463 = vadd.f32 %v1394, %v1462
        %v1464 = vpop.f32.mrb[0].mxu0
        %v1465 = vadd.f32 %v1394, %v1464
        %v1466 = vpop.f32.mrb[0].mxu0
        %v1467 = vadd.f32 %v1399, %v1466
        %v1468 = vpop.f32.mrb[0].mxu0
        %v1469 = vadd.f32 %v1399, %v1468
        %1470 = vdwg.mxu0
        %1471 = vmatprep.subr.bf16.mxu0 %v1368
        %1472 = vmatpush1.bf16.msra.mxu0 %v1367
        %1473 = vmatprep.subr.bf16.mxu0 %v1372
        %1474 = vmatpush1.bf16.msra.mxu0 %v1371
        %1475 = vmatprep.subr.bf16.mxu0 0
        %1476 = vmatpush1.bf16.msra.mxu0 0
        %1477 = vmatprep.subr.bf16.mxu0 0
        %1478 = vmatpush1.bf16.msra.mxu0 0
        %1479 = vmatprep.subr.bf16.mxu0 0
        %1480 = vmatpush1.bf16.msra.mxu0 0
        %1481 = vmatprep.subr.bf16.mxu0 0
        %1482 = vmatpush1.bf16.msra.mxu0 0
        %1483 = vmatprep.subr.bf16.mxu0 0
        %1484 = vmatpush1.bf16.msra.mxu0 0
        %1485 = vmatprep.subr.bf16.mxu0 0
        %1486 = vmatpush1.bf16.msra.mxu0 0
        %1487 = vmatprep.subr.bf16.mxu0 0
        %1488 = vmatpush1.bf16.msra.mxu0 0
        %1489 = vmatprep.subr.bf16.mxu0 0
        %1490 = vmatpush1.bf16.msra.mxu0 0
        %1491 = vmatprep.subr.bf16.mxu0 0
        %1492 = vmatpush1.bf16.msra.mxu0 0
        %1493 = vmatprep.subr.bf16.mxu0 0
        %1494 = vmatpush1.bf16.msra.mxu0 0
        %1495 = vmatprep.subr.bf16.mxu0 0
        %1496 = vmatpush1.bf16.msra.mxu0 0
        %1497 = vmatprep.subr.bf16.mxu0 0
        %1498 = vmatpush1.bf16.msra.mxu0 0
        %1499 = vmatprep.subr.bf16.mxu0 0
        %1500 = vmatpush1.bf16.msra.mxu0 0
        %1501 = vmatprep.subr.bf16.mxu0 0
        %1502 = vmatpush1.bf16.msra.mxu0 0
        %1503 = vmatprep.mubr.bf16.mxu0 0
        %1504 = vmatmul.mubr.bf16.gmra.mrb[0].mxu0 %v1413
        %v1505 = vpop.f32.mrb[0].mxu0
        %v1506 = vadd.f32 %v1384, %v1505
        %v1507 = vpop.f32.mrb[0].mxu0
        %v1508 = vadd.f32 %v1384, %v1507
        %v1509 = vpop.f32.mrb[0].mxu0
        %v1510 = vadd.f32 %v1389, %v1509
        %v1511 = vpop.f32.mrb[0].mxu0
        %v1512 = vadd.f32 %v1389, %v1511
        %1513 = vmatprep.mubr.bf16.mxu0 0
        %1514 = vmatmul.mubr.bf16.gmra.mrb[0].mxu0 %v1416
        %v1515 = vpop.f32.mrb[0].mxu0
        %v1516 = vadd.f32 %v1394, %v1515
        %v1517 = vpop.f32.mrb[0].mxu0
        %v1518 = vadd.f32 %v1394, %v1517
        %v1519 = vpop.f32.mrb[0].mxu0
        %v1520 = vadd.f32 %v1399, %v1519
        %v1521 = vpop.f32.mrb[0].mxu0
        %v1522 = vadd.f32 %v1399, %v1521
        %1523 = vdwg.mxu0
        %v1524 = vmax.f32 %v1453, 0.0
        %v1525 = vmax.f32 %v1455, 0.0
        %v1526 = vmax.f32 %v1506, 0.0
        %v1527 = vmax.f32 %v1508, 0.0
        %v1528 = vmax.f32 %v1457, 0.0
        %v1529 = vmax.f32 %v1459, 0.0
        %v1530 = vmax.f32 %v1510, 0.0
        %v1531 = vmax.f32 %v1512, 0.0
        %v1532 = vmax.f32 %v1463, 0.0
        %v1533 = vmax.f32 %v1465, 0.0
        %v1534 = vmax.f32 %v1516, 0.0
        %v1535 = vmax.f32 %v1518, 0.0
        %v1536 = vmax.f32 %v1467, 0.0
        %v1537 = vmax.f32 %v1469, 0.0
        %v1538 = vmax.f32 %v1520, 0.0
        %v1539 = vmax.f32 %v1522, 0.0
        %v1540 = vpack.c.bf16 %v1528, %v1524
        %v1541 = vpack.c.bf16 %v1529, %v1525
        %v1542 = vpack.c.bf16 %v1530, %v1526
        %v1543 = vpack.c.bf16 %v1531, %v1527
        %v1544 = vpack.c.bf16 %v1536, %v1532
        %v1545 = vpack.c.bf16 %v1537, %v1533
        %v1546 = vpack.c.bf16 %v1538, %v1534
        %v1547 = vpack.c.bf16 %v1539, %v1535
        %v1548 = vld [vmem:[%s6] sm:$0xf]
        %v1549 = vld [vmem:[%s6 + $0x4] sm:$0xf]
        %v1550 = vld [vmem:[%s6 + $0x8] sm:$0xf]
        %v1551 = vld [vmem:[%s6 + $0xc] sm:$0xf]
        %v1552 = vld [vmem:[%s7] sm:$0xff]
        %v1553 = vld [vmem:[%s7 + $0x8] sm:$0xff]
        %v1554 = vld [vmem:[%s7 + $0x10] sm:$0xff]
        %v1555 = vld [vmem:[%s7 + $0x18] sm:$0xff]
        %1557 = vset.pattern.permute.xlu0 0
        %1558 = vperm.xlu0 %1557, %v1552
        %v1559 = vpop.permute.xlu0 %1558
        %1562 = vset.pattern.permute.xlu0 0
        %1563 = vperm.xlu0 %1562, %v1553
        %v1564 = vpop.permute.xlu0 %1563
        %1567 = vset.pattern.permute.xlu0 0
        %1568 = vperm.xlu0 %1567, %v1554
        %v1569 = vpop.permute.xlu0 %1568
        %1572 = vset.pattern.permute.xlu0 0
        %1573 = vperm.xlu0 %1572, %v1555
        %v1574 = vpop.permute.xlu0 %1573
        %v1580 = vunpack.c.l.b16 %v1548
        %v1581 = vunpack.c.l.b16 %v1549
        %v1582 = vunpack.c.l.b16 %v1550
        %v1583 = vunpack.c.l.b16 %v1551
        %v1584 = vpack.c.b16 %v1581, %v1580
        %v1585 = vpack.c.b16 %v1583, %v1582
        %v1587 = vsel %vm1411, %v1584, 0
        %v1590 = vsel %vm1411, %v1585, 0
        %1592 = vmatprep.subr.bf16.mxu0 %v1541
        %1593 = vmatpush1.bf16.msra.mxu0 %v1540
        %1594 = vmatprep.subr.bf16.mxu0 %v1545
        %1595 = vmatpush1.bf16.msra.mxu0 %v1544
        %1596 = vmatprep.subr.bf16.mxu0 0
        %1597 = vmatpush1.bf16.msra.mxu0 0
        %1598 = vmatprep.subr.bf16.mxu0 0
        %1599 = vmatpush1.bf16.msra.mxu0 0
        %1600 = vmatprep.subr.bf16.mxu0 0
        %1601 = vmatpush1.bf16.msra.mxu0 0
        %1602 = vmatprep.subr.bf16.mxu0 0
        %1603 = vmatpush1.bf16.msra.mxu0 0
        %1604 = vmatprep.subr.bf16.mxu0 0
        %1605 = vmatpush1.bf16.msra.mxu0 0
        %1606 = vmatprep.subr.bf16.mxu0 0
        %1607 = vmatpush1.bf16.msra.mxu0 0
        %1608 = vmatprep.subr.bf16.mxu0 0
        %1609 = vmatpush1.bf16.msra.mxu0 0
        %1610 = vmatprep.subr.bf16.mxu0 0
        %1611 = vmatpush1.bf16.msra.mxu0 0
        %1612 = vmatprep.subr.bf16.mxu0 0
        %1613 = vmatpush1.bf16.msra.mxu0 0
        %1614 = vmatprep.subr.bf16.mxu0 0
        %1615 = vmatpush1.bf16.msra.mxu0 0
        %1616 = vmatprep.subr.bf16.mxu0 0
        %1617 = vmatpush1.bf16.msra.mxu0 0
        %1618 = vmatprep.subr.bf16.mxu0 0
        %1619 = vmatpush1.bf16.msra.mxu0 0
        %1620 = vmatprep.subr.bf16.mxu0 0
        %1621 = vmatpush1.bf16.msra.mxu0 0
        %1622 = vmatprep.subr.bf16.mxu0 0
        %1623 = vmatpush1.bf16.msra.mxu0 0
        %1624 = vmatprep.mubr.bf16.mxu0 0
        %1625 = vmatmul.mubr.bf16.gmra.mrb[0].mxu0 %v1587
        %v1626 = vpop.f32.mrb[0].mxu0
        %v1627 = vadd.f32 %v1559, %v1626
        %v1628 = vpop.f32.mrb[0].mxu0
        %v1629 = vadd.f32 %v1559, %v1628
        %v1630 = vpop.f32.mrb[0].mxu0
        %v1631 = vadd.f32 %v1564, %v1630
        %v1632 = vpop.f32.mrb[0].mxu0
        %v1633 = vadd.f32 %v1564, %v1632
        %1634 = vmatprep.mubr.bf16.mxu0 0
        %1635 = vmatmul.mubr.bf16.gmra.mrb[0].mxu0 %v1590
        %v1636 = vpop.f32.mrb[0].mxu0
        %v1637 = vadd.f32 %v1569, %v1636
        %v1638 = vpop.f32.mrb[0].mxu0
        %v1639 = vadd.f32 %v1569, %v1638
        %v1640 = vpop.f32.mrb[0].mxu0
        %v1641 = vadd.f32 %v1574, %v1640
        %v1642 = vpop.f32.mrb[0].mxu0
        %v1643 = vadd.f32 %v1574, %v1642
        %1644 = vdwg.mxu0
        %1645 = vmatprep.subr.bf16.mxu0 %v1543
        %1646 = vmatpush1.bf16.msra.mxu0 %v1542
        %1647 = vmatprep.subr.bf16.mxu0 %v1547
        %1648 = vmatpush1.bf16.msra.mxu0 %v1546
        %1649 = vmatprep.subr.bf16.mxu0 0
        %1650 = vmatpush1.bf16.msra.mxu0 0
        %1651 = vmatprep.subr.bf16.mxu0 0
        %1652 = vmatpush1.bf16.msra.mxu0 0
        %1653 = vmatprep.subr.bf16.mxu0 0
        %1654 = vmatpush1.bf16.msra.mxu0 0
        %1655 = vmatprep.subr.bf16.mxu0 0
        %1656 = vmatpush1.bf16.msra.mxu0 0
        %1657 = vmatprep.subr.bf16.mxu0 0
        %1658 = vmatpush1.bf16.msra.mxu0 0
        %1659 = vmatprep.subr.bf16.mxu0 0
        %1660 = vmatpush1.bf16.msra.mxu0 0
        %1661 = vmatprep.subr.bf16.mxu0 0
        %1662 = vmatpush1.bf16.msra.mxu0 0
        %1663 = vmatprep.subr.bf16.mxu0 0
        %1664 = vmatpush1.bf16.msra.mxu0 0
        %1665 = vmatprep.subr.bf16.mxu0 0
        %1666 = vmatpush1.bf16.msra.mxu0 0
        %1667 = vmatprep.subr.bf16.mxu0 0
        %1668 = vmatpush1.bf16.msra.mxu0 0
        %1669 = vmatprep.subr.bf16.mxu0 0
        %1670 = vmatpush1.bf16.msra.mxu0 0
        %1671 = vmatprep.subr.bf16.mxu0 0
        %1672 = vmatpush1.bf16.msra.mxu0 0
        %1673 = vmatprep.subr.bf16.mxu0 0
        %1674 = vmatpush1.bf16.msra.mxu0 0
        %1675 = vmatprep.subr.bf16.mxu0 0
        %1676 = vmatpush1.bf16.msra.mxu0 0
        %1677 = vmatprep.mubr.bf16.mxu0 0
        %1678 = vmatmul.mubr.bf16.gmra.mrb[0].mxu0 %v1587
        %v1679 = vpop.f32.mrb[0].mxu0
        %v1680 = vadd.f32 %v1559, %v1679
        %v1681 = vpop.f32.mrb[0].mxu0
        %v1682 = vadd.f32 %v1559, %v1681
        %v1683 = vpop.f32.mrb[0].mxu0
        %v1684 = vadd.f32 %v1564, %v1683
        %v1685 = vpop.f32.mrb[0].mxu0
        %v1686 = vadd.f32 %v1564, %v1685
        %1687 = vmatprep.mubr.bf16.mxu0 0
        %1688 = vmatmul.mubr.bf16.gmra.mrb[0].mxu0 %v1590
        %v1689 = vpop.f32.mrb[0].mxu0
        %v1690 = vadd.f32 %v1569, %v1689
        %v1691 = vpop.f32.mrb[0].mxu0
        %v1692 = vadd.f32 %v1569, %v1691
        %v1693 = vpop.f32.mrb[0].mxu0
        %v1694 = vadd.f32 %v1574, %v1693
        %v1695 = vpop.f32.mrb[0].mxu0
        %v1696 = vadd.f32 %v1574, %v1695
        %1697 = vdwg.mxu0
        %v1698 = vmax.f32 %v1627, 0.0
        %v1699 = vmax.f32 %v1629, 0.0
        %v1700 = vmax.f32 %v1680, 0.0
        %v1701 = vmax.f32 %v1682, 0.0
        %v1702 = vmax.f32 %v1631, 0.0
        %v1703 = vmax.f32 %v1633, 0.0
        %v1704 = vmax.f32 %v1684, 0.0
        %v1705 = vmax.f32 %v1686, 0.0
        %v1706 = vmax.f32 %v1637, 0.0
        %v1707 = vmax.f32 %v1639, 0.0
        %v1708 = vmax.f32 %v1690, 0.0
        %v1709 = vmax.f32 %v1692, 0.0
        %v1710 = vmax.f32 %v1641, 0.0
        %v1711 = vmax.f32 %v1643, 0.0
        %v1712 = vmax.f32 %v1694, 0.0
        %v1713 = vmax.f32 %v1696, 0.0
        %v1714 = vpack.c.bf16 %v1702, %v1698
        %v1715 = vpack.c.bf16 %v1703, %v1699
        %v1716 = vpack.c.bf16 %v1704, %v1700
        %v1717 = vpack.c.bf16 %v1705, %v1701
        %v1718 = vpack.c.bf16 %v1710, %v1706
        %v1719 = vpack.c.bf16 %v1711, %v1707
        %v1720 = vpack.c.bf16 %v1712, %v1708
        %v1721 = vpack.c.bf16 %v1713, %v1709
        %v1722 = vld [vmem:[%s8] sm:$0xf]
        %v1723 = vld [vmem:[%s8 + $0x4] sm:$0xf]
        %v1724 = vld [vmem:[%s8 + $0x8] sm:$0xf]
        %v1725 = vld [vmem:[%s8 + $0xc] sm:$0xf]
        %v1726 = vld [vmem:[%s9] sm:$0xff]
        %v1727 = vld [vmem:[%s9 + $0x8] sm:$0xff]
        %v1728 = vld [vmem:[%s9 + $0x10] sm:$0xff]
        %v1729 = vld [vmem:[%s9 + $0x18] sm:$0xff]
        %1731 = vset.pattern.permute.xlu0 0
        %1732 = vperm.xlu0 %1731, %v1726
        %v1733 = vpop.permute.xlu0 %1732
        %1736 = vset.pattern.permute.xlu0 0
        %1737 = vperm.xlu0 %1736, %v1727
        %v1738 = vpop.permute.xlu0 %1737
        %1741 = vset.pattern.permute.xlu0 0
        %1742 = vperm.xlu0 %1741, %v1728
        %v1743 = vpop.permute.xlu0 %1742
        %1746 = vset.pattern.permute.xlu0 0
        %1747 = vperm.xlu0 %1746, %v1729
        %v1748 = vpop.permute.xlu0 %1747
        %v1754 = vunpack.c.l.b16 %v1722
        %v1755 = vunpack.c.l.b16 %v1723
        %v1756 = vunpack.c.l.b16 %v1724
        %v1757 = vunpack.c.l.b16 %v1725
        %v1758 = vpack.c.b16 %v1755, %v1754
        %v1759 = vpack.c.b16 %v1757, %v1756
        %v1761 = vsel %vm1411, %v1758, 0
        %v1764 = vsel %vm1411, %v1759, 0
        %1766 = vmatprep.subr.bf16.mxu0 %v1715
        %1767 = vmatpush1.bf16.msra.mxu0 %v1714
        %1768 = vmatprep.subr.bf16.mxu0 %v1719
        %1769 = vmatpush1.bf16.msra.mxu0 %v1718
        %1770 = vmatprep.subr.bf16.mxu0 0
        %1771 = vmatpush1.bf16.msra.mxu0 0
        %1772 = vmatprep.subr.bf16.mxu0 0
        %1773 = vmatpush1.bf16.msra.mxu0 0
        %1774 = vmatprep.subr.bf16.mxu0 0
        %1775 = vmatpush1.bf16.msra.mxu0 0
        %1776 = vmatprep.subr.bf16.mxu0 0
        %1777 = vmatpush1.bf16.msra.mxu0 0
        %1778 = vmatprep.subr.bf16.mxu0 0
        %1779 = vmatpush1.bf16.msra.mxu0 0
        %1780 = vmatprep.subr.bf16.mxu0 0
        %1781 = vmatpush1.bf16.msra.mxu0 0
        %1782 = vmatprep.subr.bf16.mxu0 0
        %1783 = vmatpush1.bf16.msra.mxu0 0
        %1784 = vmatprep.subr.bf16.mxu0 0
        %1785 = vmatpush1.bf16.msra.mxu0 0
        %1786 = vmatprep.subr.bf16.mxu0 0
        %1787 = vmatpush1.bf16.msra.mxu0 0
        %1788 = vmatprep.subr.bf16.mxu0 0
        %1789 = vmatpush1.bf16.msra.mxu0 0
        %1790 = vmatprep.subr.bf16.mxu0 0
        %1791 = vmatpush1.bf16.msra.mxu0 0
        %1792 = vmatprep.subr.bf16.mxu0 0
        %1793 = vmatpush1.bf16.msra.mxu0 0
        %1794 = vmatprep.subr.bf16.mxu0 0
        %1795 = vmatpush1.bf16.msra.mxu0 0
        %1796 = vmatprep.subr.bf16.mxu0 0
        %1797 = vmatpush1.bf16.msra.mxu0 0
        %1798 = vmatprep.mubr.bf16.mxu0 0
        %1799 = vmatmul.mubr.bf16.gmra.mrb[0].mxu0 %v1761
        %v1800 = vpop.f32.mrb[0].mxu0
        %v1801 = vadd.f32 %v1733, %v1800
        %v1802 = vpop.f32.mrb[0].mxu0
        %v1803 = vadd.f32 %v1733, %v1802
        %v1804 = vpop.f32.mrb[0].mxu0
        %v1805 = vadd.f32 %v1738, %v1804
        %v1806 = vpop.f32.mrb[0].mxu0
        %v1807 = vadd.f32 %v1738, %v1806
        %1808 = vmatprep.mubr.bf16.mxu0 0
        %1809 = vmatmul.mubr.bf16.gmra.mrb[0].mxu0 %v1764
        %v1810 = vpop.f32.mrb[0].mxu0
        %v1811 = vadd.f32 %v1743, %v1810
        %v1812 = vpop.f32.mrb[0].mxu0
        %v1813 = vadd.f32 %v1743, %v1812
        %v1814 = vpop.f32.mrb[0].mxu0
        %v1815 = vadd.f32 %v1748, %v1814
        %v1816 = vpop.f32.mrb[0].mxu0
        %v1817 = vadd.f32 %v1748, %v1816
        %1818 = vdwg.mxu0
        %1819 = vmatprep.subr.bf16.mxu0 %v1717
        %1820 = vmatpush1.bf16.msra.mxu0 %v1716
        %1821 = vmatprep.subr.bf16.mxu0 %v1721
        %1822 = vmatpush1.bf16.msra.mxu0 %v1720
        %1823 = vmatprep.subr.bf16.mxu0 0
        %1824 = vmatpush1.bf16.msra.mxu0 0
        %1825 = vmatprep.subr.bf16.mxu0 0
        %1826 = vmatpush1.bf16.msra.mxu0 0
        %1827 = vmatprep.subr.bf16.mxu0 0
        %1828 = vmatpush1.bf16.msra.mxu0 0
        %1829 = vmatprep.subr.bf16.mxu0 0
        %1830 = vmatpush1.bf16.msra.mxu0 0
        %1831 = vmatprep.subr.bf16.mxu0 0
        %1832 = vmatpush1.bf16.msra.mxu0 0
        %1833 = vmatprep.subr.bf16.mxu0 0
        %1834 = vmatpush1.bf16.msra.mxu0 0
        %1835 = vmatprep.subr.bf16.mxu0 0
        %1836 = vmatpush1.bf16.msra.mxu0 0
        %1837 = vmatprep.subr.bf16.mxu0 0
        %1838 = vmatpush1.bf16.msra.mxu0 0
        %1839 = vmatprep.subr.bf16.mxu0 0
        %1840 = vmatpush1.bf16.msra.mxu0 0
        %1841 = vmatprep.subr.bf16.mxu0 0
        %1842 = vmatpush1.bf16.msra.mxu0 0
        %1843 = vmatprep.subr.bf16.mxu0 0
        %1844 = vmatpush1.bf16.msra.mxu0 0
        %1845 = vmatprep.subr.bf16.mxu0 0
        %1846 = vmatpush1.bf16.msra.mxu0 0
        %1847 = vmatprep.subr.bf16.mxu0 0
        %1848 = vmatpush1.bf16.msra.mxu0 0
        %1849 = vmatprep.subr.bf16.mxu0 0
        %1850 = vmatpush1.bf16.msra.mxu0 0
        %1851 = vmatprep.mubr.bf16.mxu0 0
        %1852 = vmatmul.mubr.bf16.gmra.mrb[0].mxu0 %v1761
        %v1853 = vpop.f32.mrb[0].mxu0
        %v1854 = vadd.f32 %v1733, %v1853
        %v1855 = vpop.f32.mrb[0].mxu0
        %v1856 = vadd.f32 %v1733, %v1855
        %v1857 = vpop.f32.mrb[0].mxu0
        %v1858 = vadd.f32 %v1738, %v1857
        %v1859 = vpop.f32.mrb[0].mxu0
        %v1860 = vadd.f32 %v1738, %v1859
        %1861 = vmatprep.mubr.bf16.mxu0 0
        %1862 = vmatmul.mubr.bf16.gmra.mrb[0].mxu0 %v1764
        %v1863 = vpop.f32.mrb[0].mxu0
        %v1864 = vadd.f32 %v1743, %v1863
        %v1865 = vpop.f32.mrb[0].mxu0
        %v1866 = vadd.f32 %v1743, %v1865
        %v1867 = vpop.f32.mrb[0].mxu0
        %v1868 = vadd.f32 %v1748, %v1867
        %v1869 = vpop.f32.mrb[0].mxu0
        %v1870 = vadd.f32 %v1748, %v1869
        %1871 = vdwg.mxu0
        %v1872 = vmax.f32 %v1801, 0.0
        %v1873 = vmax.f32 %v1803, 0.0
        %v1874 = vmax.f32 %v1854, 0.0
        %v1875 = vmax.f32 %v1856, 0.0
        %v1876 = vmax.f32 %v1805, 0.0
        %v1877 = vmax.f32 %v1807, 0.0
        %v1878 = vmax.f32 %v1858, 0.0
        %v1879 = vmax.f32 %v1860, 0.0
        %v1880 = vmax.f32 %v1811, 0.0
        %v1881 = vmax.f32 %v1813, 0.0
        %v1882 = vmax.f32 %v1864, 0.0
        %v1883 = vmax.f32 %v1866, 0.0
        %v1884 = vmax.f32 %v1815, 0.0
        %v1885 = vmax.f32 %v1817, 0.0
        %v1886 = vmax.f32 %v1868, 0.0
        %v1887 = vmax.f32 %v1870, 0.0
        %v1888 = vpack.c.bf16 %v1876, %v1872
        %v1889 = vpack.c.bf16 %v1877, %v1873
        %v1890 = vpack.c.bf16 %v1878, %v1874
        %v1891 = vpack.c.bf16 %v1879, %v1875
        %v1892 = vpack.c.bf16 %v1884, %v1880
        %v1893 = vpack.c.bf16 %v1885, %v1881
        %v1894 = vpack.c.bf16 %v1886, %v1882
        %v1895 = vpack.c.bf16 %v1887, %v1883
        %v1896 = vld [vmem:[%s10] sm:$0xf]
        %v1897 = vld [vmem:[%s10 + $0x4] sm:$0xf]
        %v1898 = vld [vmem:[%s10 + $0x8] sm:$0xf]
        %v1899 = vld [vmem:[%s10 + $0xc] sm:$0xf]
        %v1900 = vld [vmem:[%s11] sm:$0xff]
        %v1901 = vld [vmem:[%s11 + $0x8] sm:$0xff]
        %v1902 = vld [vmem:[%s11 + $0x10] sm:$0xff]
        %v1903 = vld [vmem:[%s11 + $0x18] sm:$0xff]
        %1905 = vset.pattern.permute.xlu0 0
        %1906 = vperm.xlu0 %1905, %v1900
        %v1907 = vpop.permute.xlu0 %1906
        %1910 = vset.pattern.permute.xlu0 0
        %1911 = vperm.xlu0 %1910, %v1901
        %v1912 = vpop.permute.xlu0 %1911
        %1915 = vset.pattern.permute.xlu0 0
        %1916 = vperm.xlu0 %1915, %v1902
        %v1917 = vpop.permute.xlu0 %1916
        %1920 = vset.pattern.permute.xlu0 0
        %1921 = vperm.xlu0 %1920, %v1903
        %v1922 = vpop.permute.xlu0 %1921
        %v1928 = vunpack.c.l.b16 %v1896
        %v1929 = vunpack.c.l.b16 %v1897
        %v1930 = vunpack.c.l.b16 %v1898
        %v1931 = vunpack.c.l.b16 %v1899
        %v1932 = vpack.c.b16 %v1929, %v1928
        %v1933 = vpack.c.b16 %v1931, %v1930
        %v1935 = vsel %vm1411, %v1932, 0
        %v1938 = vsel %vm1411, %v1933, 0
        %1940 = vmatprep.subr.bf16.mxu0 %v1889
        %1941 = vmatpush1.bf16.msra.mxu0 %v1888
        %1942 = vmatprep.subr.bf16.mxu0 %v1893
        %1943 = vmatpush1.bf16.msra.mxu0 %v1892
        %1944 = vmatprep.subr.bf16.mxu0 0
        %1945 = vmatpush1.bf16.msra.mxu0 0
        %1946 = vmatprep.subr.bf16.mxu0 0
        %1947 = vmatpush1.bf16.msra.mxu0 0
        %1948 = vmatprep.subr.bf16.mxu0 0
        %1949 = vmatpush1.bf16.msra.mxu0 0
        %1950 = vmatprep.subr.bf16.mxu0 0
        %1951 = vmatpush1.bf16.msra.mxu0 0
        %1952 = vmatprep.subr.bf16.mxu0 0
        %1953 = vmatpush1.bf16.msra.mxu0 0
        %1954 = vmatprep.subr.bf16.mxu0 0
        %1955 = vmatpush1.bf16.msra.mxu0 0
        %1956 = vmatprep.subr.bf16.mxu0 0
        %1957 = vmatpush1.bf16.msra.mxu0 0
        %1958 = vmatprep.subr.bf16.mxu0 0
        %1959 = vmatpush1.bf16.msra.mxu0 0
        %1960 = vmatprep.subr.bf16.mxu0 0
        %1961 = vmatpush1.bf16.msra.mxu0 0
        %1962 = vmatprep.subr.bf16.mxu0 0
        %1963 = vmatpush1.bf16.msra.mxu0 0
        %1964 = vmatprep.subr.bf16.mxu0 0
        %1965 = vmatpush1.bf16.msra.mxu0 0
        %1966 = vmatprep.subr.bf16.mxu0 0
        %1967 = vmatpush1.bf16.msra.mxu0 0
        %1968 = vmatprep.subr.bf16.mxu0 0
        %1969 = vmatpush1.bf16.msra.mxu0 0
        %1970 = vmatprep.subr.bf16.mxu0 0
        %1971 = vmatpush1.bf16.msra.mxu0 0
        %1972 = vmatprep.mubr.bf16.mxu0 0
        %1973 = vmatmul.mubr.bf16.gmra.mrb[0].mxu0 %v1935
        %v1974 = vpop.f32.mrb[0].mxu0
        %v1975 = vadd.f32 %v1907, %v1974
        %v1976 = vpop.f32.mrb[0].mxu0
        %v1977 = vadd.f32 %v1907, %v1976
        %v1978 = vpop.f32.mrb[0].mxu0
        %v1979 = vadd.f32 %v1912, %v1978
        %v1980 = vpop.f32.mrb[0].mxu0
        %v1981 = vadd.f32 %v1912, %v1980
        %1982 = vmatprep.mubr.bf16.mxu0 0
        %1983 = vmatmul.mubr.bf16.gmra.mrb[0].mxu0 %v1938
        %v1984 = vpop.f32.mrb[0].mxu0
        %v1985 = vadd.f32 %v1917, %v1984
        %v1986 = vpop.f32.mrb[0].mxu0
        %v1987 = vadd.f32 %v1917, %v1986
        %v1988 = vpop.f32.mrb[0].mxu0
        %v1989 = vadd.f32 %v1922, %v1988
        %v1990 = vpop.f32.mrb[0].mxu0
        %v1991 = vadd.f32 %v1922, %v1990
        %1992 = vdwg.mxu0
        %1993 = vmatprep.subr.bf16.mxu0 %v1891
        %1994 = vmatpush1.bf16.msra.mxu0 %v1890
        %1995 = vmatprep.subr.bf16.mxu0 %v1895
        %1996 = vmatpush1.bf16.msra.mxu0 %v1894
        %1997 = vmatprep.subr.bf16.mxu0 0
        %1998 = vmatpush1.bf16.msra.mxu0 0
        %1999 = vmatprep.subr.bf16.mxu0 0
        %2000 = vmatpush1.bf16.msra.mxu0 0
        %2001 = vmatprep.subr.bf16.mxu0 0
        %2002 = vmatpush1.bf16.msra.mxu0 0
        %2003 = vmatprep.subr.bf16.mxu0 0
        %2004 = vmatpush1.bf16.msra.mxu0 0
        %2005 = vmatprep.subr.bf16.mxu0 0
        %2006 = vmatpush1.bf16.msra.mxu0 0
        %2007 = vmatprep.subr.bf16.mxu0 0
        %2008 = vmatpush1.bf16.msra.mxu0 0
        %2009 = vmatprep.subr.bf16.mxu0 0
        %2010 = vmatpush1.bf16.msra.mxu0 0
        %2011 = vmatprep.subr.bf16.mxu0 0
        %2012 = vmatpush1.bf16.msra.mxu0 0
        %2013 = vmatprep.subr.bf16.mxu0 0
        %2014 = vmatpush1.bf16.msra.mxu0 0
        %2015 = vmatprep.subr.bf16.mxu0 0
        %2016 = vmatpush1.bf16.msra.mxu0 0
        %2017 = vmatprep.subr.bf16.mxu0 0
        %2018 = vmatpush1.bf16.msra.mxu0 0
        %2019 = vmatprep.subr.bf16.mxu0 0
        %2020 = vmatpush1.bf16.msra.mxu0 0
        %2021 = vmatprep.subr.bf16.mxu0 0
        %2022 = vmatpush1.bf16.msra.mxu0 0
        %2023 = vmatprep.subr.bf16.mxu0 0
        %2024 = vmatpush1.bf16.msra.mxu0 0
        %2025 = vmatprep.mubr.bf16.mxu0 0
        %2026 = vmatmul.mubr.bf16.gmra.mrb[0].mxu0 %v1935
        %v2027 = vpop.f32.mrb[0].mxu0
        %v2028 = vadd.f32 %v1907, %v2027
        %v2029 = vpop.f32.mrb[0].mxu0
        %v2030 = vadd.f32 %v1907, %v2029
        %v2031 = vpop.f32.mrb[0].mxu0
        %v2032 = vadd.f32 %v1912, %v2031
        %v2033 = vpop.f32.mrb[0].mxu0
        %v2034 = vadd.f32 %v1912, %v2033
        %2035 = vmatprep.mubr.bf16.mxu0 0
        %2036 = vmatmul.mubr.bf16.gmra.mrb[0].mxu0 %v1938
        %v2037 = vpop.f32.mrb[0].mxu0
        %v2038 = vadd.f32 %v1917, %v2037
        %v2039 = vpop.f32.mrb[0].mxu0
        %v2040 = vadd.f32 %v1917, %v2039
        %v2041 = vpop.f32.mrb[0].mxu0
        %v2042 = vadd.f32 %v1922, %v2041
        %v2043 = vpop.f32.mrb[0].mxu0
        %v2044 = vadd.f32 %v1922, %v2043
        %2045 = vdwg.mxu0
        %v2046 = vmax.f32 %v1975, 0.0
        %v2047 = vmax.f32 %v1977, 0.0
        %v2048 = vmax.f32 %v2028, 0.0
        %v2049 = vmax.f32 %v2030, 0.0
        %v2050 = vmax.f32 %v1979, 0.0
        %v2051 = vmax.f32 %v1981, 0.0
        %v2052 = vmax.f32 %v2032, 0.0
        %v2053 = vmax.f32 %v2034, 0.0
        %v2054 = vmax.f32 %v1985, 0.0
        %v2055 = vmax.f32 %v1987, 0.0
        %v2056 = vmax.f32 %v2038, 0.0
        %v2057 = vmax.f32 %v2040, 0.0
        %v2058 = vmax.f32 %v1989, 0.0
        %v2059 = vmax.f32 %v1991, 0.0
        %v2060 = vmax.f32 %v2042, 0.0
        %v2061 = vmax.f32 %v2044, 0.0
        %v2062 = vpack.c.bf16 %v2050, %v2046
        %v2063 = vpack.c.bf16 %v2051, %v2047
        %v2064 = vpack.c.bf16 %v2052, %v2048
        %v2065 = vpack.c.bf16 %v2053, %v2049
        %v2066 = vpack.c.bf16 %v2058, %v2054
        %v2067 = vpack.c.bf16 %v2059, %v2055
        %v2068 = vpack.c.bf16 %v2060, %v2056
        %v2069 = vpack.c.bf16 %v2061, %v2057
        %v2070 = vld [vmem:[%s12] sm:$0xf]
        %v2071 = vld [vmem:[%s12 + $0x4] sm:$0xf]
        %v2072 = vld [vmem:[%s12 + $0x8] sm:$0xf]
        %v2073 = vld [vmem:[%s12 + $0xc] sm:$0xf]
        %v2074 = vld [vmem:[%s13] sm:$0xff]
        %v2075 = vld [vmem:[%s13 + $0x8] sm:$0xff]
        %v2076 = vld [vmem:[%s13 + $0x10] sm:$0xff]
        %v2077 = vld [vmem:[%s13 + $0x18] sm:$0xff]
        %2079 = vset.pattern.permute.xlu0 0
        %2080 = vperm.xlu0 %2079, %v2074
        %v2081 = vpop.permute.xlu0 %2080
        %2084 = vset.pattern.permute.xlu0 0
        %2085 = vperm.xlu0 %2084, %v2075
        %v2086 = vpop.permute.xlu0 %2085
        %2089 = vset.pattern.permute.xlu0 0
        %2090 = vperm.xlu0 %2089, %v2076
        %v2091 = vpop.permute.xlu0 %2090
        %2094 = vset.pattern.permute.xlu0 0
        %2095 = vperm.xlu0 %2094, %v2077
        %v2096 = vpop.permute.xlu0 %2095
        %v2102 = vunpack.c.l.b16 %v2070
        %v2103 = vunpack.c.l.b16 %v2071
        %v2104 = vunpack.c.l.b16 %v2072
        %v2105 = vunpack.c.l.b16 %v2073
        %v2106 = vpack.c.b16 %v2103, %v2102
        %v2107 = vpack.c.b16 %v2105, %v2104
        %vm2108 = vcmask 392192
        %v2110 = vsel %vm2108, %v2106, 0
        %v2113 = vsel %vm2108, %v2107, 0
        %2115 = vmatprep.subr.bf16.mxu0 %v2063
        %2116 = vmatpush1.bf16.msra.mxu0 %v2062
        %2117 = vmatprep.subr.bf16.mxu0 %v2067
        %2118 = vmatpush1.bf16.msra.mxu0 %v2066
        %2119 = vmatprep.subr.bf16.mxu0 %v999
        %2120 = vmatpush1.bf16.msra.mxu0 %v998
        %2121 = vmatprep.subr.bf16.mxu0 0
        %2122 = vmatpush1.bf16.msra.mxu0 0
        %2123 = vmatprep.subr.bf16.mxu0 0
        %2124 = vmatpush1.bf16.msra.mxu0 0
        %2125 = vmatprep.subr.bf16.mxu0 0
        %2126 = vmatpush1.bf16.msra.mxu0 0
        %2127 = vmatprep.subr.bf16.mxu0 0
        %2128 = vmatpush1.bf16.msra.mxu0 0
        %2129 = vmatprep.subr.bf16.mxu0 0
        %2130 = vmatpush1.bf16.msra.mxu0 0
        %2131 = vmatprep.subr.bf16.mxu0 0
        %2132 = vmatpush1.bf16.msra.mxu0 0
        %2133 = vmatprep.subr.bf16.mxu0 0
        %2134 = vmatpush1.bf16.msra.mxu0 0
        %2135 = vmatprep.subr.bf16.mxu0 0
        %2136 = vmatpush1.bf16.msra.mxu0 0
        %2137 = vmatprep.subr.bf16.mxu0 0
        %2138 = vmatpush1.bf16.msra.mxu0 0
        %2139 = vmatprep.subr.bf16.mxu0 0
        %2140 = vmatpush1.bf16.msra.mxu0 0
        %2141 = vmatprep.subr.bf16.mxu0 0
        %2142 = vmatpush1.bf16.msra.mxu0 0
        %2143 = vmatprep.subr.bf16.mxu0 0
        %2144 = vmatpush1.bf16.msra.mxu0 0
        %2145 = vmatprep.subr.bf16.mxu0 0
        %2146 = vmatpush1.bf16.msra.mxu0 0
        %2147 = vmatprep.mubr.bf16.mxu0 0
        %2148 = vmatmul.mubr.bf16.gmra.mrb[0].mxu0 %v2110
        %v2149 = vpop.f32.mrb[0].mxu0
        %v2150 = vadd.f32 %v2081, %v2149
        %v2151 = vpop.f32.mrb[0].mxu0
        %v2152 = vadd.f32 %v2081, %v2151
        %v2153 = vpop.f32.mrb[0].mxu0
        %v2154 = vadd.f32 %v2086, %v2153
        %v2155 = vpop.f32.mrb[0].mxu0
        %v2156 = vadd.f32 %v2086, %v2155
        %2157 = vmatprep.mubr.bf16.mxu0 0
        %2158 = vmatmul.mubr.bf16.gmra.mrb[0].mxu0 %v2113
        %v2159 = vpop.f32.mrb[0].mxu0
        %v2160 = vadd.f32 %v2091, %v2159
        %v2161 = vpop.f32.mrb[0].mxu0
        %v2162 = vadd.f32 %v2091, %v2161
        %v2163 = vpop.f32.mrb[0].mxu0
        %v2164 = vadd.f32 %v2096, %v2163
        %v2165 = vpop.f32.mrb[0].mxu0
        %v2166 = vadd.f32 %v2096, %v2165
        %2167 = vdwg.mxu0
        %2168 = vmatprep.subr.bf16.mxu0 %v2065
        %2169 = vmatpush1.bf16.msra.mxu0 %v2064
        %2170 = vmatprep.subr.bf16.mxu0 %v2069
        %2171 = vmatpush1.bf16.msra.mxu0 %v2068
        %2172 = vmatprep.subr.bf16.mxu0 %v1001
        %2173 = vmatpush1.bf16.msra.mxu0 %v1000
        %2174 = vmatprep.subr.bf16.mxu0 0
        %2175 = vmatpush1.bf16.msra.mxu0 0
        %2176 = vmatprep.subr.bf16.mxu0 0
        %2177 = vmatpush1.bf16.msra.mxu0 0
        %2178 = vmatprep.subr.bf16.mxu0 0
        %2179 = vmatpush1.bf16.msra.mxu0 0
        %2180 = vmatprep.subr.bf16.mxu0 0
        %2181 = vmatpush1.bf16.msra.mxu0 0
        %2182 = vmatprep.subr.bf16.mxu0 0
        %2183 = vmatpush1.bf16.msra.mxu0 0
        %2184 = vmatprep.subr.bf16.mxu0 0
        %2185 = vmatpush1.bf16.msra.mxu0 0
        %2186 = vmatprep.subr.bf16.mxu0 0
        %2187 = vmatpush1.bf16.msra.mxu0 0
        %2188 = vmatprep.subr.bf16.mxu0 0
        %2189 = vmatpush1.bf16.msra.mxu0 0
        %2190 = vmatprep.subr.bf16.mxu0 0
        %2191 = vmatpush1.bf16.msra.mxu0 0
        %2192 = vmatprep.subr.bf16.mxu0 0
        %2193 = vmatpush1.bf16.msra.mxu0 0
        %2194 = vmatprep.subr.bf16.mxu0 0
        %2195 = vmatpush1.bf16.msra.mxu0 0
        %2196 = vmatprep.subr.bf16.mxu0 0
        %2197 = vmatpush1.bf16.msra.mxu0 0
        %2198 = vmatprep.subr.bf16.mxu0 0
        %2199 = vmatpush1.bf16.msra.mxu0 0
        %2200 = vmatprep.mubr.bf16.mxu0 0
        %2201 = vmatmul.mubr.bf16.gmra.mrb[0].mxu0 %v2110
        %v2202 = vpop.f32.mrb[0].mxu0
        %v2203 = vadd.f32 %v2081, %v2202
        %v2204 = vpop.f32.mrb[0].mxu0
        %v2205 = vadd.f32 %v2081, %v2204
        %v2206 = vpop.f32.mrb[0].mxu0
        %v2207 = vadd.f32 %v2086, %v2206
        %v2208 = vpop.f32.mrb[0].mxu0
        %v2209 = vadd.f32 %v2086, %v2208
        %2210 = vmatprep.mubr.bf16.mxu0 0
        %2211 = vmatmul.mubr.bf16.gmra.mrb[0].mxu0 %v2113
        %v2212 = vpop.f32.mrb[0].mxu0
        %v2213 = vadd.f32 %v2091, %v2212
        %v2214 = vpop.f32.mrb[0].mxu0
        %v2215 = vadd.f32 %v2091, %v2214
        %v2216 = vpop.f32.mrb[0].mxu0
        %v2217 = vadd.f32 %v2096, %v2216
        %v2218 = vpop.f32.mrb[0].mxu0
        %v2219 = vadd.f32 %v2096, %v2218
        %2220 = vdwg.mxu0
        %v2221 = vmax.f32 %v2150, 0.0
        %v2222 = vmax.f32 %v2152, 0.0
        %v2223 = vmax.f32 %v2203, 0.0
        %v2224 = vmax.f32 %v2205, 0.0
        %v2225 = vmax.f32 %v2154, 0.0
        %v2226 = vmax.f32 %v2156, 0.0
        %v2227 = vmax.f32 %v2207, 0.0
        %v2228 = vmax.f32 %v2209, 0.0
        %v2229 = vmax.f32 %v2160, 0.0
        %v2230 = vmax.f32 %v2162, 0.0
        %v2231 = vmax.f32 %v2213, 0.0
        %v2232 = vmax.f32 %v2215, 0.0
        %v2233 = vmax.f32 %v2164, 0.0
        %v2234 = vmax.f32 %v2166, 0.0
        %v2235 = vmax.f32 %v2217, 0.0
        %v2236 = vmax.f32 %v2219, 0.0
        %v2237 = vpack.c.bf16 %v2225, %v2221
        %v2238 = vpack.c.bf16 %v2226, %v2222
        %v2239 = vpack.c.bf16 %v2227, %v2223
        %v2240 = vpack.c.bf16 %v2228, %v2224
        %v2241 = vpack.c.bf16 %v2233, %v2229
        %v2242 = vpack.c.bf16 %v2234, %v2230
        %v2243 = vpack.c.bf16 %v2235, %v2231
        %v2244 = vpack.c.bf16 %v2236, %v2232
        %v2245 = vld [vmem:[%s14] sm:$0xf]
        %v2246 = vld [vmem:[%s14 + $0x4] sm:$0xf]
        %v2247 = vld [vmem:[%s14 + $0x8] sm:$0xf]
        %v2248 = vld [vmem:[%s14 + $0xc] sm:$0xf]
        %v2249 = vld [vmem:[%s15] sm:$0xff]
        %v2250 = vld [vmem:[%s15 + $0x8] sm:$0xff]
        %v2251 = vld [vmem:[%s15 + $0x10] sm:$0xff]
        %v2252 = vld [vmem:[%s15 + $0x18] sm:$0xff]
        %2254 = vset.pattern.permute.xlu0 0
        %2255 = vperm.xlu0 %2254, %v2249
        %v2256 = vpop.permute.xlu0 %2255
        %2259 = vset.pattern.permute.xlu0 0
        %2260 = vperm.xlu0 %2259, %v2250
        %v2261 = vpop.permute.xlu0 %2260
        %2264 = vset.pattern.permute.xlu0 0
        %2265 = vperm.xlu0 %2264, %v2251
        %v2266 = vpop.permute.xlu0 %2265
        %2269 = vset.pattern.permute.xlu0 0
        %2270 = vperm.xlu0 %2269, %v2252
        %v2271 = vpop.permute.xlu0 %2270
        %v2277 = vunpack.c.l.b16 %v2245
        %v2278 = vunpack.c.l.b16 %v2246
        %v2279 = vunpack.c.l.b16 %v2247
        %v2280 = vunpack.c.l.b16 %v2248
        %v2281 = vpack.c.b16 %v2278, %v2277
        %v2282 = vpack.c.b16 %v2280, %v2279
        %v2284 = vsel %vm1411, %v2281, 0
        %v2287 = vsel %vm1411, %v2282, 0
        %2289 = vmatprep.subr.bf16.mxu0 %v2238
        %2290 = vmatpush1.bf16.msra.mxu0 %v2237
        %2291 = vmatprep.subr.bf16.mxu0 %v2242
        %2292 = vmatpush1.bf16.msra.mxu0 %v2241
        %2293 = vmatprep.subr.bf16.mxu0 0
        %2294 = vmatpush1.bf16.msra.mxu0 0
        %2295 = vmatprep.subr.bf16.mxu0 0
        %2296 = vmatpush1.bf16.msra.mxu0 0
        %2297 = vmatprep.subr.bf16.mxu0 0
        %2298 = vmatpush1.bf16.msra.mxu0 0
        %2299 = vmatprep.subr.bf16.mxu0 0
        %2300 = vmatpush1.bf16.msra.mxu0 0
        %2301 = vmatprep.subr.bf16.mxu0 0
        %2302 = vmatpush1.bf16.msra.mxu0 0
        %2303 = vmatprep.subr.bf16.mxu0 0
        %2304 = vmatpush1.bf16.msra.mxu0 0
        %2305 = vmatprep.subr.bf16.mxu0 0
        %2306 = vmatpush1.bf16.msra.mxu0 0
        %2307 = vmatprep.subr.bf16.mxu0 0
        %2308 = vmatpush1.bf16.msra.mxu0 0
        %2309 = vmatprep.subr.bf16.mxu0 0
        %2310 = vmatpush1.bf16.msra.mxu0 0
        %2311 = vmatprep.subr.bf16.mxu0 0
        %2312 = vmatpush1.bf16.msra.mxu0 0
        %2313 = vmatprep.subr.bf16.mxu0 0
        %2314 = vmatpush1.bf16.msra.mxu0 0
        %2315 = vmatprep.subr.bf16.mxu0 0
        %2316 = vmatpush1.bf16.msra.mxu0 0
        %2317 = vmatprep.subr.bf16.mxu0 0
        %2318 = vmatpush1.bf16.msra.mxu0 0
        %2319 = vmatprep.subr.bf16.mxu0 0
        %2320 = vmatpush1.bf16.msra.mxu0 0
        %2321 = vmatprep.mubr.bf16.mxu0 0
        %2322 = vmatmul.mubr.bf16.gmra.mrb[0].mxu0 %v2284
        %v2323 = vpop.f32.mrb[0].mxu0
        %v2324 = vadd.f32 %v2256, %v2323
        %v2325 = vpop.f32.mrb[0].mxu0
        %v2326 = vadd.f32 %v2256, %v2325
        %v2327 = vpop.f32.mrb[0].mxu0
        %v2328 = vadd.f32 %v2261, %v2327
        %v2329 = vpop.f32.mrb[0].mxu0
        %v2330 = vadd.f32 %v2261, %v2329
        %2331 = vmatprep.mubr.bf16.mxu0 0
        %2332 = vmatmul.mubr.bf16.gmra.mrb[0].mxu0 %v2287
        %v2333 = vpop.f32.mrb[0].mxu0
        %v2334 = vadd.f32 %v2266, %v2333
        %v2335 = vpop.f32.mrb[0].mxu0
        %v2336 = vadd.f32 %v2266, %v2335
        %v2337 = vpop.f32.mrb[0].mxu0
        %v2338 = vadd.f32 %v2271, %v2337
        %v2339 = vpop.f32.mrb[0].mxu0
        %v2340 = vadd.f32 %v2271, %v2339
        %2341 = vdwg.mxu0
        %2342 = vmatprep.subr.bf16.mxu0 %v2240
        %2343 = vmatpush1.bf16.msra.mxu0 %v2239
        %2344 = vmatprep.subr.bf16.mxu0 %v2244
        %2345 = vmatpush1.bf16.msra.mxu0 %v2243
        %2346 = vmatprep.subr.bf16.mxu0 0
        %2347 = vmatpush1.bf16.msra.mxu0 0
        %2348 = vmatprep.subr.bf16.mxu0 0
        %2349 = vmatpush1.bf16.msra.mxu0 0
        %2350 = vmatprep.subr.bf16.mxu0 0
        %2351 = vmatpush1.bf16.msra.mxu0 0
        %2352 = vmatprep.subr.bf16.mxu0 0
        %2353 = vmatpush1.bf16.msra.mxu0 0
        %2354 = vmatprep.subr.bf16.mxu0 0
        %2355 = vmatpush1.bf16.msra.mxu0 0
        %2356 = vmatprep.subr.bf16.mxu0 0
        %2357 = vmatpush1.bf16.msra.mxu0 0
        %2358 = vmatprep.subr.bf16.mxu0 0
        %2359 = vmatpush1.bf16.msra.mxu0 0
        %2360 = vmatprep.subr.bf16.mxu0 0
        %2361 = vmatpush1.bf16.msra.mxu0 0
        %2362 = vmatprep.subr.bf16.mxu0 0
        %2363 = vmatpush1.bf16.msra.mxu0 0
        %2364 = vmatprep.subr.bf16.mxu0 0
        %2365 = vmatpush1.bf16.msra.mxu0 0
        %2366 = vmatprep.subr.bf16.mxu0 0
        %2367 = vmatpush1.bf16.msra.mxu0 0
        %2368 = vmatprep.subr.bf16.mxu0 0
        %2369 = vmatpush1.bf16.msra.mxu0 0
        %2370 = vmatprep.subr.bf16.mxu0 0
        %2371 = vmatpush1.bf16.msra.mxu0 0
        %2372 = vmatprep.subr.bf16.mxu0 0
        %2373 = vmatpush1.bf16.msra.mxu0 0
        %2374 = vmatprep.mubr.bf16.mxu0 0
        %2375 = vmatmul.mubr.bf16.gmra.mrb[0].mxu0 %v2284
        %v2376 = vpop.f32.mrb[0].mxu0
        %v2377 = vadd.f32 %v2256, %v2376
        %v2378 = vpop.f32.mrb[0].mxu0
        %v2379 = vadd.f32 %v2256, %v2378
        %v2380 = vpop.f32.mrb[0].mxu0
        %v2381 = vadd.f32 %v2261, %v2380
        %v2382 = vpop.f32.mrb[0].mxu0
        %v2383 = vadd.f32 %v2261, %v2382
        %2384 = vmatprep.mubr.bf16.mxu0 0
        %2385 = vmatmul.mubr.bf16.gmra.mrb[0].mxu0 %v2287
        %v2386 = vpop.f32.mrb[0].mxu0
        %v2387 = vadd.f32 %v2266, %v2386
        %v2388 = vpop.f32.mrb[0].mxu0
        %v2389 = vadd.f32 %v2266, %v2388
        %v2390 = vpop.f32.mrb[0].mxu0
        %v2391 = vadd.f32 %v2271, %v2390
        %v2392 = vpop.f32.mrb[0].mxu0
        %v2393 = vadd.f32 %v2271, %v2392
        %2394 = vdwg.mxu0
        %v2395 = vmax.f32 %v2324, 0.0
        %v2396 = vmax.f32 %v2326, 0.0
        %v2397 = vmax.f32 %v2377, 0.0
        %v2398 = vmax.f32 %v2379, 0.0
        %v2399 = vmax.f32 %v2328, 0.0
        %v2400 = vmax.f32 %v2330, 0.0
        %v2401 = vmax.f32 %v2381, 0.0
        %v2402 = vmax.f32 %v2383, 0.0
        %v2403 = vmax.f32 %v2334, 0.0
        %v2404 = vmax.f32 %v2336, 0.0
        %v2405 = vmax.f32 %v2387, 0.0
        %v2406 = vmax.f32 %v2389, 0.0
        %v2407 = vmax.f32 %v2338, 0.0
        %v2408 = vmax.f32 %v2340, 0.0
        %v2409 = vmax.f32 %v2391, 0.0
        %v2410 = vmax.f32 %v2393, 0.0
        %v2411 = vpack.c.bf16 %v2399, %v2395
        %v2412 = vpack.c.bf16 %v2400, %v2396
        %v2413 = vpack.c.bf16 %v2401, %v2397
        %v2414 = vpack.c.bf16 %v2402, %v2398
        %v2415 = vpack.c.bf16 %v2407, %v2403
        %v2416 = vpack.c.bf16 %v2408, %v2404
        %v2417 = vpack.c.bf16 %v2409, %v2405
        %v2418 = vpack.c.bf16 %v2410, %v2406
        %v2419 = vld [vmem:[%s16] sm:$0xf]
        %v2420 = vld [vmem:[%s16 + $0x4] sm:$0xf]
        %v2421 = vld [vmem:[%s16 + $0x8] sm:$0xf]
        %v2422 = vld [vmem:[%s16 + $0xc] sm:$0xf]
        %v2423 = vld [vmem:[%s17] sm:$0xff]
        %v2424 = vld [vmem:[%s17 + $0x8] sm:$0xff]
        %v2425 = vld [vmem:[%s17 + $0x10] sm:$0xff]
        %v2426 = vld [vmem:[%s17 + $0x18] sm:$0xff]
        %2428 = vset.pattern.permute.xlu0 0
        %2429 = vperm.xlu0 %2428, %v2423
        %v2430 = vpop.permute.xlu0 %2429
        %2433 = vset.pattern.permute.xlu0 0
        %2434 = vperm.xlu0 %2433, %v2424
        %v2435 = vpop.permute.xlu0 %2434
        %2438 = vset.pattern.permute.xlu0 0
        %2439 = vperm.xlu0 %2438, %v2425
        %v2440 = vpop.permute.xlu0 %2439
        %2443 = vset.pattern.permute.xlu0 0
        %2444 = vperm.xlu0 %2443, %v2426
        %v2445 = vpop.permute.xlu0 %2444
        %v2451 = vunpack.c.l.b16 %v2419
        %v2452 = vunpack.c.l.b16 %v2420
        %v2453 = vunpack.c.l.b16 %v2421
        %v2454 = vunpack.c.l.b16 %v2422
        %v2455 = vpack.c.b16 %v2452, %v2451
        %v2456 = vpack.c.b16 %v2454, %v2453
        %v2458 = vsel %vm1411, %v2455, 0
        %v2461 = vsel %vm1411, %v2456, 0
        %2463 = vmatprep.subr.bf16.mxu0 %v2412
        %2464 = vmatpush1.bf16.msra.mxu0 %v2411
        %2465 = vmatprep.subr.bf16.mxu0 %v2416
        %2466 = vmatpush1.bf16.msra.mxu0 %v2415
        %2467 = vmatprep.subr.bf16.mxu0 0
        %2468 = vmatpush1.bf16.msra.mxu0 0
        %2469 = vmatprep.subr.bf16.mxu0 0
        %2470 = vmatpush1.bf16.msra.mxu0 0
        %2471 = vmatprep.subr.bf16.mxu0 0
        %2472 = vmatpush1.bf16.msra.mxu0 0
        %2473 = vmatprep.subr.bf16.mxu0 0
        %2474 = vmatpush1.bf16.msra.mxu0 0
        %2475 = vmatprep.subr.bf16.mxu0 0
        %2476 = vmatpush1.bf16.msra.mxu0 0
        %2477 = vmatprep.subr.bf16.mxu0 0
        %2478 = vmatpush1.bf16.msra.mxu0 0
        %2479 = vmatprep.subr.bf16.mxu0 0
        %2480 = vmatpush1.bf16.msra.mxu0 0
        %2481 = vmatprep.subr.bf16.mxu0 0
        %2482 = vmatpush1.bf16.msra.mxu0 0
        %2483 = vmatprep.subr.bf16.mxu0 0
        %2484 = vmatpush1.bf16.msra.mxu0 0
        %2485 = vmatprep.subr.bf16.mxu0 0
        %2486 = vmatpush1.bf16.msra.mxu0 0
        %2487 = vmatprep.subr.bf16.mxu0 0
        %2488 = vmatpush1.bf16.msra.mxu0 0
        %2489 = vmatprep.subr.bf16.mxu0 0
        %2490 = vmatpush1.bf16.msra.mxu0 0
        %2491 = vmatprep.subr.bf16.mxu0 0
        %2492 = vmatpush1.bf16.msra.mxu0 0
        %2493 = vmatprep.subr.bf16.mxu0 0
        %2494 = vmatpush1.bf16.msra.mxu0 0
        %2495 = vmatprep.mubr.bf16.mxu0 0
        %2496 = vmatmul.mubr.bf16.gmra.mrb[0].mxu0 %v2458
        %v2497 = vpop.f32.mrb[0].mxu0
        %v2498 = vadd.f32 %v2430, %v2497
        %v2499 = vpop.f32.mrb[0].mxu0
        %v2500 = vadd.f32 %v2430, %v2499
        %v2501 = vpop.f32.mrb[0].mxu0
        %v2502 = vadd.f32 %v2435, %v2501
        %v2503 = vpop.f32.mrb[0].mxu0
        %v2504 = vadd.f32 %v2435, %v2503
        %2505 = vmatprep.mubr.bf16.mxu0 0
        %2506 = vmatmul.mubr.bf16.gmra.mrb[0].mxu0 %v2461
        %v2507 = vpop.f32.mrb[0].mxu0
        %v2508 = vadd.f32 %v2440, %v2507
        %v2509 = vpop.f32.mrb[0].mxu0
        %v2510 = vadd.f32 %v2440, %v2509
        %v2511 = vpop.f32.mrb[0].mxu0
        %v2512 = vadd.f32 %v2445, %v2511
        %v2513 = vpop.f32.mrb[0].mxu0
        %v2514 = vadd.f32 %v2445, %v2513
        %2515 = vdwg.mxu0
        %2516 = vmatprep.subr.bf16.mxu0 %v2414
        %2517 = vmatpush1.bf16.msra.mxu0 %v2413
        %2518 = vmatprep.subr.bf16.mxu0 %v2418
        %2519 = vmatpush1.bf16.msra.mxu0 %v2417
        %2520 = vmatprep.subr.bf16.mxu0 0
        %2521 = vmatpush1.bf16.msra.mxu0 0
        %2522 = vmatprep.subr.bf16.mxu0 0
        %2523 = vmatpush1.bf16.msra.mxu0 0
        %2524 = vmatprep.subr.bf16.mxu0 0
        %2525 = vmatpush1.bf16.msra.mxu0 0
        %2526 = vmatprep.subr.bf16.mxu0 0
        %2527 = vmatpush1.bf16.msra.mxu0 0
        %2528 = vmatprep.subr.bf16.mxu0 0
        %2529 = vmatpush1.bf16.msra.mxu0 0
        %2530 = vmatprep.subr.bf16.mxu0 0
        %2531 = vmatpush1.bf16.msra.mxu0 0
        %2532 = vmatprep.subr.bf16.mxu0 0
        %2533 = vmatpush1.bf16.msra.mxu0 0
        %2534 = vmatprep.subr.bf16.mxu0 0
        %2535 = vmatpush1.bf16.msra.mxu0 0
        %2536 = vmatprep.subr.bf16.mxu0 0
        %2537 = vmatpush1.bf16.msra.mxu0 0
        %2538 = vmatprep.subr.bf16.mxu0 0
        %2539 = vmatpush1.bf16.msra.mxu0 0
        %2540 = vmatprep.subr.bf16.mxu0 0
        %2541 = vmatpush1.bf16.msra.mxu0 0
        %2542 = vmatprep.subr.bf16.mxu0 0
        %2543 = vmatpush1.bf16.msra.mxu0 0
        %2544 = vmatprep.subr.bf16.mxu0 0
        %2545 = vmatpush1.bf16.msra.mxu0 0
        %2546 = vmatprep.subr.bf16.mxu0 0
        %2547 = vmatpush1.bf16.msra.mxu0 0
        %2548 = vmatprep.mubr.bf16.mxu0 0
        %2549 = vmatmul.mubr.bf16.gmra.mrb[0].mxu0 %v2458
        %v2550 = vpop.f32.mrb[0].mxu0
        %v2551 = vadd.f32 %v2430, %v2550
        %v2552 = vpop.f32.mrb[0].mxu0
        %v2553 = vadd.f32 %v2430, %v2552
        %v2554 = vpop.f32.mrb[0].mxu0
        %v2555 = vadd.f32 %v2435, %v2554
        %v2556 = vpop.f32.mrb[0].mxu0
        %v2557 = vadd.f32 %v2435, %v2556
        %2558 = vmatprep.mubr.bf16.mxu0 0
        %2559 = vmatmul.mubr.bf16.gmra.mrb[0].mxu0 %v2461
        %v2560 = vpop.f32.mrb[0].mxu0
        %v2561 = vadd.f32 %v2440, %v2560
        %v2562 = vpop.f32.mrb[0].mxu0
        %v2563 = vadd.f32 %v2440, %v2562
        %v2564 = vpop.f32.mrb[0].mxu0
        %v2565 = vadd.f32 %v2445, %v2564
        %v2566 = vpop.f32.mrb[0].mxu0
        %v2567 = vadd.f32 %v2445, %v2566
        %2568 = vdwg.mxu0
        %v2569 = vmax.f32 %v2498, 0.0
        %v2570 = vmax.f32 %v2500, 0.0
        %v2571 = vmax.f32 %v2551, 0.0
        %v2572 = vmax.f32 %v2553, 0.0
        %v2573 = vmax.f32 %v2502, 0.0
        %v2574 = vmax.f32 %v2504, 0.0
        %v2575 = vmax.f32 %v2555, 0.0
        %v2576 = vmax.f32 %v2557, 0.0
        %v2577 = vmax.f32 %v2508, 0.0
        %v2578 = vmax.f32 %v2510, 0.0
        %v2579 = vmax.f32 %v2561, 0.0
        %v2580 = vmax.f32 %v2563, 0.0
        %v2581 = vmax.f32 %v2512, 0.0
        %v2582 = vmax.f32 %v2514, 0.0
        %v2583 = vmax.f32 %v2565, 0.0
        %v2584 = vmax.f32 %v2567, 0.0
        %v2585 = vpack.c.bf16 %v2573, %v2569
        %v2586 = vpack.c.bf16 %v2574, %v2570
        %v2587 = vpack.c.bf16 %v2575, %v2571
        %v2588 = vpack.c.bf16 %v2576, %v2572
        %v2589 = vpack.c.bf16 %v2581, %v2577
        %v2590 = vpack.c.bf16 %v2582, %v2578
        %v2591 = vpack.c.bf16 %v2583, %v2579
        %v2592 = vpack.c.bf16 %v2584, %v2580
        %v2593 = vld [vmem:[%s18] sm:$0xf]
        %v2594 = vld [vmem:[%s18 + $0x4] sm:$0xf]
        %v2595 = vld [vmem:[%s18 + $0x8] sm:$0xf]
        %v2596 = vld [vmem:[%s18 + $0xc] sm:$0xf]
        %v2597 = vld [vmem:[%s18 + $0x10] sm:$0x3]
        %v2598 = vld [vmem:[%s19] sm:$0xff]
        %v2599 = vld [vmem:[%s19 + $0x8] sm:$0xff]
        %v2600 = vld [vmem:[%s19 + $0x10] sm:$0xff]
        %v2601 = vld [vmem:[%s19 + $0x18] sm:$0xff]
        %v2602 = vld [vmem:[%s19 + $0x20] sm:$0xf]
        %2604 = vset.pattern.permute.xlu0 0
        %2605 = vperm.xlu0 %2604, %v2598
        %v2606 = vpop.permute.xlu0 %2605
        %2609 = vset.pattern.permute.xlu0 0
        %2610 = vperm.xlu0 %2609, %v2599
        %v2611 = vpop.permute.xlu0 %2610
        %2614 = vset.pattern.permute.xlu0 0
        %2615 = vperm.xlu0 %2614, %v2600
        %v2616 = vpop.permute.xlu0 %2615
        %2619 = vset.pattern.permute.xlu0 0
        %2620 = vperm.xlu0 %2619, %v2601
        %v2621 = vpop.permute.xlu0 %2620
        %2624 = vset.pattern.permute.xlu0 0
        %2625 = vperm.xlu0 %2624, %v2602
        %v2626 = vpop.permute.xlu0 %2625
        %v2633 = vunpack.c.l.b16 %v2593
        %v2634 = vunpack.c.l.b16 %v2594
        %v2635 = vunpack.c.l.b16 %v2595
        %v2636 = vunpack.c.l.b16 %v2596
        %v2637 = vunpack.c.l.b16 %v2597
        %v2638 = vpack.c.b16 %v2634, %v2633
        %v2639 = vpack.c.b16 %v2636, %v2635
        %v2640 = vpack.c.b16 %v2637, %v2637
        %v2642 = vsel %vm1411, %v2638, 0
        %v2645 = vsel %vm1411, %v2639, 0
        %v2648 = vsel %vm1411, %v2640, 0
        %2650 = vmatprep.subr.bf16.mxu0 %v2586
        %2651 = vmatpush1.bf16.msra.mxu0 %v2585
        %2652 = vmatprep.subr.bf16.mxu0 %v2590
        %2653 = vmatpush1.bf16.msra.mxu0 %v2589
        %2654 = vmatprep.subr.bf16.mxu0 0
        %2655 = vmatpush1.bf16.msra.mxu0 0
        %2656 = vmatprep.subr.bf16.mxu0 0
        %2657 = vmatpush1.bf16.msra.mxu0 0
        %2658 = vmatprep.subr.bf16.mxu0 0
        %2659 = vmatpush1.bf16.msra.mxu0 0
        %2660 = vmatprep.subr.bf16.mxu0 0
        %2661 = vmatpush1.bf16.msra.mxu0 0
        %2662 = vmatprep.subr.bf16.mxu0 0
        %2663 = vmatpush1.bf16.msra.mxu0 0
        %2664 = vmatprep.subr.bf16.mxu0 0
        %2665 = vmatpush1.bf16.msra.mxu0 0
        %2666 = vmatprep.subr.bf16.mxu0 0
        %2667 = vmatpush1.bf16.msra.mxu0 0
        %2668 = vmatprep.subr.bf16.mxu0 0
        %2669 = vmatpush1.bf16.msra.mxu0 0
        %2670 = vmatprep.subr.bf16.mxu0 0
        %2671 = vmatpush1.bf16.msra.mxu0 0
        %2672 = vmatprep.subr.bf16.mxu0 0
        %2673 = vmatpush1.bf16.msra.mxu0 0
        %2674 = vmatprep.subr.bf16.mxu0 0
        %2675 = vmatpush1.bf16.msra.mxu0 0
        %2676 = vmatprep.subr.bf16.mxu0 0
        %2677 = vmatpush1.bf16.msra.mxu0 0
        %2678 = vmatprep.subr.bf16.mxu0 0
        %2679 = vmatpush1.bf16.msra.mxu0 0
        %2680 = vmatprep.subr.bf16.mxu0 0
        %2681 = vmatpush1.bf16.msra.mxu0 0
        %2682 = vmatprep.mubr.bf16.mxu0 0
        %2683 = vmatmul.mubr.bf16.gmra.mrb[0].mxu0 %v2642
        %v2684 = vpop.f32.mrb[0].mxu0
        %v2685 = vadd.f32 %v2606, %v2684
        %v2686 = vpop.f32.mrb[0].mxu0
        %v2687 = vadd.f32 %v2606, %v2686
        %v2688 = vpop.f32.mrb[0].mxu0
        %v2689 = vadd.f32 %v2611, %v2688
        %v2690 = vpop.f32.mrb[0].mxu0
        %v2691 = vadd.f32 %v2611, %v2690
        %2692 = vmatprep.mubr.bf16.mxu0 0
        %2693 = vmatmul.mubr.bf16.gmra.mrb[0].mxu0 %v2645
        %v2694 = vpop.f32.mrb[0].mxu0
        %v2695 = vadd.f32 %v2616, %v2694
        %v2696 = vpop.f32.mrb[0].mxu0
        %v2697 = vadd.f32 %v2616, %v2696
        %v2698 = vpop.f32.mrb[0].mxu0
        %v2699 = vadd.f32 %v2621, %v2698
        %v2700 = vpop.f32.mrb[0].mxu0
        %v2701 = vadd.f32 %v2621, %v2700
        %2702 = vmatprep.mubr.bf16.mxu0 0
        %2703 = vmatmul.mubr.bf16.gmra.mrb[0].mxu0 %v2648
        %v2704 = vpop.f32.mrb[0].mxu0
        %v2705 = vadd.f32 %v2626, %v2704
        %v2706 = vpop.f32.mrb[0].mxu0
        %v2707 = vadd.f32 %v2626, %v2706
        %v2708 = vpop.f32.mrb[0].mxu0
        %v2709 = vpop.f32.mrb[0].mxu0
        %2710 = vdwg.mxu0
        %2711 = vmatprep.subr.bf16.mxu0 %v2588
        %2712 = vmatpush1.bf16.msra.mxu0 %v2587
        %2713 = vmatprep.subr.bf16.mxu0 %v2592
        %2714 = vmatpush1.bf16.msra.mxu0 %v2591
        %2715 = vmatprep.subr.bf16.mxu0 0
        %2716 = vmatpush1.bf16.msra.mxu0 0
        %2717 = vmatprep.subr.bf16.mxu0 0
        %2718 = vmatpush1.bf16.msra.mxu0 0
        %2719 = vmatprep.subr.bf16.mxu0 0
        %2720 = vmatpush1.bf16.msra.mxu0 0
        %2721 = vmatprep.subr.bf16.mxu0 0
        %2722 = vmatpush1.bf16.msra.mxu0 0
        %2723 = vmatprep.subr.bf16.mxu0 0
        %2724 = vmatpush1.bf16.msra.mxu0 0
        %2725 = vmatprep.subr.bf16.mxu0 0
        %2726 = vmatpush1.bf16.msra.mxu0 0
        %2727 = vmatprep.subr.bf16.mxu0 0
        %2728 = vmatpush1.bf16.msra.mxu0 0
        %2729 = vmatprep.subr.bf16.mxu0 0
        %2730 = vmatpush1.bf16.msra.mxu0 0
        %2731 = vmatprep.subr.bf16.mxu0 0
        %2732 = vmatpush1.bf16.msra.mxu0 0
        %2733 = vmatprep.subr.bf16.mxu0 0
        %2734 = vmatpush1.bf16.msra.mxu0 0
        %2735 = vmatprep.subr.bf16.mxu0 0
        %2736 = vmatpush1.bf16.msra.mxu0 0
        %2737 = vmatprep.subr.bf16.mxu0 0
        %2738 = vmatpush1.bf16.msra.mxu0 0
        %2739 = vmatprep.subr.bf16.mxu0 0
        %2740 = vmatpush1.bf16.msra.mxu0 0
        %2741 = vmatprep.subr.bf16.mxu0 0
        %2742 = vmatpush1.bf16.msra.mxu0 0
        %2743 = vmatprep.mubr.bf16.mxu0 0
        %2744 = vmatmul.mubr.bf16.gmra.mrb[0].mxu0 %v2642
        %v2745 = vpop.f32.mrb[0].mxu0
        %v2746 = vadd.f32 %v2606, %v2745
        %v2747 = vpop.f32.mrb[0].mxu0
        %v2748 = vadd.f32 %v2606, %v2747
        %v2749 = vpop.f32.mrb[0].mxu0
        %v2750 = vadd.f32 %v2611, %v2749
        %v2751 = vpop.f32.mrb[0].mxu0
        %v2752 = vadd.f32 %v2611, %v2751
        %2753 = vmatprep.mubr.bf16.mxu0 0
        %2754 = vmatmul.mubr.bf16.gmra.mrb[0].mxu0 %v2645
        %v2755 = vpop.f32.mrb[0].mxu0
        %v2756 = vadd.f32 %v2616, %v2755
        %v2757 = vpop.f32.mrb[0].mxu0
        %v2758 = vadd.f32 %v2616, %v2757
        %v2759 = vpop.f32.mrb[0].mxu0
        %v2760 = vadd.f32 %v2621, %v2759
        %v2761 = vpop.f32.mrb[0].mxu0
        %v2762 = vadd.f32 %v2621, %v2761
        %2763 = vmatprep.mubr.bf16.mxu0 0
        %2764 = vmatmul.mubr.bf16.gmra.mrb[0].mxu0 %v2648
        %v2765 = vpop.f32.mrb[0].mxu0
        %v2766 = vadd.f32 %v2626, %v2765
        %v2767 = vpop.f32.mrb[0].mxu0
        %v2768 = vadd.f32 %v2626, %v2767
        %v2769 = vpop.f32.mrb[0].mxu0
        %v2770 = vpop.f32.mrb[0].mxu0
        %2771 = vdwg.mxu0
        %v2772 = vpack.c.bf16 %v2689, %v2685
        %v2773 = vpack.c.bf16 %v2691, %v2687
        %v2774 = vpack.c.bf16 %v2750, %v2746
        %v2775 = vpack.c.bf16 %v2752, %v2748
        %v2776 = vpack.c.bf16 %v2699, %v2695
        %v2777 = vpack.c.bf16 %v2701, %v2697
        %v2778 = vpack.c.bf16 %v2760, %v2756
        %v2779 = vpack.c.bf16 %v2762, %v2758
        %v2780 = vld [vmem:[%s20] sm:$0xf]
        %v2781 = vld [vmem:[%s20 + $0x4] sm:$0xf]
        %v2782 = vld [vmem:[%s20 + $0x8] sm:$0xf]
        %v2783 = vld [vmem:[%s20 + $0xc] sm:$0xf]
        %v2784 = vld [vmem:[%s21] sm:$0xff]
        %v2785 = vld [vmem:[%s21 + $0x8] sm:$0xff]
        %v2786 = vld [vmem:[%s21 + $0x10] sm:$0xff]
        %v2787 = vld [vmem:[%s21 + $0x18] sm:$0xff]
        %2789 = vset.pattern.permute.xlu0 0
        %2790 = vperm.xlu0 %2789, %v2784
        %v2791 = vpop.permute.xlu0 %2790
        %2794 = vset.pattern.permute.xlu0 0
        %2795 = vperm.xlu0 %2794, %v2785
        %v2796 = vpop.permute.xlu0 %2795
        %2799 = vset.pattern.permute.xlu0 0
        %2800 = vperm.xlu0 %2799, %v2786
        %v2801 = vpop.permute.xlu0 %2800
        %2804 = vset.pattern.permute.xlu0 0
        %2805 = vperm.xlu0 %2804, %v2787
        %v2806 = vpop.permute.xlu0 %2805
        %v2812 = vunpack.c.l.b16 %v2780
        %v2813 = vunpack.c.l.b16 %v2781
        %v2814 = vunpack.c.l.b16 %v2782
        %v2815 = vunpack.c.l.b16 %v2783
        %v2816 = vpack.c.b16 %v2813, %v2812
        %v2817 = vpack.c.b16 %v2815, %v2814
        %vm2818 = vcmask 326656
        %v2820 = vsel %vm2818, %v2816, 0
        %v2823 = vsel %vm2818, %v2817, 0
        %vm2825 = vcmask 1043456
        %v2827 = vsel %vm2825, %v1194, 0
        %v2830 = vsel %vm2825, %v1195, 0
        %v2833 = vsel %vm2825, %v1196, 0
        %v2836 = vsel %vm2825, %v1197, 0
        %2838 = vmatprep.subr.bf16.mxu0 %v2773
        %2839 = vmatpush1.bf16.msra.mxu0 %v2772
        %2840 = vmatprep.subr.bf16.mxu0 %v2777
        %2841 = vmatpush1.bf16.msra.mxu0 %v2776
        %2842 = vmatprep.subr.bf16.mxu0 %v2830
        %2843 = vmatpush1.bf16.msra.mxu0 %v2827
        %2844 = vmatprep.subr.bf16.mxu0 0
        %2845 = vmatpush1.bf16.msra.mxu0 0
        %2846 = vmatprep.subr.bf16.mxu0 0
        %2847 = vmatpush1.bf16.msra.mxu0 0
        %2848 = vmatprep.subr.bf16.mxu0 0
        %2849 = vmatpush1.bf16.msra.mxu0 0
        %2850 = vmatprep.subr.bf16.mxu0 0
        %2851 = vmatpush1.bf16.msra.mxu0 0
        %2852 = vmatprep.subr.bf16.mxu0 0
        %2853 = vmatpush1.bf16.msra.mxu0 0
        %2854 = vmatprep.subr.bf16.mxu0 0
        %2855 = vmatpush1.bf16.msra.mxu0 0
        %2856 = vmatprep.subr.bf16.mxu0 0
        %2857 = vmatpush1.bf16.msra.mxu0 0
        %2858 = vmatprep.subr.bf16.mxu0 0
        %2859 = vmatpush1.bf16.msra.mxu0 0
        %2860 = vmatprep.subr.bf16.mxu0 0
        %2861 = vmatpush1.bf16.msra.mxu0 0
        %2862 = vmatprep.subr.bf16.mxu0 0
        %2863 = vmatpush1.bf16.msra.mxu0 0
        %2864 = vmatprep.subr.bf16.mxu0 0
        %2865 = vmatpush1.bf16.msra.mxu0 0
        %2866 = vmatprep.subr.bf16.mxu0 0
        %2867 = vmatpush1.bf16.msra.mxu0 0
        %2868 = vmatprep.subr.bf16.mxu0 0
        %2869 = vmatpush1.bf16.msra.mxu0 0
        %2870 = vmatprep.mubr.bf16.mxu0 0
        %2871 = vmatmul.mubr.bf16.gmra.mrb[0].mxu0 %v2820
        %v2872 = vpop.f32.mrb[0].mxu0
        %v2873 = vadd.f32 %v2791, %v2872
        %v2874 = vpop.f32.mrb[0].mxu0
        %v2875 = vadd.f32 %v2791, %v2874
        %v2876 = vpop.f32.mrb[0].mxu0
        %v2877 = vadd.f32 %v2796, %v2876
        %v2878 = vpop.f32.mrb[0].mxu0
        %v2879 = vadd.f32 %v2796, %v2878
        %2880 = vmatprep.mubr.bf16.mxu0 0
        %2881 = vmatmul.mubr.bf16.gmra.mrb[0].mxu0 %v2823
        %v2882 = vpop.f32.mrb[0].mxu0
        %v2883 = vadd.f32 %v2801, %v2882
        %v2884 = vpop.f32.mrb[0].mxu0
        %v2885 = vadd.f32 %v2801, %v2884
        %v2886 = vpop.f32.mrb[0].mxu0
        %v2887 = vadd.f32 %v2806, %v2886
        %v2888 = vpop.f32.mrb[0].mxu0
        %v2889 = vadd.f32 %v2806, %v2888
        %2890 = vdwg.mxu0
        %2891 = vmatprep.subr.bf16.mxu0 %v2775
        %2892 = vmatpush1.bf16.msra.mxu0 %v2774
        %2893 = vmatprep.subr.bf16.mxu0 %v2779
        %2894 = vmatpush1.bf16.msra.mxu0 %v2778
        %2895 = vmatprep.subr.bf16.mxu0 %v2836
        %2896 = vmatpush1.bf16.msra.mxu0 %v2833
        %2897 = vmatprep.subr.bf16.mxu0 0
        %2898 = vmatpush1.bf16.msra.mxu0 0
        %2899 = vmatprep.subr.bf16.mxu0 0
        %2900 = vmatpush1.bf16.msra.mxu0 0
        %2901 = vmatprep.subr.bf16.mxu0 0
        %2902 = vmatpush1.bf16.msra.mxu0 0
        %2903 = vmatprep.subr.bf16.mxu0 0
        %2904 = vmatpush1.bf16.msra.mxu0 0
        %2905 = vmatprep.subr.bf16.mxu0 0
        %2906 = vmatpush1.bf16.msra.mxu0 0
        %2907 = vmatprep.subr.bf16.mxu0 0
        %2908 = vmatpush1.bf16.msra.mxu0 0
        %2909 = vmatprep.subr.bf16.mxu0 0
        %2910 = vmatpush1.bf16.msra.mxu0 0
        %2911 = vmatprep.subr.bf16.mxu0 0
        %2912 = vmatpush1.bf16.msra.mxu0 0
        %2913 = vmatprep.subr.bf16.mxu0 0
        %2914 = vmatpush1.bf16.msra.mxu0 0
        %2915 = vmatprep.subr.bf16.mxu0 0
        %2916 = vmatpush1.bf16.msra.mxu0 0
        %2917 = vmatprep.subr.bf16.mxu0 0
        %2918 = vmatpush1.bf16.msra.mxu0 0
        %2919 = vmatprep.subr.bf16.mxu0 0
        %2920 = vmatpush1.bf16.msra.mxu0 0
        %2921 = vmatprep.subr.bf16.mxu0 0
        %2922 = vmatpush1.bf16.msra.mxu0 0
        %2923 = vmatprep.mubr.bf16.mxu0 0
        %2924 = vmatmul.mubr.bf16.gmra.mrb[0].mxu0 %v2820
        %v2925 = vpop.f32.mrb[0].mxu0
        %v2926 = vadd.f32 %v2791, %v2925
        %v2927 = vpop.f32.mrb[0].mxu0
        %v2928 = vadd.f32 %v2791, %v2927
        %v2929 = vpop.f32.mrb[0].mxu0
        %v2930 = vadd.f32 %v2796, %v2929
        %v2931 = vpop.f32.mrb[0].mxu0
        %v2932 = vadd.f32 %v2796, %v2931
        %2933 = vmatprep.mubr.bf16.mxu0 0
        %2934 = vmatmul.mubr.bf16.gmra.mrb[0].mxu0 %v2823
        %v2935 = vpop.f32.mrb[0].mxu0
        %v2936 = vadd.f32 %v2801, %v2935
        %v2937 = vpop.f32.mrb[0].mxu0
        %v2938 = vadd.f32 %v2801, %v2937
        %v2939 = vpop.f32.mrb[0].mxu0
        %v2940 = vadd.f32 %v2806, %v2939
        %v2941 = vpop.f32.mrb[0].mxu0
        %v2942 = vadd.f32 %v2806, %v2941
        %2943 = vdwg.mxu0
        %v2944 = vmax.f32 %v2873, 0.0
        %v2945 = vmax.f32 %v2875, 0.0
        %v2946 = vmax.f32 %v2926, 0.0
        %v2947 = vmax.f32 %v2928, 0.0
        %v2948 = vmax.f32 %v2877, 0.0
        %v2949 = vmax.f32 %v2879, 0.0
        %v2950 = vmax.f32 %v2930, 0.0
        %v2951 = vmax.f32 %v2932, 0.0
        %v2952 = vmax.f32 %v2883, 0.0
        %v2953 = vmax.f32 %v2885, 0.0
        %v2954 = vmax.f32 %v2936, 0.0
        %v2955 = vmax.f32 %v2938, 0.0
        %v2956 = vmax.f32 %v2887, 0.0
        %v2957 = vmax.f32 %v2889, 0.0
        %v2958 = vmax.f32 %v2940, 0.0
        %v2959 = vmax.f32 %v2942, 0.0
        %v2960 = vpack.c.bf16 %v2948, %v2944
        %v2961 = vpack.c.bf16 %v2949, %v2945
        %v2962 = vpack.c.bf16 %v2950, %v2946
        %v2963 = vpack.c.bf16 %v2951, %v2947
        %v2964 = vpack.c.bf16 %v2956, %v2952
        %v2965 = vpack.c.bf16 %v2957, %v2953
        %v2966 = vpack.c.bf16 %v2958, %v2954
        %v2967 = vpack.c.bf16 %v2959, %v2955
        %v2968 = vld [vmem:[%s22] sm:$0x3]
        %v2969 = vld [vmem:[%s23] sm:$0xf]
        %2971 = vset.pattern.permute.xlu0 0
        %2972 = vperm.xlu0 %2971, %v2969
        %v2973 = vpop.permute.xlu0 %2972
        %v2976 = vsel %vm1411, %v2968, 0
        %2978 = vmatprep.subr.bf16.mxu0 %v2961
        %2979 = vmatpush1.bf16.msra.mxu0 %v2960
        %2980 = vmatprep.subr.bf16.mxu0 %v2965
        %2981 = vmatpush1.bf16.msra.mxu0 %v2964
        %2982 = vmatprep.subr.bf16.mxu0 0
        %2983 = vmatpush1.bf16.msra.mxu0 0
        %2984 = vmatprep.subr.bf16.mxu0 0
        %2985 = vmatpush1.bf16.msra.mxu0 0
        %2986 = vmatprep.subr.bf16.mxu0 0
        %2987 = vmatpush1.bf16.msra.mxu0 0
        %2988 = vmatprep.subr.bf16.mxu0 0
        %2989 = vmatpush1.bf16.msra.mxu0 0
        %2990 = vmatprep.subr.bf16.mxu0 0
        %2991 = vmatpush1.bf16.msra.mxu0 0
        %2992 = vmatprep.subr.bf16.mxu0 0
        %2993 = vmatpush1.bf16.msra.mxu0 0
        %2994 = vmatprep.subr.bf16.mxu0 0
        %2995 = vmatpush1.bf16.msra.mxu0 0
        %2996 = vmatprep.subr.bf16.mxu0 0
        %2997 = vmatpush1.bf16.msra.mxu0 0
        %2998 = vmatprep.subr.bf16.mxu0 0
        %2999 = vmatpush1.bf16.msra.mxu0 0
        %3000 = vmatprep.subr.bf16.mxu0 0
        %3001 = vmatpush1.bf16.msra.mxu0 0
        %3002 = vmatprep.subr.bf16.mxu0 0
        %3003 = vmatpush1.bf16.msra.mxu0 0
        %3004 = vmatprep.subr.bf16.mxu0 0
        %3005 = vmatpush1.bf16.msra.mxu0 0
        %3006 = vmatprep.subr.bf16.mxu0 0
        %3007 = vmatpush1.bf16.msra.mxu0 0
        %3008 = vmatprep.subr.bf16.mxu0 0
        %3009 = vmatpush1.bf16.msra.mxu0 0
        %3010 = vmatprep.mubr.bf16.mxu0 0
        %3011 = vmatmul.mubr.bf16.gmra.mrb[0].mxu0 %v2976
        %v3012 = vpop.f32.mrb[0].mxu0
        %v3013 = vadd.f32 %v2973, %v3012
        %v3014 = vpop.f32.mrb[0].mxu0
        %v3015 = vadd.f32 %v2973, %v3014
        %v3016 = vpop.f32.mrb[0].mxu0
        %v3017 = vpop.f32.mrb[0].mxu0
        %3018 = vdwg.mxu0
        %3019 = vmatprep.subr.bf16.mxu0 %v2963
        %3020 = vmatpush1.bf16.msra.mxu0 %v2962
        %3021 = vmatprep.subr.bf16.mxu0 %v2967
        %3022 = vmatpush1.bf16.msra.mxu0 %v2966
        %3023 = vmatprep.subr.bf16.mxu0 0
        %3024 = vmatpush1.bf16.msra.mxu0 0
        %3025 = vmatprep.subr.bf16.mxu0 0
        %3026 = vmatpush1.bf16.msra.mxu0 0
        %3027 = vmatprep.subr.bf16.mxu0 0
        %3028 = vmatpush1.bf16.msra.mxu0 0
        %3029 = vmatprep.subr.bf16.mxu0 0
        %3030 = vmatpush1.bf16.msra.mxu0 0
        %3031 = vmatprep.subr.bf16.mxu0 0
        %3032 = vmatpush1.bf16.msra.mxu0 0
        %3033 = vmatprep.subr.bf16.mxu0 0
        %3034 = vmatpush1.bf16.msra.mxu0 0
        %3035 = vmatprep.subr.bf16.mxu0 0
        %3036 = vmatpush1.bf16.msra.mxu0 0
        %3037 = vmatprep.subr.bf16.mxu0 0
        %3038 = vmatpush1.bf16.msra.mxu0 0
        %3039 = vmatprep.subr.bf16.mxu0 0
        %3040 = vmatpush1.bf16.msra.mxu0 0
        %3041 = vmatprep.subr.bf16.mxu0 0
        %3042 = vmatpush1.bf16.msra.mxu0 0
        %3043 = vmatprep.subr.bf16.mxu0 0
        %3044 = vmatpush1.bf16.msra.mxu0 0
        %3045 = vmatprep.subr.bf16.mxu0 0
        %3046 = vmatpush1.bf16.msra.mxu0 0
        %3047 = vmatprep.subr.bf16.mxu0 0
        %3048 = vmatpush1.bf16.msra.mxu0 0
        %3049 = vmatprep.subr.bf16.mxu0 0
        %3050 = vmatpush1.bf16.msra.mxu0 0
        %3051 = vmatprep.mubr.bf16.mxu0 0
        %3052 = vmatmul.mubr.bf16.gmra.mrb[0].mxu0 %v2976
        %v3053 = vpop.f32.mrb[0].mxu0
        %v3054 = vadd.f32 %v2973, %v3053
        %v3055 = vpop.f32.mrb[0].mxu0
        %v3056 = vadd.f32 %v2973, %v3055
        %v3057 = vpop.f32.mrb[0].mxu0
        %v3058 = vpop.f32.mrb[0].mxu0
        %3059 = vdwg.mxu0
        %v3060 = vadd.f32 %v3013, %v2705
        %v3061 = vadd.f32 %v3015, %v2707
        %v3062 = vadd.f32 %v3054, %v2766
        %v3063 = vadd.f32 %v3056, %v2768
        %v3068 = vcombine.low %v3060, %v3061
        %v3069 = vcombine.low %v3062, %v3063
        %3072 = vst [vmem:[%s771] sm:$0xff] %v3068
        %3073 = vst [vmem:[%s771 + $0x8] sm:$0xff] %v3069
        %s3074 = sand.u32 %s560, 1
        %s3075 = scalar_lea.sflag [#allocation3], %s3074
        %s3076 = sand.u32 %s560, 1
        %s3077 = smul.addr %s3076, 16
        %s3078 = scalar_lea.vmem [#allocation2], %s3077
        // Predicated region
        $region117: #{tpu_custom_call.1} parent=115 // pred_check
          %p3079 = pneg %p570
        $region118: #{tpu_custom_call.1} parent=115 // pred_check_branch
          %3081 = sbr.rel (%p3079) target = $region120
        $region119: #{tpu_custom_call.1} parent=115 // pred_region
          %s3082 = smul.u32 4, %s38
          %s3083 = ssub.s32 7, %s3082
          %p3084 = scmp.lt.s32.totalorder %s3083, 4
          %s3085 = scalar_select %p3084, %s3083, 4
          %s3086 = smul.u32 64, %s3085
          %s3088 = ssub.s32 256, %s3086
          %3089 = vsyncadd %s3075, %s3088
          %p3090 = scmp.ne.s32.totalorder 0, %s3086
          %s3091 = smul.addr %s3082, 64
          %s3092 = scalar_lea.hbm %s24, %s3091
          %s3093 = smul.u32 %s3085, 4
          %s3094 = sshll.u32 %s3093, 4
          %s3095 = sshll.u32 %s3078, 4
          %s3096 = int_to_ptr.vmem [resolvable:$true] %s3095
          %3098 = dma.vmem_to_hbm [thread:$0]  (%p3090), %s3096, %s3094, %s3092, %s3075
        $region120: #{tpu_custom_call.1} parent=115 // pred_fallthru
          _
      $region116: #{tpu_custom_call.1} parent=5 // pred_fallthru
        _
      %p3099 = scmp.le.s32.totalorder 2, %s33
      // Predicated region
      $region121: #{tpu_custom_call.1} parent=5 // pred_check
        %p3100 = pneg %p3099
      $region122: #{tpu_custom_call.1} parent=5 // pred_check_branch
        %3102 = sbr.rel (%p3100) target = $region124
      $region123: #{tpu_custom_call.1} parent=5 // pred_region
        %s3103 = ssub.s32 %s33, 2
        // Predicated region
        $region125: #{tpu_custom_call.1} parent=123 // pred_check
          %p3104 = pneg %p576
        $region126: #{tpu_custom_call.1} parent=123 // pred_check_branch
          %3106 = sbr.rel (%p3104) target = $region128
        $region127: #{tpu_custom_call.1} parent=123 // pred_region
          %s3107 = sand.u32 %s561, 1
          %s3108 = scalar_lea.sflag [#allocation3], %s3107
          %s3109 = sand.u32 %s561, 1
          %s3110 = smul.addr %s3109, 16
          %s3111 = scalar_lea.vmem [#allocation2], %s3110
          %3112 = dma.done %s3108, 256
        $region128: #{tpu_custom_call.1} parent=123 // pred_fallthru
          _
      $region124: #{tpu_custom_call.1} parent=5 // pred_fallthru
        _
    $region6: #{tpu_custom_call.1} parent=1 // loop_footer
      %s37 = sadd.s32 1, %s33
    $region7: #{tpu_custom_call.1} parent=1 // loop_footer_branch
      %32 = sbr.rel target = $region3
    $region8: #{tpu_custom_call.1} parent=1 // loop_exit
      _
    %3113 = vsyncpa [#allocation3], 1
    %s3114 = scalar_lea.sflag [#allocation3], 1
    %3115 = vsyncpa %s3114, 1

</llo_original>
